<compile_context>
chip_gen: v7x
topology: tpu7x:2x2x1
jax: 0.10.0
libtpu: 0.0.40
codegen_flags: <defaults>
</compile_context>

<pallas_src>
import functools

import jax
import jax.numpy as jnp
from jax import lax
from jax.experimental import pallas as pl
from jax.experimental.pallas import tpu as pltpu


# ---------------------------------------------------------------------------
# Helpers
# ---------------------------------------------------------------------------

def _const_spec(shape):
    """BlockSpec for an un-tiled operand replicated to every grid step."""
    zeros = (0,) * len(shape)
    return pl.BlockSpec(shape, lambda *_: zeros)
    # TODO(synk): mark these pipeline_mode=pl.Buffered(1) (single-buffered constants)
    # once validated on the target jax version, to save VMEM on v7x.


def _avgpool_matrix(n_in, k):
    n_out = n_in // k
    rows = jnp.arange(n_out)[:, None]
    cols = jnp.arange(n_in)[None, :]
    m = ((cols >= rows * k) & (cols < (rows + 1) * k)).astype(jnp.float32)
    return m / float(k)                                   # (n_out, n_in)


def _bilinear_matrix_ac(n_out, n_in):
    """Matrix form of F.interpolate(..., mode='bilinear', align_corners=True)."""
    if n_in == 1:
        return jnp.ones((n_out, 1), jnp.float32)
    if n_out == 1:
        return jnp.zeros((1, n_in), jnp.float32).at[0, 0].set(1.0)
    s = jnp.arange(n_out, dtype=jnp.float32) * (n_in - 1) / (n_out - 1)
    i0 = jnp.clip(jnp.floor(s).astype(jnp.int32), 0, n_in - 1)
    i1 = jnp.clip(i0 + 1, 0, n_in - 1)
    frac = s - i0.astype(jnp.float32)
    cols = jnp.arange(n_in)[None, :]
    m0 = (cols == i0[:, None]).astype(jnp.float32) * (1.0 - frac)[:, None]
    m1 = (cols == i1[:, None]).astype(jnp.float32) * frac[:, None]
    return m0 + m1                                        # (n_out, n_in)


# ---------------------------------------------------------------------------
# Kernel 1: AvgPool + LN1 + linear attention + out conv + residual + LN2 + MLP
# ---------------------------------------------------------------------------

def _pool_attn_mlp_kernel(x_ref, pool_ref, g1_ref, be1_ref,
                          wq_ref, bq_ref, wk_ref, bk_ref, wv_ref, bv_ref,
                          wo_ref, bo_ref, mask_ref,
                          g2_ref, be2_ref, w1_ref, bm1_ref, w2_ref, bm2_ref,
                          o_ref, *, n_tokens, eps_ln, eps_attn):
    f32 = jnp.float32
    bf16 = jnp.bfloat16
    xt = x_ref[0]                                                    # (HW, C), C on lanes

    # AvgPool2d fused as one lane-dense MXU matmul: (L, HW) @ (HW, C).
    pooled = jnp.dot(pool_ref[...], xt.astype(bf16),
                     preferred_element_type=f32)                     # (L, C)

    # LayerNorm 1 over channels (f32, lane reduction).
    mu = jnp.mean(pooled, axis=-1, keepdims=True)
    xc = pooled - mu
    var = jnp.mean(xc * xc, axis=-1, keepdims=True)
    xn = xc * lax.rsqrt(var + eps_ln) * g1_ref[...] + be1_ref[...]
    xn16 = xn.astype(bf16)

    # q/k/v 1x1 convs == whole-C token matmuls.
    q = jnp.dot(xn16, wq_ref[...], preferred_element_type=f32) + bq_ref[...]
    k = jnp.dot(xn16, wk_ref[...], preferred_element_type=f32) + bk_ref[...]
    v = jnp.dot(xn16, wv_ref[...], preferred_element_type=f32) + bv_ref[...]

    # elu(x)+1 feature maps (f32 on VPU/EUP).
    Qe = jnp.where(q > 0, q + 1.0, jnp.exp(q))
    Ke = jnp.where(k > 0, k + 1.0, jnp.exp(k))
    Vs = v * (1.0 / n_tokens)                                        # values / v_length

    mask = mask_ref[...]                                             # (C, C) 0/1 head mask (bf16)

    # Whole-C linear attention: KV_full over all channels, then block-diag mask.
    kv = lax.dot_general(Ke.astype(bf16), Vs.astype(bf16),
                         (((0,), (0,)), ((), ())),
                         preferred_element_type=f32)                 # (C, C) = Ke^T @ Vs
    kv_bd = kv * mask.astype(f32)
    # Per-head denominator, replicated across each head's lanes via the same mask.
    ksum = jnp.sum(Ke, axis=0, keepdims=True)                        # (1, C)
    den = jnp.dot((Qe * ksum).astype(bf16), mask,
                  preferred_element_type=f32)                        # (L, C)
    z = pl.reciprocal(den + eps_attn, approx=True)                   # EUP slot, off the VALU
    p_att = jnp.dot(Qe.astype(bf16), kv_bd.astype(bf16),
                    preferred_element_type=f32)                      # (L, C)
    heads_out = p_att * z * float(n_tokens)

    # Output 1x1 conv (single (L,C)@(C,C) matmul) + residual with pooled tokens.
    attn = jnp.dot(heads_out.astype(bf16), wo_ref[...],
                   preferred_element_type=f32) + bo_ref[...]
    t = pooled + attn

    # LayerNorm 2 + MLP + residual.
    mu2 = jnp.mean(t, axis=-1, keepdims=True)
    tc = t - mu2
    var2 = jnp.mean(tc * tc, axis=-1, keepdims=True)
    tn = tc * lax.rsqrt(var2 + eps_ln) * g2_ref[...] + be2_ref[...]
    h = jnp.dot(tn.astype(bf16), w1_ref[...], preferred_element_type=f32) + bm1_ref[...]
    h = jnp.maximum(h, 0.0)
    m = jnp.dot(h.astype(bf16), w2_ref[...], preferred_element_type=f32) + bm2_ref[...]
    o_ref[0] = (t + m).astype(o_ref.dtype)
    # TODO(synk): for large pooled L, tile L (KV/ksum accumulation pass + Q pass) to
    # bound the per-step VMEM working set under v7x's 64 MiB.


# ---------------------------------------------------------------------------
# Kernel 2: bilinear upsample + residual + depthwise 3x3 + ReLU + pointwise 1x1
# ---------------------------------------------------------------------------

def _upsample_ldw_kernel(x_ref, t_ref, up_ref, dww_ref, dwb_ref, pww_ref, pwb_ref,
                         o_ref):
    f32 = jnp.float32
    bf16 = jnp.bfloat16
    H, W, C = x_ref.shape[1], x_ref.shape[2], x_ref.shape[3]
    Co = o_ref.shape[3]

    x = x_ref[0]                                                     # (H, W, C)
    t = t_ref[0]                                                     # (L, C) pooled tokens

    # Bilinear (align_corners=True) upsample fused as one lane-dense matmul.
    up = jnp.dot(up_ref[...], t.astype(bf16), preferred_element_type=f32)   # (H*W, C)
    s = x + up.reshape(H, W, C)                                      # residual, full-res

    # Depthwise 3x3 with implicit zero padding built in VMEM (no jnp.pad HBM pass):
    # dx shifts come from a single W-padded copy (2 unaligned sublane slices total),
    # dy shifts are cheap leading-axis concats.
    # TODO(synk): replace the two unaligned sublane slices with pltpu.roll(axis=1)+mask
    # to make the taps fully relayout-free.
    zcol = jnp.zeros((H, 1, C), f32)
    s_wide = jnp.concatenate([zcol, s, zcol], axis=1)                # (H, W+2, C)
    sx = tuple(s_wide[:, j:j + W, :] for j in range(3))              # j = dx + 1
    zrow = jnp.zeros((1, W, C), f32)

    acc = jnp.zeros((H, W, C), f32)
    for dy in (-1, 0, 1):
        for dx in (-1, 0, 1):
            tap = dww_ref[(dy + 1) * 3 + (dx + 1)]                   # (1, C)
            sh = sx[dx + 1]
            if dy == -1:
                sh = jnp.concatenate([zrow, sh[:H - 1]], axis=0)     # s[p-1, q+dx]
            elif dy == 1:
                sh = jnp.concatenate([sh[1:], zrow], axis=0)         # s[p+1, q+dx]
            acc = acc + sh * tap
    d = jnp.maximum(acc + dwb_ref[...], 0.0)                         # (H, W, C)

    # Pointwise 1x1 conv to C_out, fused (no intermediate full-res HBM write).
    y = jnp.dot(d.reshape(H * W, C).astype(bf16), pww_ref[...],
                preferred_element_type=f32) + pwb_ref[...]
    o_ref[0] = y.reshape(H, W, Co).astype(o_ref.dtype)
    # TODO(synk): for large H, tile spatially with halo rows (grid=(B, H//TH)) so the
    # per-step block stays a few MiB under v7x's 64 MiB VMEM and feeds both TCs.


# ---------------------------------------------------------------------------
# Full AttentionBlock forward
# ---------------------------------------------------------------------------

@functools.partial(jax.jit, static_argnames=("num_heads", "pooling"))
def attention_block_forward(x, params, *, num_heads=8, pooling=(4, 4)):
    B, C, H, W = x.shape
    ph, pw = pooling
    Hp, Wp = H // ph, W // pw
    L = Hp * Wp
    HW = H * W
    Hd = params["w1_t"].shape[1]
    C_out = params["pw_w_t"].shape[1]
    D = C // num_heads
    bf16 = jnp.bfloat16

    # Only full-res layout transposes in the whole forward (module I/O is NCHW).
    x_nhwc = jnp.transpose(x, (0, 2, 3, 1))                          # (B, H, W, C)
    x_tok = x_nhwc.reshape(B, HW, C)

    # Separable pool / bilinear matrices collapsed (kron) into single token matrices so
    # each resize is ONE C-on-lanes MXU matmul inside the kernels.
    # TODO(synk): for large H*W switch to a two-step separable contraction (kron size
    # scales as HW * HW/(ph*pw)).
    pool_mat = jnp.kron(_avgpool_matrix(H, ph),
                        _avgpool_matrix(W, pw)).astype(bf16)         # (L, HW)
    up_mat = jnp.kron(_bilinear_matrix_ac(H, Hp),
                      _bilinear_matrix_ac(W, Wp)).astype(bf16)       # (HW, L)

    head_id = jnp.arange(C) // D
    head_mask = (head_id[:, None] == head_id[None, :]).astype(bf16)  # (C, C) block-diag

    vec = lambda a, n: a.reshape(1, n).astype(jnp.float32)

    stage1 = functools.partial(_pool_attn_mlp_kernel, n_tokens=L,
                               eps_ln=1e-5, eps_attn=1e-6)
    t = pl.pallas_call(
        stage1,
        out_shape=jax.ShapeDtypeStruct((B, L, C), x.dtype),
        grid=(B,),
        in_specs=[pl.BlockSpec((1, HW, C), lambda b: (b, 0, 0)),
                  _const_spec((L, HW)),
                  _const_spec((1, C)), _const_spec((1, C)),
                  _const_spec((C, C)), _const_spec((1, C)),
                  _const_spec((C, C)), _const_spec((1, C)),
                  _const_spec((C, C)), _const_spec((1, C)),
                  _const_spec((C, C)), _const_spec((1, C)),
                  _const_spec((C, C)),
                  _const_spec((1, C)), _const_spec((1, C)),
                  _const_spec((C, Hd)), _const_spec((1, Hd)),
                  _const_spec((Hd, C)), _const_spec((1, C))],
        out_specs=pl.BlockSpec((1, L, C), lambda b: (b, 0, 0)),
        compiler_params=pltpu.CompilerParams(dimension_semantics=("parallel",)),
    )(x_tok, pool_mat,
      vec(params["ln1_w"], C), vec(params["ln1_b"], C),
      params["wq_t"].astype(bf16), vec(params["bq"], C),
      params["wk_t"].astype(bf16), vec(params["bk"], C),
      params["wv_t"].astype(bf16), vec(params["bv"], C),
      params["wo_t"].astype(bf16), vec(params["bo"], C),
      head_mask,
      vec(params["ln2_w"], C), vec(params["ln2_b"], C),
      params["w1_t"].astype(bf16), vec(params["b1"], Hd),
      params["w2_t"].astype(bf16), vec(params["b2"], C))

    y_nhwc = pl.pallas_call(
        _upsample_ldw_kernel,
        out_shape=jax.ShapeDtypeStruct((B, H, W, C_out), x.dtype),
        grid=(B,),
        in_specs=[pl.BlockSpec((1, H, W, C), lambda b: (b, 0, 0, 0)),
                  pl.BlockSpec((1, L, C), lambda b: (b, 0, 0)),
                  _const_spec((HW, L)),
                  _const_spec((9, 1, C)), _const_spec((1, C)),
                  _const_spec((C, C_out)), _const_spec((1, C_out))],
        out_specs=pl.BlockSpec((1, H, W, C_out), lambda b: (b, 0, 0, 0)),
        compiler_params=pltpu.CompilerParams(dimension_semantics=("parallel",)),
    )(x_nhwc, t, up_mat,
      params["dw_w"].reshape(9, 1, C).astype(jnp.float32), vec(params["dw_b"], C),
      params["pw_w_t"].astype(bf16), vec(params["pw_b"], C_out))

    return jnp.transpose(y_nhwc, (0, 3, 1, 2))


# ---------------------------------------------------------------------------
# Pure-JAX reference (mirrors the PyTorch forward semantics)
# ---------------------------------------------------------------------------

def _layer_norm_ref(z, g, b, eps=1e-5):
    mu = z.mean(-1, keepdims=True)
    var = ((z - mu) ** 2).mean(-1, keepdims=True)
    return (z - mu) / jnp.sqrt(var + eps) * g + b


def _bilinear_ac_ref(x, Hout, Wout):
    B, C, Hin, Win = x.shape

    def coords(n_out, n_in):
        if n_in == 1 or n_out == 1:
            s = jnp.zeros((n_out,), jnp.float32)
        else:
            s = jnp.arange(n_out, dtype=jnp.float32) * (n_in - 1) / (n_out - 1)
        i0 = jnp.clip(jnp.floor(s).astype(jnp.int32), 0, n_in - 1)
        i1 = jnp.clip(i0 + 1, 0, n_in - 1)
        return i0, i1, s - i0.astype(jnp.float32)

    h0, h1, fh = coords(Hout, Hin)
    w0, w1, fw = coords(Wout, Win)
    xh = (x[:, :, h0, :] * (1 - fh)[None, None, :, None]
          + x[:, :, h1, :] * fh[None, None, :, None])
    return xh[:, :, :, w0] * (1 - fw) + xh[:, :, :, w1] * fw


def attention_block_ref(x, p, *, num_heads=8, pooling=(4, 4), eps_attn=1e-6):
    with jax.default_matmul_precision("highest"):
        B, C, H, W = x.shape
        ph, pw = pooling
        Hp, Wp = H // ph, W // pw
        L = Hp * Wp
        D = C // num_heads

        x_pool = x[:, :, :Hp * ph, :Wp * pw].reshape(B, C, Hp, ph, Wp, pw).mean(axis=(3, 5))
        t = x_pool.reshape(B, C, L).transpose(0, 2, 1)                       # (B, L, C)

        xn = _layer_norm_ref(t, p["ln1_w"], p["ln1_b"])
        q = xn @ p["wq_t"] + p["bq"]
        k = xn @ p["wk_t"] + p["bk"]
        v = xn @ p["wv_t"] + p["bv"]
        qh = q.reshape(B, L, num_heads, D).transpose(0, 2, 1, 3)
        kh = k.reshape(B, L, num_heads, D).transpose(0, 2, 1, 3)
        vh = v.reshape(B, L, num_heads, D).transpose(0, 2, 1, 3)
        Q = jax.nn.elu(qh) + 1.0
        K = jax.nn.elu(kh) + 1.0
        Vs = vh / L
        KV = jnp.einsum("bhld,bhlv->bhdv", K, Vs)
        Z = 1.0 / (jnp.einsum("bhld,bhd->bhl", Q, K.sum(axis=2)) + eps_attn)
        qv = jnp.einsum("bhld,bhdv,bhl->bhlv", Q, KV, Z) * L
        attn = qv.transpose(0, 2, 1, 3).reshape(B, L, C) @ p["wo_t"] + p["bo"]
        t = t + attn

        xn2 = _layer_norm_ref(t, p["ln2_w"], p["ln2_b"])
        m = jnp.maximum(xn2 @ p["w1_t"] + p["b1"], 0.0) @ p["w2_t"] + p["b2"]
        t = t + m

        x_pool = t.transpose(0, 2, 1).reshape(B, C, Hp, Wp)
        x_up = _bilinear_ac_ref(x_pool, H, W)
        s = x + x_up

        dw_kernel = p["dw_w"].reshape(3, 3, 1, C)
        d = lax.conv_general_dilated(
            s, dw_kernel, window_strides=(1, 1), padding="SAME",
            dimension_numbers=("NCHW", "HWIO", "NCHW"), feature_group_count=C)
        d = jnp.maximum(d + p["dw_b"][None, :, None, None], 0.0)
        y = jnp.einsum("bchw,co->bohw", d, p["pw_w_t"]) + p["pw_b"][None, :, None, None]
        return y


# ---------------------------------------------------------------------------
# Demo
# ---------------------------------------------------------------------------

if __name__ == "__main__":
    B, C_in, C_out = 2, 32, 16
    H, W = 16, 16
    num_heads = 8
    pooling = (4, 4)
    hidden = 4 * C_in

    keys = jax.random.split(jax.random.PRNGKey(0), 24)

    def r(i, shape, scale=0.15):
        return scale * jax.random.normal(keys[i], shape, jnp.float32)

    # Projection weights are stored pre-transposed, i.e. (in, out), so every 1x1 conv /
    # linear layer is a plain rows @ W matmul in the kernels (PyTorch stores (out, in)).
    params = {
        "ln1_w": 1.0 + r(0, (C_in,), 0.1), "ln1_b": r(1, (C_in,), 0.1),
        "wq_t": r(2, (C_in, C_in)), "bq": r(3, (C_in,), 0.05),
        "wk_t": r(4, (C_in, C_in)), "bk": r(5, (C_in,), 0.05),
        "wv_t": r(6, (C_in, C_in)), "bv": r(7, (C_in,), 0.05),
        "wo_t": r(8, (C_in, C_in)), "bo": r(9, (C_in,), 0.05),
        "ln2_w": 1.0 + r(10, (C_in,), 0.1), "ln2_b": r(11, (C_in,), 0.1),
        "w1_t": r(12, (C_in, hidden)), "b1": r(13, (hidden,), 0.05),
        "w2_t": r(14, (hidden, C_in)), "b2": r(15, (C_in,), 0.05),
        "dw_w": r(16, (3, 3, C_in)), "dw_b": r(17, (C_in,), 0.05),
        "pw_w_t": r(18, (C_in, C_out)), "pw_b": r(19, (C_out,), 0.05),
    }
    x = jax.random.normal(keys[20], (B, C_in, H, W), jnp.float32)

    y = attention_block_forward(x, params, num_heads=num_heads, pooling=pooling)
    jax.block_until_ready(y)

    y_ref = attention_block_ref(x, params, num_heads=num_heads, pooling=pooling)

    assert y.shape == (B, C_out, H, W), y.shape
    assert bool(jnp.all(jnp.isfinite(y)))
    max_err = float(jnp.max(jnp.abs(y - y_ref)))
    # Tolerance covers bf16 MXU operands in the kernels vs the highest-precision f32
    # reference across the chained matmuls (estimated worst-case elementwise ~1e-2).
    assert jnp.allclose(y, y_ref, atol=3e-2, rtol=3e-2), f"max_err={max_err}"
    print("KERNEL_OK")
</pallas_src>

<mosaic_0001>
module attributes {stable_mosaic.version = 11 : i64} {
  func.func @_upsample_ldw_kernel(%arg0: i32, %arg1: memref<1x16x16x32xf32, #tpu.memory_space<vmem>>, %arg2: memref<1x16x32xf32, #tpu.memory_space<vmem>>, %arg3: memref<256x16xbf16, #tpu.memory_space<vmem>>, %arg4: memref<9x1x32xf32, #tpu.memory_space<vmem>>, %arg5: memref<1x32xf32, #tpu.memory_space<vmem>>, %arg6: memref<32x16xbf16, #tpu.memory_space<vmem>>, %arg7: memref<1x16xf32, #tpu.memory_space<vmem>>, %arg8: memref<1x16x16x16xf32, #tpu.memory_space<vmem>>) attributes {dimension_semantics = [#tpu.dimension_semantics<parallel>], iteration_bounds = array<i64: 2>, scalar_prefetch = 0 : i64, scratch_operands = 0 : i64, tpu.core_type = #tpu.core_type<tc>, window_params = [{transform_indices = @transform_0, window_bounds = array<i64: 1, 16, 16, 32>}, {transform_indices = @transform_1, window_bounds = array<i64: 1, 16, 32>}, {pipeline_mode = #tpu.pipeline_mode<synchronous>, transform_indices = @transform_2, window_bounds = array<i64: 256, 16>}, {pipeline_mode = #tpu.pipeline_mode<synchronous>, transform_indices = @transform_3, window_bounds = array<i64: 9, 1, 32>}, {pipeline_mode = #tpu.pipeline_mode<synchronous>, transform_indices = @transform_4, window_bounds = array<i64: 1, 32>}, {pipeline_mode = #tpu.pipeline_mode<synchronous>, transform_indices = @transform_5, window_bounds = array<i64: 32, 16>}, {pipeline_mode = #tpu.pipeline_mode<synchronous>, transform_indices = @transform_6, window_bounds = array<i64: 1, 16>}, {transform_indices = @transform_7, window_bounds = array<i64: 1, 16, 16, 16>}]} {
    %c0 = arith.constant 0 : index
    %c0_0 = arith.constant 0 : index
    %c0_1 = arith.constant 0 : index
    %c0_2 = arith.constant 0 : index
    %0 = vector.load %arg1[%c0, %c0_0, %c0_1, %c0_2] : memref<1x16x16x32xf32, #tpu.memory_space<vmem>>, vector<1x16x16x32xf32>
    %1 = vector.shape_cast %0 : vector<1x16x16x32xf32> to vector<16x16x32xf32>
    %c0_3 = arith.constant 0 : index
    %c0_4 = arith.constant 0 : index
    %c0_5 = arith.constant 0 : index
    %2 = vector.load %arg2[%c0_3, %c0_4, %c0_5] : memref<1x16x32xf32, #tpu.memory_space<vmem>>, vector<1x16x32xf32>
    %3 = vector.shape_cast %2 : vector<1x16x32xf32> to vector<16x32xf32>
    %c0_6 = arith.constant 0 : index
    %c0_7 = arith.constant 0 : index
    %4 = vector.load %arg3[%c0_6, %c0_7] : memref<256x16xbf16, #tpu.memory_space<vmem>>, vector<256x16xbf16>
    %5 = arith.truncf %3 : vector<16x32xf32> to vector<16x32xbf16>
    %cst = arith.constant dense<0.000000e+00> : vector<256x32xf32>
    %6 = tpu.matmul %4, %5, %cst {dimension_numbers = #tpu.dot_dimension_numbers<[1], [0], [0], [1], [0, 0, 1, 1], [], []>} : vector<256x16xbf16>, vector<16x32xbf16>, vector<256x32xf32> -> vector<256x32xf32>
    %7 = vector.shape_cast %6 : vector<256x32xf32> to vector<16x16x32xf32>
    %8 = arith.addf %1, %7 : vector<16x16x32xf32>
    %cst_8 = arith.constant 0.000000e+00 : f32
    %9 = vector.broadcast %cst_8 : f32 to vector<16x1x32xf32>
    %10 = tpu.concatenate %9, %8, %9 in 1 : vector<16x1x32xf32>, vector<16x16x32xf32>, vector<16x1x32xf32> -> vector<16x18x32xf32>
    %11 = vector.extract_strided_slice %10 {offsets = [0, 0, 0], sizes = [16, 16, 32], strides = [1, 1, 1]} : vector<16x18x32xf32> to vector<16x16x32xf32>
    %12 = vector.extract_strided_slice %10 {offsets = [0, 1, 0], sizes = [16, 16, 32], strides = [1, 1, 1]} : vector<16x18x32xf32> to vector<16x16x32xf32>
    %13 = vector.extract_strided_slice %10 {offsets = [0, 2, 0], sizes = [16, 16, 32], strides = [1, 1, 1]} : vector<16x18x32xf32> to vector<16x16x32xf32>
    %cst_9 = arith.constant 0.000000e+00 : f32
    %14 = vector.broadcast %cst_9 : f32 to vector<1x16x32xf32>
    %cst_10 = arith.constant 0.000000e+00 : f32
    %15 = vector.broadcast %cst_10 : f32 to vector<16x16x32xf32>
    %c0_11 = arith.constant 0 : index
    %c0_12 = arith.constant 0 : index
    %c0_13 = arith.constant 0 : index
    %16 = vector.load %arg4[%c0_11, %c0_12, %c0_13] : memref<9x1x32xf32, #tpu.memory_space<vmem>>, vector<1x1x32xf32>
    %17 = vector.shape_cast %16 : vector<1x1x32xf32> to vector<1x32xf32>
    %18 = vector.extract_strided_slice %11 {offsets = [0, 0, 0], sizes = [15, 16, 32], strides = [1, 1, 1]} : vector<16x16x32xf32> to vector<15x16x32xf32>
    %19 = tpu.concatenate %14, %18 in 0 : vector<1x16x32xf32>, vector<15x16x32xf32> -> vector<16x16x32xf32>
    %20 = vector.shape_cast %17 : vector<1x32xf32> to vector<1x1x32xf32>
    %21 = vector.broadcast %20 : vector<1x1x32xf32> to vector<16x16x32xf32>
    %22 = arith.mulf %19, %21 : vector<16x16x32xf32>
    %23 = arith.addf %15, %22 : vector<16x16x32xf32>
    %c1 = arith.constant 1 : index
    %c0_14 = arith.constant 0 : index
    %c0_15 = arith.constant 0 : index
    %24 = vector.load %arg4[%c1, %c0_14, %c0_15] : memref<9x1x32xf32, #tpu.memory_space<vmem>>, vector<1x1x32xf32>
    %25 = vector.shape_cast %24 : vector<1x1x32xf32> to vector<1x32xf32>
    %26 = vector.extract_strided_slice %12 {offsets = [0, 0, 0], sizes = [15, 16, 32], strides = [1, 1, 1]} : vector<16x16x32xf32> to vector<15x16x32xf32>
    %27 = tpu.concatenate %14, %26 in 0 : vector<1x16x32xf32>, vector<15x16x32xf32> -> vector<16x16x32xf32>
    %28 = vector.shape_cast %25 : vector<1x32xf32> to vector<1x1x32xf32>
    %29 = vector.broadcast %28 : vector<1x1x32xf32> to vector<16x16x32xf32>
    %30 = arith.mulf %27, %29 : vector<16x16x32xf32>
    %31 = arith.addf %23, %30 : vector<16x16x32xf32>
    %c2 = arith.constant 2 : index
    %c0_16 = arith.constant 0 : index
    %c0_17 = arith.constant 0 : index
    %32 = vector.load %arg4[%c2, %c0_16, %c0_17] : memref<9x1x32xf32, #tpu.memory_space<vmem>>, vector<1x1x32xf32>
    %33 = vector.shape_cast %32 : vector<1x1x32xf32> to vector<1x32xf32>
    %34 = vector.extract_strided_slice %13 {offsets = [0, 0, 0], sizes = [15, 16, 32], strides = [1, 1, 1]} : vector<16x16x32xf32> to vector<15x16x32xf32>
    %35 = tpu.concatenate %14, %34 in 0 : vector<1x16x32xf32>, vector<15x16x32xf32> -> vector<16x16x32xf32>
    %36 = vector.shape_cast %33 : vector<1x32xf32> to vector<1x1x32xf32>
    %37 = vector.broadcast %36 : vector<1x1x32xf32> to vector<16x16x32xf32>
    %38 = arith.mulf %35, %37 : vector<16x16x32xf32>
    %39 = arith.addf %31, %38 : vector<16x16x32xf32>
    %c3 = arith.constant 3 : index
    %c0_18 = arith.constant 0 : index
    %c0_19 = arith.constant 0 : index
    %40 = vector.load %arg4[%c3, %c0_18, %c0_19] : memref<9x1x32xf32, #tpu.memory_space<vmem>>, vector<1x1x32xf32>
    %41 = vector.shape_cast %40 : vector<1x1x32xf32> to vector<1x32xf32>
    %42 = vector.shape_cast %41 : vector<1x32xf32> to vector<1x1x32xf32>
    %43 = vector.broadcast %42 : vector<1x1x32xf32> to vector<16x16x32xf32>
    %44 = arith.mulf %11, %43 : vector<16x16x32xf32>
    %45 = arith.addf %39, %44 : vector<16x16x32xf32>
    %c4 = arith.constant 4 : index
    %c0_20 = arith.constant 0 : index
    %c0_21 = arith.constant 0 : index
    %46 = vector.load %arg4[%c4, %c0_20, %c0_21] : memref<9x1x32xf32, #tpu.memory_space<vmem>>, vector<1x1x32xf32>
    %47 = vector.shape_cast %46 : vector<1x1x32xf32> to vector<1x32xf32>
    %48 = vector.shape_cast %47 : vector<1x32xf32> to vector<1x1x32xf32>
    %49 = vector.broadcast %48 : vector<1x1x32xf32> to vector<16x16x32xf32>
    %50 = arith.mulf %12, %49 : vector<16x16x32xf32>
    %51 = arith.addf %45, %50 : vector<16x16x32xf32>
    %c5 = arith.constant 5 : index
    %c0_22 = arith.constant 0 : index
    %c0_23 = arith.constant 0 : index
    %52 = vector.load %arg4[%c5, %c0_22, %c0_23] : memref<9x1x32xf32, #tpu.memory_space<vmem>>, vector<1x1x32xf32>
    %53 = vector.shape_cast %52 : vector<1x1x32xf32> to vector<1x32xf32>
    %54 = vector.shape_cast %53 : vector<1x32xf32> to vector<1x1x32xf32>
    %55 = vector.broadcast %54 : vector<1x1x32xf32> to vector<16x16x32xf32>
    %56 = arith.mulf %13, %55 : vector<16x16x32xf32>
    %57 = arith.addf %51, %56 : vector<16x16x32xf32>
    %c6 = arith.constant 6 : index
    %c0_24 = arith.constant 0 : index
    %c0_25 = arith.constant 0 : index
    %58 = vector.load %arg4[%c6, %c0_24, %c0_25] : memref<9x1x32xf32, #tpu.memory_space<vmem>>, vector<1x1x32xf32>
    %59 = vector.shape_cast %58 : vector<1x1x32xf32> to vector<1x32xf32>
    %60 = vector.extract_strided_slice %11 {offsets = [1, 0, 0], sizes = [15, 16, 32], strides = [1, 1, 1]} : vector<16x16x32xf32> to vector<15x16x32xf32>
    %61 = tpu.concatenate %60, %14 in 0 : vector<15x16x32xf32>, vector<1x16x32xf32> -> vector<16x16x32xf32>
    %62 = vector.shape_cast %59 : vector<1x32xf32> to vector<1x1x32xf32>
    %63 = vector.broadcast %62 : vector<1x1x32xf32> to vector<16x16x32xf32>
    %64 = arith.mulf %61, %63 : vector<16x16x32xf32>
    %65 = arith.addf %57, %64 : vector<16x16x32xf32>
    %c7 = arith.constant 7 : index
    %c0_26 = arith.constant 0 : index
    %c0_27 = arith.constant 0 : index
    %66 = vector.load %arg4[%c7, %c0_26, %c0_27] : memref<9x1x32xf32, #tpu.memory_space<vmem>>, vector<1x1x32xf32>
    %67 = vector.shape_cast %66 : vector<1x1x32xf32> to vector<1x32xf32>
    %68 = vector.extract_strided_slice %12 {offsets = [1, 0, 0], sizes = [15, 16, 32], strides = [1, 1, 1]} : vector<16x16x32xf32> to vector<15x16x32xf32>
    %69 = tpu.concatenate %68, %14 in 0 : vector<15x16x32xf32>, vector<1x16x32xf32> -> vector<16x16x32xf32>
    %70 = vector.shape_cast %67 : vector<1x32xf32> to vector<1x1x32xf32>
    %71 = vector.broadcast %70 : vector<1x1x32xf32> to vector<16x16x32xf32>
    %72 = arith.mulf %69, %71 : vector<16x16x32xf32>
    %73 = arith.addf %65, %72 : vector<16x16x32xf32>
    %c8 = arith.constant 8 : index
    %c0_28 = arith.constant 0 : index
    %c0_29 = arith.constant 0 : index
    %74 = vector.load %arg4[%c8, %c0_28, %c0_29] : memref<9x1x32xf32, #tpu.memory_space<vmem>>, vector<1x1x32xf32>
    %75 = vector.shape_cast %74 : vector<1x1x32xf32> to vector<1x32xf32>
    %76 = vector.extract_strided_slice %13 {offsets = [1, 0, 0], sizes = [15, 16, 32], strides = [1, 1, 1]} : vector<16x16x32xf32> to vector<15x16x32xf32>
    %77 = tpu.concatenate %76, %14 in 0 : vector<15x16x32xf32>, vector<1x16x32xf32> -> vector<16x16x32xf32>
    %78 = vector.shape_cast %75 : vector<1x32xf32> to vector<1x1x32xf32>
    %79 = vector.broadcast %78 : vector<1x1x32xf32> to vector<16x16x32xf32>
    %80 = arith.mulf %77, %79 : vector<16x16x32xf32>
    %81 = arith.addf %73, %80 : vector<16x16x32xf32>
    %c0_30 = arith.constant 0 : index
    %c0_31 = arith.constant 0 : index
    %82 = vector.load %arg5[%c0_30, %c0_31] : memref<1x32xf32, #tpu.memory_space<vmem>>, vector<1x32xf32>
    %83 = vector.shape_cast %82 : vector<1x32xf32> to vector<1x1x32xf32>
    %84 = vector.broadcast %83 : vector<1x1x32xf32> to vector<16x16x32xf32>
    %85 = arith.addf %81, %84 : vector<16x16x32xf32>
    %cst_32 = arith.constant 0.000000e+00 : f32
    %86 = vector.broadcast %cst_32 : f32 to vector<16x16x32xf32>
    %87 = arith.maximumf %85, %86 : vector<16x16x32xf32>
    %88 = vector.shape_cast %87 : vector<16x16x32xf32> to vector<256x32xf32>
    %89 = arith.truncf %88 : vector<256x32xf32> to vector<256x32xbf16>
    %c0_33 = arith.constant 0 : index
    %c0_34 = arith.constant 0 : index
    %90 = vector.load %arg6[%c0_33, %c0_34] : memref<32x16xbf16, #tpu.memory_space<vmem>>, vector<32x16xbf16>
    %cst_35 = arith.constant dense<0.000000e+00> : vector<256x16xf32>
    %91 = tpu.matmul %89, %90, %cst_35 {dimension_numbers = #tpu.dot_dimension_numbers<[1], [0], [0], [1], [0, 0, 1, 1], [], []>} : vector<256x32xbf16>, vector<32x16xbf16>, vector<256x16xf32> -> vector<256x16xf32>
    %c0_36 = arith.constant 0 : index
    %c0_37 = arith.constant 0 : index
    %92 = vector.load %arg7[%c0_36, %c0_37] : memref<1x16xf32, #tpu.memory_space<vmem>>, vector<1x16xf32>
    %93 = vector.broadcast %92 : vector<1x16xf32> to vector<256x16xf32>
    %94 = arith.addf %91, %93 : vector<256x16xf32>
    %95 = vector.shape_cast %94 : vector<256x16xf32> to vector<16x16x16xf32>
    %c0_38 = arith.constant 0 : index
    %c0_39 = arith.constant 0 : index
    %c0_40 = arith.constant 0 : index
    %c0_41 = arith.constant 0 : index
    %96 = vector.load %arg8[%c0_38, %c0_39, %c0_40, %c0_41] : memref<1x16x16x16xf32, #tpu.memory_space<vmem>>, vector<1x16x16x16xf32>
    %97 = vector.shape_cast %96 : vector<1x16x16x16xf32> to vector<16x16x16xf32>
    %98 = vector.shape_cast %95 : vector<16x16x16xf32> to vector<1x16x16x16xf32>
    tpu.vector_store %arg8[%c0_38, %c0_39, %c0_40, %c0_41], %98 {strides = array<i32>} : memref<1x16x16x16xf32, #tpu.memory_space<vmem>>, vector<1x16x16x16xf32>,
    return
  }
  func.func @transform_0(%arg0: i32) -> (i32, i32, i32, i32) {
    %c0_i32 = arith.constant 0 : i32
    %c0_i32_0 = arith.constant 0 : i32
    %c0_i32_1 = arith.constant 0 : i32
    %c0_i32_2 = arith.constant 0 : i32
    return %arg0, %c0_i32, %c0_i32_0, %c0_i32_1 : i32, i32, i32, i32
  }
  func.func @transform_1(%arg0: i32) -> (i32, i32, i32) {
    %c0_i32 = arith.constant 0 : i32
    %c0_i32_0 = arith.constant 0 : i32
    %c0_i32_1 = arith.constant 0 : i32
    return %arg0, %c0_i32, %c0_i32_0 : i32, i32, i32
  }
  func.func @transform_2(%arg0: i32) -> (i32, i32) {
    %c0_i32 = arith.constant 0 : i32
    %c0_i32_0 = arith.constant 0 : i32
    %c0_i32_1 = arith.constant 0 : i32
    return %c0_i32, %c0_i32_0 : i32, i32
  }
  func.func @transform_3(%arg0: i32) -> (i32, i32, i32) {
    %c0_i32 = arith.constant 0 : i32
    %c0_i32_0 = arith.constant 0 : i32
    %c0_i32_1 = arith.constant 0 : i32
    %c0_i32_2 = arith.constant 0 : i32
    return %c0_i32, %c0_i32_0, %c0_i32_1 : i32, i32, i32
  }
  func.func @transform_4(%arg0: i32) -> (i32, i32) {
    %c0_i32 = arith.constant 0 : i32
    %c0_i32_0 = arith.constant 0 : i32
    %c0_i32_1 = arith.constant 0 : i32
    return %c0_i32, %c0_i32_0 : i32, i32
  }
  func.func @transform_5(%arg0: i32) -> (i32, i32) {
    %c0_i32 = arith.constant 0 : i32
    %c0_i32_0 = arith.constant 0 : i32
    %c0_i32_1 = arith.constant 0 : i32
    return %c0_i32, %c0_i32_0 : i32, i32
  }
  func.func @transform_6(%arg0: i32) -> (i32, i32) {
    %c0_i32 = arith.constant 0 : i32
    %c0_i32_0 = arith.constant 0 : i32
    %c0_i32_1 = arith.constant 0 : i32
    return %c0_i32, %c0_i32_0 : i32, i32
  }
  func.func @transform_7(%arg0: i32) -> (i32, i32, i32, i32) {
    %c0_i32 = arith.constant 0 : i32
    %c0_i32_0 = arith.constant 0 : i32
    %c0_i32_1 = arith.constant 0 : i32
    %c0_i32_2 = arith.constant 0 : i32
    return %arg0, %c0_i32, %c0_i32_0, %c0_i32_1 : i32, i32, i32, i32
  }
}

module attributes {stable_mosaic.version = 11 : i64} {
  func.func @_pool_attn_mlp_kernel(%arg0: i32, %arg1: memref<1x256x32xf32, #tpu.memory_space<vmem>>, %arg2: memref<16x256xbf16, #tpu.memory_space<vmem>>, %arg3: memref<1x32xf32, #tpu.memory_space<vmem>>, %arg4: memref<1x32xf32, #tpu.memory_space<vmem>>, %arg5: memref<32x32xbf16, #tpu.memory_space<vmem>>, %arg6: memref<1x32xf32, #tpu.memory_space<vmem>>, %arg7: memref<32x32xbf16, #tpu.memory_space<vmem>>, %arg8: memref<1x32xf32, #tpu.memory_space<vmem>>, %arg9: memref<32x32xbf16, #tpu.memory_space<vmem>>, %arg10: memref<1x32xf32, #tpu.memory_space<vmem>>, %arg11: memref<32x32xbf16, #tpu.memory_space<vmem>>, %arg12: memref<1x32xf32, #tpu.memory_space<vmem>>, %arg13: memref<32x32xbf16, #tpu.memory_space<vmem>>, %arg14: memref<1x32xf32, #tpu.memory_space<vmem>>, %arg15: memref<1x32xf32, #tpu.memory_space<vmem>>, %arg16: memref<32x128xbf16, #tpu.memory_space<vmem>>, %arg17: memref<1x128xf32, #tpu.memory_space<vmem>>, %arg18: memref<128x32xbf16, #tpu.memory_space<vmem>>, %arg19: memref<1x32xf32, #tpu.memory_space<vmem>>, %arg20: memref<1x16x32xf32, #tpu.memory_space<vmem>>) attributes {dimension_semantics = [#tpu.dimension_semantics<parallel>], iteration_bounds = array<i64: 2>, scalar_prefetch = 0 : i64, scratch_operands = 0 : i64, tpu.core_type = #tpu.core_type<tc>, window_params = [{transform_indices = @transform_0, window_bounds = array<i64: 1, 256, 32>}, {pipeline_mode = #tpu.pipeline_mode<synchronous>, transform_indices = @transform_1, window_bounds = array<i64: 16, 256>}, {pipeline_mode = #tpu.pipeline_mode<synchronous>, transform_indices = @transform_2, window_bounds = array<i64: 1, 32>}, {pipeline_mode = #tpu.pipeline_mode<synchronous>, transform_indices = @transform_3, window_bounds = array<i64: 1, 32>}, {pipeline_mode = #tpu.pipeline_mode<synchronous>, transform_indices = @transform_4, window_bounds = array<i64: 32, 32>}, {pipeline_mode = #tpu.pipeline_mode<synchronous>, transform_indices = @transform_5, window_bounds = array<i64: 1, 32>}, {pipeline_mode = #tpu.pipeline_mode<synchronous>, transform_indices = @transform_6, window_bounds = array<i64: 32, 32>}, {pipeline_mode = #tpu.pipeline_mode<synchronous>, transform_indices = @transform_7, window_bounds = array<i64: 1, 32>}, {pipeline_mode = #tpu.pipeline_mode<synchronous>, transform_indices = @transform_8, window_bounds = array<i64: 32, 32>}, {pipeline_mode = #tpu.pipeline_mode<synchronous>, transform_indices = @transform_9, window_bounds = array<i64: 1, 32>}, {pipeline_mode = #tpu.pipeline_mode<synchronous>, transform_indices = @transform_10, window_bounds = array<i64: 32, 32>}, {pipeline_mode = #tpu.pipeline_mode<synchronous>, transform_indices = @transform_11, window_bounds = array<i64: 1, 32>}, {pipeline_mode = #tpu.pipeline_mode<synchronous>, transform_indices = @transform_12, window_bounds = array<i64: 32, 32>}, {pipeline_mode = #tpu.pipeline_mode<synchronous>, transform_indices = @transform_13, window_bounds = array<i64: 1, 32>}, {pipeline_mode = #tpu.pipeline_mode<synchronous>, transform_indices = @transform_14, window_bounds = array<i64: 1, 32>}, {pipeline_mode = #tpu.pipeline_mode<synchronous>, transform_indices = @transform_15, window_bounds = array<i64: 32, 128>}, {pipeline_mode = #tpu.pipeline_mode<synchronous>, transform_indices = @transform_16, window_bounds = array<i64: 1, 128>}, {pipeline_mode = #tpu.pipeline_mode<synchronous>, transform_indices = @transform_17, window_bounds = array<i64: 128, 32>}, {pipeline_mode = #tpu.pipeline_mode<synchronous>, transform_indices = @transform_18, window_bounds = array<i64: 1, 32>}, {transform_indices = @transform_19, window_bounds = array<i64: 1, 16, 32>}]} {
    %c0 = arith.constant 0 : index
    %c0_0 = arith.constant 0 : index
    %c0_1 = arith.constant 0 : index
    %0 = vector.load %arg1[%c0, %c0_0, %c0_1] : memref<1x256x32xf32, #tpu.memory_space<vmem>>, vector<1x256x32xf32>
    %1 = vector.shape_cast %0 : vector<1x256x32xf32> to vector<256x32xf32>
    %c0_2 = arith.constant 0 : index
    %c0_3 = arith.constant 0 : index
    %2 = vector.load %arg2[%c0_2, %c0_3] : memref<16x256xbf16, #tpu.memory_space<vmem>>, vector<16x256xbf16>
    %3 = arith.truncf %1 : vector<256x32xf32> to vector<256x32xbf16>
    %cst = arith.constant dense<0.000000e+00> : vector<16x32xf32>
    %4 = tpu.matmul %2, %3, %cst {dimension_numbers = #tpu.dot_dimension_numbers<[1], [0], [0], [1], [0, 0, 1, 1], [], []>} : vector<16x256xbf16>, vector<256x32xbf16>, vector<16x32xf32> -> vector<16x32xf32>
    %cst_4 = arith.constant dense<0.000000e+00> : vector<16xf32>
    %5 = vector.multi_reduction <add>, %4, %cst_4 [1] : vector<16x32xf32> to vector<16xf32>
    %6 = vector.shape_cast %5 : vector<16xf32> to vector<16x1xf32>
    %cst_5 = arith.constant 3.200000e+01 : f32
    %7 = vector.broadcast %cst_5 : f32 to vector<16x1xf32>
    %8 = arith.divf %6, %7 : vector<16x1xf32>
    %9 = vector.broadcast %8 : vector<16x1xf32> to vector<16x32xf32>
    %10 = arith.subf %4, %9 : vector<16x32xf32>
    %11 = arith.mulf %10, %10 : vector<16x32xf32>
    %cst_6 = arith.constant dense<0.000000e+00> : vector<16xf32>
    %12 = vector.multi_reduction <add>, %11, %cst_6 [1] : vector<16x32xf32> to vector<16xf32>
    %13 = vector.shape_cast %12 : vector<16xf32> to vector<16x1xf32>
    %cst_7 = arith.constant 3.200000e+01 : f32
    %14 = vector.broadcast %cst_7 : f32 to vector<16x1xf32>
    %15 = arith.divf %13, %14 : vector<16x1xf32>
    %cst_8 = arith.constant 9.99999974E-6 : f32
    %16 = vector.broadcast %cst_8 : f32 to vector<16x1xf32>
    %17 = arith.addf %15, %16 : vector<16x1xf32>
    %18 = math.rsqrt %17 : vector<16x1xf32>
    %19 = vector.broadcast %18 : vector<16x1xf32> to vector<16x32xf32>
    %20 = arith.mulf %10, %19 : vector<16x32xf32>
    %c0_9 = arith.constant 0 : index
    %c0_10 = arith.constant 0 : index
    %21 = vector.load %arg3[%c0_9, %c0_10] : memref<1x32xf32, #tpu.memory_space<vmem>>, vector<1x32xf32>
    %22 = vector.broadcast %21 : vector<1x32xf32> to vector<16x32xf32>
    %23 = arith.mulf %20, %22 : vector<16x32xf32>
    %c0_11 = arith.constant 0 : index
    %c0_12 = arith.constant 0 : index
    %24 = vector.load %arg4[%c0_11, %c0_12] : memref<1x32xf32, #tpu.memory_space<vmem>>, vector<1x32xf32>
    %25 = vector.broadcast %24 : vector<1x32xf32> to vector<16x32xf32>
    %26 = arith.addf %23, %25 : vector<16x32xf32>
    %27 = arith.truncf %26 : vector<16x32xf32> to vector<16x32xbf16>
    %c0_13 = arith.constant 0 : index
    %c0_14 = arith.constant 0 : index
    %28 = vector.load %arg5[%c0_13, %c0_14] : memref<32x32xbf16, #tpu.memory_space<vmem>>, vector<32x32xbf16>
    %cst_15 = arith.constant dense<0.000000e+00> : vector<16x32xf32>
    %29 = tpu.matmul %27, %28, %cst_15 {dimension_numbers = #tpu.dot_dimension_numbers<[1], [0], [0], [1], [0, 0, 1, 1], [], []>} : vector<16x32xbf16>, vector<32x32xbf16>, vector<16x32xf32> -> vector<16x32xf32>
    %c0_16 = arith.constant 0 : index
    %c0_17 = arith.constant 0 : index
    %30 = vector.load %arg6[%c0_16, %c0_17] : memref<1x32xf32, #tpu.memory_space<vmem>>, vector<1x32xf32>
    %31 = vector.broadcast %30 : vector<1x32xf32> to vector<16x32xf32>
    %32 = arith.addf %29, %31 : vector<16x32xf32>
    %c0_18 = arith.constant 0 : index
    %c0_19 = arith.constant 0 : index
    %33 = vector.load %arg7[%c0_18, %c0_19] : memref<32x32xbf16, #tpu.memory_space<vmem>>, vector<32x32xbf16>
    %cst_20 = arith.constant dense<0.000000e+00> : vector<16x32xf32>
    %34 = tpu.matmul %27, %33, %cst_20 {dimension_numbers = #tpu.dot_dimension_numbers<[1], [0], [0], [1], [0, 0, 1, 1], [], []>} : vector<16x32xbf16>, vector<32x32xbf16>, vector<16x32xf32> -> vector<16x32xf32>
    %c0_21 = arith.constant 0 : index
    %c0_22 = arith.constant 0 : index
    %35 = vector.load %arg8[%c0_21, %c0_22] : memref<1x32xf32, #tpu.memory_space<vmem>>, vector<1x32xf32>
    %36 = vector.broadcast %35 : vector<1x32xf32> to vector<16x32xf32>
    %37 = arith.addf %34, %36 : vector<16x32xf32>
    %c0_23 = arith.constant 0 : index
    %c0_24 = arith.constant 0 : index
    %38 = vector.load %arg9[%c0_23, %c0_24] : memref<32x32xbf16, #tpu.memory_space<vmem>>, vector<32x32xbf16>
    %cst_25 = arith.constant dense<0.000000e+00> : vector<16x32xf32>
    %39 = tpu.matmul %27, %38, %cst_25 {dimension_numbers = #tpu.dot_dimension_numbers<[1], [0], [0], [1], [0, 0, 1, 1], [], []>} : vector<16x32xbf16>, vector<32x32xbf16>, vector<16x32xf32> -> vector<16x32xf32>
    %c0_26 = arith.constant 0 : index
    %c0_27 = arith.constant 0 : index
    %40 = vector.load %arg10[%c0_26, %c0_27] : memref<1x32xf32, #tpu.memory_space<vmem>>, vector<1x32xf32>
    %41 = vector.broadcast %40 : vector<1x32xf32> to vector<16x32xf32>
    %42 = arith.addf %39, %41 : vector<16x32xf32>
    %cst_28 = arith.constant 0.000000e+00 : f32
    %43 = vector.broadcast %cst_28 : f32 to vector<16x32xf32>
    %44 = arith.cmpf ogt, %32, %43 : vector<16x32xf32>
    %cst_29 = arith.constant 1.000000e+00 : f32
    %45 = vector.broadcast %cst_29 : f32 to vector<16x32xf32>
    %46 = arith.addf %32, %45 : vector<16x32xf32>
    %47 = math.exp %32 : vector<16x32xf32>
    %48 = arith.select %44, %46, %47 : vector<16x32xi1>, vector<16x32xf32>
    %cst_30 = arith.constant 0.000000e+00 : f32
    %49 = vector.broadcast %cst_30 : f32 to vector<16x32xf32>
    %50 = arith.cmpf ogt, %37, %49 : vector<16x32xf32>
    %cst_31 = arith.constant 1.000000e+00 : f32
    %51 = vector.broadcast %cst_31 : f32 to vector<16x32xf32>
    %52 = arith.addf %37, %51 : vector<16x32xf32>
    %53 = math.exp %37 : vector<16x32xf32>
    %54 = arith.select %50, %52, %53 : vector<16x32xi1>, vector<16x32xf32>
    %cst_32 = arith.constant 6.250000e-02 : f32
    %55 = vector.broadcast %cst_32 : f32 to vector<16x32xf32>
    %56 = arith.mulf %42, %55 : vector<16x32xf32>
    %c0_33 = arith.constant 0 : index
    %c0_34 = arith.constant 0 : index
    %57 = vector.load %arg13[%c0_33, %c0_34] : memref<32x32xbf16, #tpu.memory_space<vmem>>, vector<32x32xbf16>
    %58 = arith.truncf %54 : vector<16x32xf32> to vector<16x32xbf16>
    %59 = arith.truncf %56 : vector<16x32xf32> to vector<16x32xbf16>
    %cst_35 = arith.constant dense<0.000000e+00> : vector<32x32xf32>
    %60 = tpu.matmul %58, %59, %cst_35 {dimension_numbers = #tpu.dot_dimension_numbers<[0], [0], [1], [1], [0, 1, 1, 1], [], []>} : vector<16x32xbf16>, vector<16x32xbf16>, vector<32x32xf32> -> vector<32x32xf32>
    %61 = arith.extf %57 : vector<32x32xbf16> to vector<32x32xf32>
    %62 = arith.mulf %60, %61 : vector<32x32xf32>
    %cst_36 = arith.constant dense<0.000000e+00> : vector<32xf32>
    %63 = vector.multi_reduction <add>, %54, %cst_36 [0] : vector<16x32xf32> to vector<32xf32>
    %64 = vector.shape_cast %63 : vector<32xf32> to vector<1x32xf32>
    %65 = vector.broadcast %64 : vector<1x32xf32> to vector<16x32xf32>
    %66 = arith.mulf %48, %65 : vector<16x32xf32>
    %67 = arith.truncf %66 : vector<16x32xf32> to vector<16x32xbf16>
    %cst_37 = arith.constant dense<0.000000e+00> : vector<16x32xf32>
    %68 = tpu.matmul %67, %57, %cst_37 {dimension_numbers = #tpu.dot_dimension_numbers<[1], [0], [0], [1], [0, 0, 1, 1], [], []>} : vector<16x32xbf16>, vector<32x32xbf16>, vector<16x32xf32> -> vector<16x32xf32>
    %cst_38 = arith.constant 9.99999997E-7 : f32
    %69 = vector.broadcast %cst_38 : f32 to vector<16x32xf32>
    %70 = arith.addf %68, %69 : vector<16x32xf32>
    %71 = tpu.reciprocal %70 {approx = true} : vector<16x32xf32> -> vector<16x32xf32>
    %72 = arith.truncf %48 : vector<16x32xf32> to vector<16x32xbf16>
    %73 = arith.truncf %62 : vector<32x32xf32> to vector<32x32xbf16>
    %cst_39 = arith.constant dense<0.000000e+00> : vector<16x32xf32>
    %74 = tpu.matmul %72, %73, %cst_39 {dimension_numbers = #tpu.dot_dimension_numbers<[1], [0], [0], [1], [0, 0, 1, 1], [], []>} : vector<16x32xbf16>, vector<32x32xbf16>, vector<16x32xf32> -> vector<16x32xf32>
    %75 = arith.mulf %74, %71 : vector<16x32xf32>
    %cst_40 = arith.constant 1.600000e+01 : f32
    %76 = vector.broadcast %cst_40 : f32 to vector<16x32xf32>
    %77 = arith.mulf %75, %76 : vector<16x32xf32>
    %78 = arith.truncf %77 : vector<16x32xf32> to vector<16x32xbf16>
    %c0_41 = arith.constant 0 : index
    %c0_42 = arith.constant 0 : index
    %79 = vector.load %arg11[%c0_41, %c0_42] : memref<32x32xbf16, #tpu.memory_space<vmem>>, vector<32x32xbf16>
    %cst_43 = arith.constant dense<0.000000e+00> : vector<16x32xf32>
    %80 = tpu.matmul %78, %79, %cst_43 {dimension_numbers = #tpu.dot_dimension_numbers<[1], [0], [0], [1], [0, 0, 1, 1], [], []>} : vector<16x32xbf16>, vector<32x32xbf16>, vector<16x32xf32> -> vector<16x32xf32>
    %c0_44 = arith.constant 0 : index
    %c0_45 = arith.constant 0 : index
    %81 = vector.load %arg12[%c0_44, %c0_45] : memref<1x32xf32, #tpu.memory_space<vmem>>, vector<1x32xf32>
    %82 = vector.broadcast %81 : vector<1x32xf32> to vector<16x32xf32>
    %83 = arith.addf %80, %82 : vector<16x32xf32>
    %84 = arith.addf %4, %83 : vector<16x32xf32>
    %cst_46 = arith.constant dense<0.000000e+00> : vector<16xf32>
    %85 = vector.multi_reduction <add>, %84, %cst_46 [1] : vector<16x32xf32> to vector<16xf32>
    %86 = vector.shape_cast %85 : vector<16xf32> to vector<16x1xf32>
    %cst_47 = arith.constant 3.200000e+01 : f32
    %87 = vector.broadcast %cst_47 : f32 to vector<16x1xf32>
    %88 = arith.divf %86, %87 : vector<16x1xf32>
    %89 = vector.broadcast %88 : vector<16x1xf32> to vector<16x32xf32>
    %90 = arith.subf %84, %89 : vector<16x32xf32>
    %91 = arith.mulf %90, %90 : vector<16x32xf32>
    %cst_48 = arith.constant dense<0.000000e+00> : vector<16xf32>
    %92 = vector.multi_reduction <add>, %91, %cst_48 [1] : vector<16x32xf32> to vector<16xf32>
    %93 = vector.shape_cast %92 : vector<16xf32> to vector<16x1xf32>
    %cst_49 = arith.constant 3.200000e+01 : f32
    %94 = vector.broadcast %cst_49 : f32 to vector<16x1xf32>
    %95 = arith.divf %93, %94 : vector<16x1xf32>
    %cst_50 = arith.constant 9.99999974E-6 : f32
    %96 = vector.broadcast %cst_50 : f32 to vector<16x1xf32>
    %97 = arith.addf %95, %96 : vector<16x1xf32>
    %98 = math.rsqrt %97 : vector<16x1xf32>
    %99 = vector.broadcast %98 : vector<16x1xf32> to vector<16x32xf32>
    %100 = arith.mulf %90, %99 : vector<16x32xf32>
    %c0_51 = arith.constant 0 : index
    %c0_52 = arith.constant 0 : index
    %101 = vector.load %arg14[%c0_51, %c0_52] : memref<1x32xf32, #tpu.memory_space<vmem>>, vector<1x32xf32>
    %102 = vector.broadcast %101 : vector<1x32xf32> to vector<16x32xf32>
    %103 = arith.mulf %100, %102 : vector<16x32xf32>
    %c0_53 = arith.constant 0 : index
    %c0_54 = arith.constant 0 : index
    %104 = vector.load %arg15[%c0_53, %c0_54] : memref<1x32xf32, #tpu.memory_space<vmem>>, vector<1x32xf32>
    %105 = vector.broadcast %104 : vector<1x32xf32> to vector<16x32xf32>
    %106 = arith.addf %103, %105 : vector<16x32xf32>
    %107 = arith.truncf %106 : vector<16x32xf32> to vector<16x32xbf16>
    %c0_55 = arith.constant 0 : index
    %c0_56 = arith.constant 0 : index
    %108 = vector.load %arg16[%c0_55, %c0_56] : memref<32x128xbf16, #tpu.memory_space<vmem>>, vector<32x128xbf16>
    %cst_57 = arith.constant dense<0.000000e+00> : vector<16x128xf32>
    %109 = tpu.matmul %107, %108, %cst_57 {dimension_numbers = #tpu.dot_dimension_numbers<[1], [0], [0], [1], [0, 0, 1, 1], [], []>} : vector<16x32xbf16>, vector<32x128xbf16>, vector<16x128xf32> -> vector<16x128xf32>
    %c0_58 = arith.constant 0 : index
    %c0_59 = arith.constant 0 : index
    %110 = vector.load %arg17[%c0_58, %c0_59] : memref<1x128xf32, #tpu.memory_space<vmem>>, vector<1x128xf32>
    %111 = vector.broadcast %110 : vector<1x128xf32> to vector<16x128xf32>
    %112 = arith.addf %109, %111 : vector<16x128xf32>
    %cst_60 = arith.constant 0.000000e+00 : f32
    %113 = vector.broadcast %cst_60 : f32 to vector<16x128xf32>
    %114 = arith.maximumf %112, %113 : vector<16x128xf32>
    %115 = arith.truncf %114 : vector<16x128xf32> to vector<16x128xbf16>
    %c0_61 = arith.constant 0 : index
    %c0_62 = arith.constant 0 : index
    %116 = vector.load %arg18[%c0_61, %c0_62] : memref<128x32xbf16, #tpu.memory_space<vmem>>, vector<128x32xbf16>
    %cst_63 = arith.constant dense<0.000000e+00> : vector<16x32xf32>
    %117 = tpu.matmul %115, %116, %cst_63 {dimension_numbers = #tpu.dot_dimension_numbers<[1], [0], [0], [1], [0, 0, 1, 1], [], []>} : vector<16x128xbf16>, vector<128x32xbf16>, vector<16x32xf32> -> vector<16x32xf32>
    %c0_64 = arith.constant 0 : index
    %c0_65 = arith.constant 0 : index
    %118 = vector.load %arg19[%c0_64, %c0_65] : memref<1x32xf32, #tpu.memory_space<vmem>>, vector<1x32xf32>
    %119 = vector.broadcast %118 : vector<1x32xf32> to vector<16x32xf32>
    %120 = arith.addf %117, %119 : vector<16x32xf32>
    %121 = arith.addf %84, %120 : vector<16x32xf32>
    %c0_66 = arith.constant 0 : index
    %c0_67 = arith.constant 0 : index
    %c0_68 = arith.constant 0 : index
    %122 = vector.load %arg20[%c0_66, %c0_67, %c0_68] : memref<1x16x32xf32, #tpu.memory_space<vmem>>, vector<1x16x32xf32>
    %123 = vector.shape_cast %122 : vector<1x16x32xf32> to vector<16x32xf32>
    %124 = vector.shape_cast %121 : vector<16x32xf32> to vector<1x16x32xf32>
    tpu.vector_store %arg20[%c0_66, %c0_67, %c0_68], %124 {strides = array<i32>} : memref<1x16x32xf32, #tpu.memory_space<vmem>>, vector<1x16x32xf32>,
    return
  }
  func.func @transform_0(%arg0: i32) -> (i32, i32, i32) {
    %c0_i32 = arith.constant 0 : i32
    %c0_i32_0 = arith.constant 0 : i32
    %c0_i32_1 = arith.constant 0 : i32
    return %arg0, %c0_i32, %c0_i32_0 : i32, i32, i32
  }
  func.func @transform_1(%arg0: i32) -> (i32, i32) {
    %c0_i32 = arith.constant 0 : i32
    %c0_i32_0 = arith.constant 0 : i32
    %c0_i32_1 = arith.constant 0 : i32
    return %c0_i32, %c0_i32_0 : i32, i32
  }
  func.func @transform_2(%arg0: i32) -> (i32, i32) {
    %c0_i32 = arith.constant 0 : i32
    %c0_i32_0 = arith.constant 0 : i32
    %c0_i32_1 = arith.constant 0 : i32
    return %c0_i32, %c0_i32_0 : i32, i32
  }
  func.func @transform_3(%arg0: i32) -> (i32, i32) {
    %c0_i32 = arith.constant 0 : i32
    %c0_i32_0 = arith.constant 0 : i32
    %c0_i32_1 = arith.constant 0 : i32
    return %c0_i32, %c0_i32_0 : i32, i32
  }
  func.func @transform_4(%arg0: i32) -> (i32, i32) {
    %c0_i32 = arith.constant 0 : i32
    %c0_i32_0 = arith.constant 0 : i32
    %c0_i32_1 = arith.constant 0 : i32
    return %c0_i32, %c0_i32_0 : i32, i32
  }
  func.func @transform_5(%arg0: i32) -> (i32, i32) {
    %c0_i32 = arith.constant 0 : i32
    %c0_i32_0 = arith.constant 0 : i32
    %c0_i32_1 = arith.constant 0 : i32
    return %c0_i32, %c0_i32_0 : i32, i32
  }
  func.func @transform_6(%arg0: i32) -> (i32, i32) {
    %c0_i32 = arith.constant 0 : i32
    %c0_i32_0 = arith.constant 0 : i32
    %c0_i32_1 = arith.constant 0 : i32
    return %c0_i32, %c0_i32_0 : i32, i32
  }
  func.func @transform_7(%arg0: i32) -> (i32, i32) {
    %c0_i32 = arith.constant 0 : i32
    %c0_i32_0 = arith.constant 0 : i32
    %c0_i32_1 = arith.constant 0 : i32
    return %c0_i32, %c0_i32_0 : i32, i32
  }
  func.func @transform_8(%arg0: i32) -> (i32, i32) {
    %c0_i32 = arith.constant 0 : i32
    %c0_i32_0 = arith.constant 0 : i32
    %c0_i32_1 = arith.constant 0 : i32
    return %c0_i32, %c0_i32_0 : i32, i32
  }
  func.func @transform_9(%arg0: i32) -> (i32, i32) {
    %c0_i32 = arith.constant 0 : i32
    %c0_i32_0 = arith.constant 0 : i32
    %c0_i32_1 = arith.constant 0 : i32
    return %c0_i32, %c0_i32_0 : i32, i32
  }
  func.func @transform_10(%arg0: i32) -> (i32, i32) {
    %c0_i32 = arith.constant 0 : i32
    %c0_i32_0 = arith.constant 0 : i32
    %c0_i32_1 = arith.constant 0 : i32
    return %c0_i32, %c0_i32_0 : i32, i32
  }
  func.func @transform_11(%arg0: i32) -> (i32, i32) {
    %c0_i32 = arith.constant 0 : i32
    %c0_i32_0 = arith.constant 0 : i32
    %c0_i32_1 = arith.constant 0 : i32
    return %c0_i32, %c0_i32_0 : i32, i32
  }
  func.func @transform_12(%arg0: i32) -> (i32, i32) {
    %c0_i32 = arith.constant 0 : i32
    %c0_i32_0 = arith.constant 0 : i32
    %c0_i32_1 = arith.constant 0 : i32
    return %c0_i32, %c0_i32_0 : i32, i32
  }
  func.func @transform_13(%arg0: i32) -> (i32, i32) {
    %c0_i32 = arith.constant 0 : i32
    %c0_i32_0 = arith.constant 0 : i32
    %c0_i32_1 = arith.constant 0 : i32
    return %c0_i32, %c0_i32_0 : i32, i32
  }
  func.func @transform_14(%arg0: i32) -> (i32, i32) {
    %c0_i32 = arith.constant 0 : i32
    %c0_i32_0 = arith.constant 0 : i32
    %c0_i32_1 = arith.constant 0 : i32
    return %c0_i32, %c0_i32_0 : i32, i32
  }
  func.func @transform_15(%arg0: i32) -> (i32, i32) {
    %c0_i32 = arith.constant 0 : i32
    %c0_i32_0 = arith.constant 0 : i32
    %c0_i32_1 = arith.constant 0 : i32
    return %c0_i32, %c0_i32_0 : i32, i32
  }
  func.func @transform_16(%arg0: i32) -> (i32, i32) {
    %c0_i32 = arith.constant 0 : i32
    %c0_i32_0 = arith.constant 0 : i32
    %c0_i32_1 = arith.constant 0 : i32
    return %c0_i32, %c0_i32_0 : i32, i32
  }
  func.func @transform_17(%arg0: i32) -> (i32, i32) {
    %c0_i32 = arith.constant 0 : i32
    %c0_i32_0 = arith.constant 0 : i32
    %c0_i32_1 = arith.constant 0 : i32
    return %c0_i32, %c0_i32_0 : i32, i32
  }
  func.func @transform_18(%arg0: i32) -> (i32, i32) {
    %c0_i32 = arith.constant 0 : i32
    %c0_i32_0 = arith.constant 0 : i32
    %c0_i32_1 = arith.constant 0 : i32
    return %c0_i32, %c0_i32_0 : i32, i32
  }
  func.func @transform_19(%arg0: i32) -> (i32, i32, i32) {
    %c0_i32 = arith.constant 0 : i32
    %c0_i32_0 = arith.constant 0 : i32
    %c0_i32_1 = arith.constant 0 : i32
    return %arg0, %c0_i32, %c0_i32_0 : i32, i32, i32
  }
}

</mosaic_0001>

<llo_original>
// kernel: attention_block_forward.2
$region0: #{attention_block_forward.2}
  #allocation0 [shape = 'u32[]', space=smem, size = 0x4, offset = 0x4, fixed_abs, tag = 'smem constant byte address 0x4 - core index']
  #allocation1 [shape = 'u32[144,128]{1,0:T(1,128)}', space=vmem, size = 0x12000, scoped, tag = 'internal scratch']
  %s0 = inlined_call_operand.vmem [shape: f32[2,256,32], index: 0, kind: input, shape index: {}]
  %s1 = inlined_call_operand.vmem [shape: bf16[16,256], index: 1, kind: input, shape index: {}]
  %s2 = inlined_call_operand.vmem [shape: f32[1,32], index: 2, kind: input, shape index: {}]
  %s3 = inlined_call_operand.vmem [shape: f32[1,32], index: 3, kind: input, shape index: {}]
  %s4 = inlined_call_operand.vmem [shape: bf16[32,32], index: 4, kind: input, shape index: {}]
  %s5 = inlined_call_operand.vmem [shape: f32[1,32], index: 5, kind: input, shape index: {}]
  %s6 = inlined_call_operand.vmem [shape: bf16[32,32], index: 6, kind: input, shape index: {}]
  %s7 = inlined_call_operand.vmem [shape: f32[1,32], index: 7, kind: input, shape index: {}]
  %s8 = inlined_call_operand.vmem [shape: bf16[32,32], index: 8, kind: input, shape index: {}]
  %s9 = inlined_call_operand.vmem [shape: f32[1,32], index: 9, kind: input, shape index: {}]
  %s10 = inlined_call_operand.vmem [shape: bf16[32,32], index: 10, kind: input, shape index: {}]
  %s11 = inlined_call_operand.vmem [shape: f32[1,32], index: 11, kind: input, shape index: {}]
  %s12 = inlined_call_operand.vmem [shape: bf16[32,32], index: 12, kind: input, shape index: {}]
  %s13 = inlined_call_operand.vmem [shape: f32[1,32], index: 13, kind: input, shape index: {}]
  %s14 = inlined_call_operand.vmem [shape: f32[1,32], index: 14, kind: input, shape index: {}]
  %s15 = inlined_call_operand.vmem [shape: bf16[32,128], index: 15, kind: input, shape index: {}]
  %s16 = inlined_call_operand.vmem [shape: f32[1,128], index: 16, kind: input, shape index: {}]
  %s17 = inlined_call_operand.vmem [shape: bf16[128,32], index: 17, kind: input, shape index: {}]
  %s18 = inlined_call_operand.vmem [shape: f32[1,32], index: 18, kind: input, shape index: {}]
  %s19 = inlined_call_operand.vmem [shape: f32[2,16,32], index: 19, kind: output, shape index: {}]
  %s20 = sld [smem:[#allocation0]]
  $region109: #{attention_block_forward.2} parent=0
    _
  %s22 = ssub.s32 1, %s20
  %s23 = scalar_select 0, %s22, %s20
  loop: start=0, step=1, limit=4
  $region2: #{attention_block_forward.2} parent=0 // loop_pre_header
    _
  $region3: #{attention_block_forward.2} parent=0 // loop_header
    %s25 = sphi 0, %s29
    %p26 = scmp.ge.s32.totalorder %s25, 4
    %s35 = sphi 0, %s37
    %s38 = sphi 0, %s35
    %s39 = sphi 0, %s38
    %s55 = sphi 0, %s39
    %s59 = sphi 0, %s59
    %s61 = sphi 0, %s59
    %s62 = sphi 0, %s61
    %s76 = sphi 0, %s62
    %s80 = sphi 0, %s80
    %s82 = sphi 0, %s80
    %s83 = sphi 0, %s82
    %s97 = sphi 0, %s83
    %s101 = sphi 0, %s101
    %s103 = sphi 0, %s101
    %s104 = sphi 0, %s103
    %s118 = sphi 0, %s104
    %s122 = sphi 0, %s122
    %s124 = sphi 0, %s122
    %s125 = sphi 0, %s124
    %s139 = sphi 0, %s125
    %s143 = sphi 0, %s143
    %s145 = sphi 0, %s143
    %s146 = sphi 0, %s145
    %s160 = sphi 0, %s146
    %s164 = sphi 0, %s164
    %s166 = sphi 0, %s164
    %s167 = sphi 0, %s166
    %s181 = sphi 0, %s167
    %s185 = sphi 0, %s185
    %s187 = sphi 0, %s185
    %s188 = sphi 0, %s187
    %s202 = sphi 0, %s188
    %s206 = sphi 0, %s206
    %s208 = sphi 0, %s206
    %s209 = sphi 0, %s208
    %s223 = sphi 0, %s209
    %s227 = sphi 0, %s227
    %s229 = sphi 0, %s227
    %s230 = sphi 0, %s229
    %s244 = sphi 0, %s230
    %s248 = sphi 0, %s248
    %s250 = sphi 0, %s248
    %s251 = sphi 0, %s250
    %s265 = sphi 0, %s251
    %s269 = sphi 0, %s269
    %s271 = sphi 0, %s269
    %s272 = sphi 0, %s271
    %s286 = sphi 0, %s272
    %s290 = sphi 0, %s290
    %s292 = sphi 0, %s290
    %s293 = sphi 0, %s292
    %s307 = sphi 0, %s293
    %s311 = sphi 0, %s311
    %s313 = sphi 0, %s311
    %s314 = sphi 0, %s313
    %s328 = sphi 0, %s314
    %s332 = sphi 0, %s332
    %s334 = sphi 0, %s332
    %s335 = sphi 0, %s334
    %s349 = sphi 0, %s335
    %s353 = sphi 0, %s353
    %s355 = sphi 0, %s353
    %s356 = sphi 0, %s355
    %s370 = sphi 0, %s356
    %s374 = sphi 0, %s374
    %s376 = sphi 0, %s374
    %s377 = sphi 0, %s376
    %s391 = sphi 0, %s377
    %s395 = sphi 0, %s395
    %s397 = sphi 0, %s395
    %s398 = sphi 0, %s397
    %s412 = sphi 0, %s398
    %s416 = sphi 0, %s416
    %s418 = sphi 0, %s416
    %s419 = sphi 0, %s418
    %s433 = sphi 0, %s419
    %s439 = sphi 0, %s441
    %s442 = sphi 0, %s439
    %s443 = sphi 0, %s442
    %s459 = sphi 0, %s443
  $region4: #{attention_block_forward.2} parent=0 // loop_header_branch
    %28 = sbr.rel (%p26) target = $region8
  $region5: #{attention_block_forward.2} parent=0 // loop_body
    %s30 = ssub.s32 %s25, 1
    %s31 = ssub.s32 %s25, 2
    %s32 = sadd.s32 %s25, 1
    %s33 = ssub.s32 %s25, %s32
    %p34 = scmp.eq.s32.totalorder %s33, 0
    %s36 = sadd.s32 %s35, 1
    %s37 = scalar_select %p34, %s35, %s36
    %p40 = pneg %p34
    %p41 = scmp.eq.s32.totalorder %s25, 1
    %p42 = por %p40, %p41
    %p43 = scmp.ne.s32.totalorder %s35, %s38
    %p44 = scmp.eq.s32.totalorder %s25, 0
    %p45 = por %p43, %p44
    %p46 = scmp.ne.s32.totalorder %s35, %s38
    %p47 = scmp.eq.s32.totalorder %s30, 1
    %p48 = por %p46, %p47
    %p49 = scmp.ne.s32.totalorder %s38, %s39
    %p50 = scmp.eq.s32.totalorder %s30, 0
    %p51 = por %p49, %p50
    %p52 = scmp.ne.s32.totalorder %s38, %s39
    %p53 = scmp.eq.s32.totalorder %s31, 1
    %p54 = por %p52, %p53
    %p56 = scmp.ne.s32.totalorder %s39, %s55
    %p57 = scmp.eq.s32.totalorder %s31, 0
    %p58 = por %p56, %p57
    %s60 = sadd.s32 %s59, 1
    %p63 = scmp.eq.s32.totalorder %s25, 1
    %p64 = scmp.ne.s32.totalorder %s59, %s61
    %p65 = scmp.eq.s32.totalorder %s25, 0
    %p66 = por %p64, %p65
    %p67 = scmp.ne.s32.totalorder %s59, %s61
    %p68 = scmp.eq.s32.totalorder %s30, 1
    %p69 = por %p67, %p68
    %p70 = scmp.ne.s32.totalorder %s61, %s62
    %p71 = scmp.eq.s32.totalorder %s30, 0
    %p72 = por %p70, %p71
    %p73 = scmp.ne.s32.totalorder %s61, %s62
    %p74 = scmp.eq.s32.totalorder %s31, 1
    %p75 = por %p73, %p74
    %p77 = scmp.ne.s32.totalorder %s62, %s76
    %p78 = scmp.eq.s32.totalorder %s31, 0
    %p79 = por %p77, %p78
    %s81 = sadd.s32 %s80, 1
    %p84 = scmp.eq.s32.totalorder %s25, 1
    %p85 = scmp.ne.s32.totalorder %s80, %s82
    %p86 = scmp.eq.s32.totalorder %s25, 0
    %p87 = por %p85, %p86
    %p88 = scmp.ne.s32.totalorder %s80, %s82
    %p89 = scmp.eq.s32.totalorder %s30, 1
    %p90 = por %p88, %p89
    %p91 = scmp.ne.s32.totalorder %s82, %s83
    %p92 = scmp.eq.s32.totalorder %s30, 0
    %p93 = por %p91, %p92
    %p94 = scmp.ne.s32.totalorder %s82, %s83
    %p95 = scmp.eq.s32.totalorder %s31, 1
    %p96 = por %p94, %p95
    %p98 = scmp.ne.s32.totalorder %s83, %s97
    %p99 = scmp.eq.s32.totalorder %s31, 0
    %p100 = por %p98, %p99
    %s102 = sadd.s32 %s101, 1
    %p105 = scmp.eq.s32.totalorder %s25, 1
    %p106 = scmp.ne.s32.totalorder %s101, %s103
    %p107 = scmp.eq.s32.totalorder %s25, 0
    %p108 = por %p106, %p107
    %p109 = scmp.ne.s32.totalorder %s101, %s103
    %p110 = scmp.eq.s32.totalorder %s30, 1
    %p111 = por %p109, %p110
    %p112 = scmp.ne.s32.totalorder %s103, %s104
    %p113 = scmp.eq.s32.totalorder %s30, 0
    %p114 = por %p112, %p113
    %p115 = scmp.ne.s32.totalorder %s103, %s104
    %p116 = scmp.eq.s32.totalorder %s31, 1
    %p117 = por %p115, %p116
    %p119 = scmp.ne.s32.totalorder %s104, %s118
    %p120 = scmp.eq.s32.totalorder %s31, 0
    %p121 = por %p119, %p120
    %s123 = sadd.s32 %s122, 1
    %p126 = scmp.eq.s32.totalorder %s25, 1
    %p127 = scmp.ne.s32.totalorder %s122, %s124
    %p128 = scmp.eq.s32.totalorder %s25, 0
    %p129 = por %p127, %p128
    %p130 = scmp.ne.s32.totalorder %s122, %s124
    %p131 = scmp.eq.s32.totalorder %s30, 1
    %p132 = por %p130, %p131
    %p133 = scmp.ne.s32.totalorder %s124, %s125
    %p134 = scmp.eq.s32.totalorder %s30, 0
    %p135 = por %p133, %p134
    %p136 = scmp.ne.s32.totalorder %s124, %s125
    %p137 = scmp.eq.s32.totalorder %s31, 1
    %p138 = por %p136, %p137
    %p140 = scmp.ne.s32.totalorder %s125, %s139
    %p141 = scmp.eq.s32.totalorder %s31, 0
    %p142 = por %p140, %p141
    %s144 = sadd.s32 %s143, 1
    %p147 = scmp.eq.s32.totalorder %s25, 1
    %p148 = scmp.ne.s32.totalorder %s143, %s145
    %p149 = scmp.eq.s32.totalorder %s25, 0
    %p150 = por %p148, %p149
    %p151 = scmp.ne.s32.totalorder %s143, %s145
    %p152 = scmp.eq.s32.totalorder %s30, 1
    %p153 = por %p151, %p152
    %p154 = scmp.ne.s32.totalorder %s145, %s146
    %p155 = scmp.eq.s32.totalorder %s30, 0
    %p156 = por %p154, %p155
    %p157 = scmp.ne.s32.totalorder %s145, %s146
    %p158 = scmp.eq.s32.totalorder %s31, 1
    %p159 = por %p157, %p158
    %p161 = scmp.ne.s32.totalorder %s146, %s160
    %p162 = scmp.eq.s32.totalorder %s31, 0
    %p163 = por %p161, %p162
    %s165 = sadd.s32 %s164, 1
    %p168 = scmp.eq.s32.totalorder %s25, 1
    %p169 = scmp.ne.s32.totalorder %s164, %s166
    %p170 = scmp.eq.s32.totalorder %s25, 0
    %p171 = por %p169, %p170
    %p172 = scmp.ne.s32.totalorder %s164, %s166
    %p173 = scmp.eq.s32.totalorder %s30, 1
    %p174 = por %p172, %p173
    %p175 = scmp.ne.s32.totalorder %s166, %s167
    %p176 = scmp.eq.s32.totalorder %s30, 0
    %p177 = por %p175, %p176
    %p178 = scmp.ne.s32.totalorder %s166, %s167
    %p179 = scmp.eq.s32.totalorder %s31, 1
    %p180 = por %p178, %p179
    %p182 = scmp.ne.s32.totalorder %s167, %s181
    %p183 = scmp.eq.s32.totalorder %s31, 0
    %p184 = por %p182, %p183
    %s186 = sadd.s32 %s185, 1
    %p189 = scmp.eq.s32.totalorder %s25, 1
    %p190 = scmp.ne.s32.totalorder %s185, %s187
    %p191 = scmp.eq.s32.totalorder %s25, 0
    %p192 = por %p190, %p191
    %p193 = scmp.ne.s32.totalorder %s185, %s187
    %p194 = scmp.eq.s32.totalorder %s30, 1
    %p195 = por %p193, %p194
    %p196 = scmp.ne.s32.totalorder %s187, %s188
    %p197 = scmp.eq.s32.totalorder %s30, 0
    %p198 = por %p196, %p197
    %p199 = scmp.ne.s32.totalorder %s187, %s188
    %p200 = scmp.eq.s32.totalorder %s31, 1
    %p201 = por %p199, %p200
    %p203 = scmp.ne.s32.totalorder %s188, %s202
    %p204 = scmp.eq.s32.totalorder %s31, 0
    %p205 = por %p203, %p204
    %s207 = sadd.s32 %s206, 1
    %p210 = scmp.eq.s32.totalorder %s25, 1
    %p211 = scmp.ne.s32.totalorder %s206, %s208
    %p212 = scmp.eq.s32.totalorder %s25, 0
    %p213 = por %p211, %p212
    %p214 = scmp.ne.s32.totalorder %s206, %s208
    %p215 = scmp.eq.s32.totalorder %s30, 1
    %p216 = por %p214, %p215
    %p217 = scmp.ne.s32.totalorder %s208, %s209
    %p218 = scmp.eq.s32.totalorder %s30, 0
    %p219 = por %p217, %p218
    %p220 = scmp.ne.s32.totalorder %s208, %s209
    %p221 = scmp.eq.s32.totalorder %s31, 1
    %p222 = por %p220, %p221
    %p224 = scmp.ne.s32.totalorder %s209, %s223
    %p225 = scmp.eq.s32.totalorder %s31, 0
    %p226 = por %p224, %p225
    %s228 = sadd.s32 %s227, 1
    %p231 = scmp.eq.s32.totalorder %s25, 1
    %p232 = scmp.ne.s32.totalorder %s227, %s229
    %p233 = scmp.eq.s32.totalorder %s25, 0
    %p234 = por %p232, %p233
    %p235 = scmp.ne.s32.totalorder %s227, %s229
    %p236 = scmp.eq.s32.totalorder %s30, 1
    %p237 = por %p235, %p236
    %p238 = scmp.ne.s32.totalorder %s229, %s230
    %p239 = scmp.eq.s32.totalorder %s30, 0
    %p240 = por %p238, %p239
    %p241 = scmp.ne.s32.totalorder %s229, %s230
    %p242 = scmp.eq.s32.totalorder %s31, 1
    %p243 = por %p241, %p242
    %p245 = scmp.ne.s32.totalorder %s230, %s244
    %p246 = scmp.eq.s32.totalorder %s31, 0
    %p247 = por %p245, %p246
    %s249 = sadd.s32 %s248, 1
    %p252 = scmp.eq.s32.totalorder %s25, 1
    %p253 = scmp.ne.s32.totalorder %s248, %s250
    %p254 = scmp.eq.s32.totalorder %s25, 0
    %p255 = por %p253, %p254
    %p256 = scmp.ne.s32.totalorder %s248, %s250
    %p257 = scmp.eq.s32.totalorder %s30, 1
    %p258 = por %p256, %p257
    %p259 = scmp.ne.s32.totalorder %s250, %s251
    %p260 = scmp.eq.s32.totalorder %s30, 0
    %p261 = por %p259, %p260
    %p262 = scmp.ne.s32.totalorder %s250, %s251
    %p263 = scmp.eq.s32.totalorder %s31, 1
    %p264 = por %p262, %p263
    %p266 = scmp.ne.s32.totalorder %s251, %s265
    %p267 = scmp.eq.s32.totalorder %s31, 0
    %p268 = por %p266, %p267
    %s270 = sadd.s32 %s269, 1
    %p273 = scmp.eq.s32.totalorder %s25, 1
    %p274 = scmp.ne.s32.totalorder %s269, %s271
    %p275 = scmp.eq.s32.totalorder %s25, 0
    %p276 = por %p274, %p275
    %p277 = scmp.ne.s32.totalorder %s269, %s271
    %p278 = scmp.eq.s32.totalorder %s30, 1
    %p279 = por %p277, %p278
    %p280 = scmp.ne.s32.totalorder %s271, %s272
    %p281 = scmp.eq.s32.totalorder %s30, 0
    %p282 = por %p280, %p281
    %p283 = scmp.ne.s32.totalorder %s271, %s272
    %p284 = scmp.eq.s32.totalorder %s31, 1
    %p285 = por %p283, %p284
    %p287 = scmp.ne.s32.totalorder %s272, %s286
    %p288 = scmp.eq.s32.totalorder %s31, 0
    %p289 = por %p287, %p288
    %s291 = sadd.s32 %s290, 1
    %p294 = scmp.eq.s32.totalorder %s25, 1
    %p295 = scmp.ne.s32.totalorder %s290, %s292
    %p296 = scmp.eq.s32.totalorder %s25, 0
    %p297 = por %p295, %p296
    %p298 = scmp.ne.s32.totalorder %s290, %s292
    %p299 = scmp.eq.s32.totalorder %s30, 1
    %p300 = por %p298, %p299
    %p301 = scmp.ne.s32.totalorder %s292, %s293
    %p302 = scmp.eq.s32.totalorder %s30, 0
    %p303 = por %p301, %p302
    %p304 = scmp.ne.s32.totalorder %s292, %s293
    %p305 = scmp.eq.s32.totalorder %s31, 1
    %p306 = por %p304, %p305
    %p308 = scmp.ne.s32.totalorder %s293, %s307
    %p309 = scmp.eq.s32.totalorder %s31, 0
    %p310 = por %p308, %p309
    %s312 = sadd.s32 %s311, 1
    %p315 = scmp.eq.s32.totalorder %s25, 1
    %p316 = scmp.ne.s32.totalorder %s311, %s313
    %p317 = scmp.eq.s32.totalorder %s25, 0
    %p318 = por %p316, %p317
    %p319 = scmp.ne.s32.totalorder %s311, %s313
    %p320 = scmp.eq.s32.totalorder %s30, 1
    %p321 = por %p319, %p320
    %p322 = scmp.ne.s32.totalorder %s313, %s314
    %p323 = scmp.eq.s32.totalorder %s30, 0
    %p324 = por %p322, %p323
    %p325 = scmp.ne.s32.totalorder %s313, %s314
    %p326 = scmp.eq.s32.totalorder %s31, 1
    %p327 = por %p325, %p326
    %p329 = scmp.ne.s32.totalorder %s314, %s328
    %p330 = scmp.eq.s32.totalorder %s31, 0
    %p331 = por %p329, %p330
    %s333 = sadd.s32 %s332, 1
    %p336 = scmp.eq.s32.totalorder %s25, 1
    %p337 = scmp.ne.s32.totalorder %s332, %s334
    %p338 = scmp.eq.s32.totalorder %s25, 0
    %p339 = por %p337, %p338
    %p340 = scmp.ne.s32.totalorder %s332, %s334
    %p341 = scmp.eq.s32.totalorder %s30, 1
    %p342 = por %p340, %p341
    %p343 = scmp.ne.s32.totalorder %s334, %s335
    %p344 = scmp.eq.s32.totalorder %s30, 0
    %p345 = por %p343, %p344
    %p346 = scmp.ne.s32.totalorder %s334, %s335
    %p347 = scmp.eq.s32.totalorder %s31, 1
    %p348 = por %p346, %p347
    %p350 = scmp.ne.s32.totalorder %s335, %s349
    %p351 = scmp.eq.s32.totalorder %s31, 0
    %p352 = por %p350, %p351
    %s354 = sadd.s32 %s353, 1
    %p357 = scmp.eq.s32.totalorder %s25, 1
    %p358 = scmp.ne.s32.totalorder %s353, %s355
    %p359 = scmp.eq.s32.totalorder %s25, 0
    %p360 = por %p358, %p359
    %p361 = scmp.ne.s32.totalorder %s353, %s355
    %p362 = scmp.eq.s32.totalorder %s30, 1
    %p363 = por %p361, %p362
    %p364 = scmp.ne.s32.totalorder %s355, %s356
    %p365 = scmp.eq.s32.totalorder %s30, 0
    %p366 = por %p364, %p365
    %p367 = scmp.ne.s32.totalorder %s355, %s356
    %p368 = scmp.eq.s32.totalorder %s31, 1
    %p369 = por %p367, %p368
    %p371 = scmp.ne.s32.totalorder %s356, %s370
    %p372 = scmp.eq.s32.totalorder %s31, 0
    %p373 = por %p371, %p372
    %s375 = sadd.s32 %s374, 1
    %p378 = scmp.eq.s32.totalorder %s25, 1
    %p379 = scmp.ne.s32.totalorder %s374, %s376
    %p380 = scmp.eq.s32.totalorder %s25, 0
    %p381 = por %p379, %p380
    %p382 = scmp.ne.s32.totalorder %s374, %s376
    %p383 = scmp.eq.s32.totalorder %s30, 1
    %p384 = por %p382, %p383
    %p385 = scmp.ne.s32.totalorder %s376, %s377
    %p386 = scmp.eq.s32.totalorder %s30, 0
    %p387 = por %p385, %p386
    %p388 = scmp.ne.s32.totalorder %s376, %s377
    %p389 = scmp.eq.s32.totalorder %s31, 1
    %p390 = por %p388, %p389
    %p392 = scmp.ne.s32.totalorder %s377, %s391
    %p393 = scmp.eq.s32.totalorder %s31, 0
    %p394 = por %p392, %p393
    %s396 = sadd.s32 %s395, 1
    %p399 = scmp.eq.s32.totalorder %s25, 1
    %p400 = scmp.ne.s32.totalorder %s395, %s397
    %p401 = scmp.eq.s32.totalorder %s25, 0
    %p402 = por %p400, %p401
    %p403 = scmp.ne.s32.totalorder %s395, %s397
    %p404 = scmp.eq.s32.totalorder %s30, 1
    %p405 = por %p403, %p404
    %p406 = scmp.ne.s32.totalorder %s397, %s398
    %p407 = scmp.eq.s32.totalorder %s30, 0
    %p408 = por %p406, %p407
    %p409 = scmp.ne.s32.totalorder %s397, %s398
    %p410 = scmp.eq.s32.totalorder %s31, 1
    %p411 = por %p409, %p410
    %p413 = scmp.ne.s32.totalorder %s398, %s412
    %p414 = scmp.eq.s32.totalorder %s31, 0
    %p415 = por %p413, %p414
    %s417 = sadd.s32 %s416, 1
    %p420 = scmp.eq.s32.totalorder %s25, 1
    %p421 = scmp.ne.s32.totalorder %s416, %s418
    %p422 = scmp.eq.s32.totalorder %s25, 0
    %p423 = por %p421, %p422
    %p424 = scmp.ne.s32.totalorder %s416, %s418
    %p425 = scmp.eq.s32.totalorder %s30, 1
    %p426 = por %p424, %p425
    %p427 = scmp.ne.s32.totalorder %s418, %s419
    %p428 = scmp.eq.s32.totalorder %s30, 0
    %p429 = por %p427, %p428
    %p430 = scmp.ne.s32.totalorder %s418, %s419
    %p431 = scmp.eq.s32.totalorder %s31, 1
    %p432 = por %p430, %p431
    %p434 = scmp.ne.s32.totalorder %s419, %s433
    %p435 = scmp.eq.s32.totalorder %s31, 0
    %p436 = por %p434, %p435
    %s437 = ssub.s32 %s25, %s32
    %p438 = scmp.eq.s32.totalorder %s437, 0
    %s440 = sadd.s32 %s439, 1
    %s441 = scalar_select %p438, %s439, %s440
    %p444 = pneg %p438
    %p445 = scmp.eq.s32.totalorder %s25, 1
    %p446 = por %p444, %p445
    %p447 = scmp.ne.s32.totalorder %s439, %s442
    %p448 = scmp.eq.s32.totalorder %s25, 0
    %p449 = por %p447, %p448
    %p450 = scmp.ne.s32.totalorder %s439, %s442
    %p451 = scmp.eq.s32.totalorder %s30, 1
    %p452 = por %p450, %p451
    %p453 = scmp.ne.s32.totalorder %s442, %s443
    %p454 = scmp.eq.s32.totalorder %s30, 0
    %p455 = por %p453, %p454
    %p456 = scmp.ne.s32.totalorder %s442, %s443
    %p457 = scmp.eq.s32.totalorder %s31, 1
    %p458 = por %p456, %p457
    %p460 = scmp.ne.s32.totalorder %s443, %s459
    %p461 = scmp.eq.s32.totalorder %s31, 0
    %p462 = por %p460, %p461
    %p463 = scmp.le.s32.totalorder 1, %s25
    %p464 = scmp.lt.s32.totalorder %s25, 3
    %p465 = pnand %p463, %p464
    %p466 = pneg %p465
    // Predicated region
    $region9: #{attention_block_forward.2} parent=5 // pred_check
      _
    $region10: #{attention_block_forward.2} parent=5 // pred_check_branch
      %468 = sbr.rel (%p465) target = $region12
    $region11: #{attention_block_forward.2} parent=5 // pred_region
      %s469 = ssub.s32 %s25, 1
      // Predicated region
      $region13: #{attention_block_forward.2} parent=11 // pred_check
        %p470 = pneg %p72
      $region14: #{attention_block_forward.2} parent=11 // pred_check_branch
        %472 = sbr.rel (%p470) target = $region16
      $region15: #{attention_block_forward.2} parent=11 // pred_region
        _
      $region16: #{attention_block_forward.2} parent=11 // pred_fallthru
        _
      // Predicated region
      $region17: #{attention_block_forward.2} parent=11 // pred_check
        %p473 = pneg %p93
      $region18: #{attention_block_forward.2} parent=11 // pred_check_branch
        %475 = sbr.rel (%p473) target = $region20
      $region19: #{attention_block_forward.2} parent=11 // pred_region
        _
      $region20: #{attention_block_forward.2} parent=11 // pred_fallthru
        _
      // Predicated region
      $region21: #{attention_block_forward.2} parent=11 // pred_check
        %p476 = pneg %p114
      $region22: #{attention_block_forward.2} parent=11 // pred_check_branch
        %478 = sbr.rel (%p476) target = $region24
      $region23: #{attention_block_forward.2} parent=11 // pred_region
        _
      $region24: #{attention_block_forward.2} parent=11 // pred_fallthru
        _
      // Predicated region
      $region25: #{attention_block_forward.2} parent=11 // pred_check
        %p479 = pneg %p135
      $region26: #{attention_block_forward.2} parent=11 // pred_check_branch
        %481 = sbr.rel (%p479) target = $region28
      $region27: #{attention_block_forward.2} parent=11 // pred_region
        _
      $region28: #{attention_block_forward.2} parent=11 // pred_fallthru
        _
      // Predicated region
      $region29: #{attention_block_forward.2} parent=11 // pred_check
        %p482 = pneg %p156
      $region30: #{attention_block_forward.2} parent=11 // pred_check_branch
        %484 = sbr.rel (%p482) target = $region32
      $region31: #{attention_block_forward.2} parent=11 // pred_region
        _
      $region32: #{attention_block_forward.2} parent=11 // pred_fallthru
        _
      // Predicated region
      $region33: #{attention_block_forward.2} parent=11 // pred_check
        %p485 = pneg %p177
      $region34: #{attention_block_forward.2} parent=11 // pred_check_branch
        %487 = sbr.rel (%p485) target = $region36
      $region35: #{attention_block_forward.2} parent=11 // pred_region
        _
      $region36: #{attention_block_forward.2} parent=11 // pred_fallthru
        _
      // Predicated region
      $region37: #{attention_block_forward.2} parent=11 // pred_check
        %p488 = pneg %p198
      $region38: #{attention_block_forward.2} parent=11 // pred_check_branch
        %490 = sbr.rel (%p488) target = $region40
      $region39: #{attention_block_forward.2} parent=11 // pred_region
        _
      $region40: #{attention_block_forward.2} parent=11 // pred_fallthru
        _
      // Predicated region
      $region41: #{attention_block_forward.2} parent=11 // pred_check
        %p491 = pneg %p219
      $region42: #{attention_block_forward.2} parent=11 // pred_check_branch
        %493 = sbr.rel (%p491) target = $region44
      $region43: #{attention_block_forward.2} parent=11 // pred_region
        _
      $region44: #{attention_block_forward.2} parent=11 // pred_fallthru
        _
      // Predicated region
      $region45: #{attention_block_forward.2} parent=11 // pred_check
        %p494 = pneg %p240
      $region46: #{attention_block_forward.2} parent=11 // pred_check_branch
        %496 = sbr.rel (%p494) target = $region48
      $region47: #{attention_block_forward.2} parent=11 // pred_region
        _
      $region48: #{attention_block_forward.2} parent=11 // pred_fallthru
        _
      // Predicated region
      $region49: #{attention_block_forward.2} parent=11 // pred_check
        %p497 = pneg %p261
      $region50: #{attention_block_forward.2} parent=11 // pred_check_branch
        %499 = sbr.rel (%p497) target = $region52
      $region51: #{attention_block_forward.2} parent=11 // pred_region
        _
      $region52: #{attention_block_forward.2} parent=11 // pred_fallthru
        _
      // Predicated region
      $region53: #{attention_block_forward.2} parent=11 // pred_check
        %p500 = pneg %p282
      $region54: #{attention_block_forward.2} parent=11 // pred_check_branch
        %502 = sbr.rel (%p500) target = $region56
      $region55: #{attention_block_forward.2} parent=11 // pred_region
        _
      $region56: #{attention_block_forward.2} parent=11 // pred_fallthru
        _
      // Predicated region
      $region57: #{attention_block_forward.2} parent=11 // pred_check
        %p503 = pneg %p303
      $region58: #{attention_block_forward.2} parent=11 // pred_check_branch
        %505 = sbr.rel (%p503) target = $region60
      $region59: #{attention_block_forward.2} parent=11 // pred_region
        _
      $region60: #{attention_block_forward.2} parent=11 // pred_fallthru
        _
      // Predicated region
      $region61: #{attention_block_forward.2} parent=11 // pred_check
        %p506 = pneg %p324
      $region62: #{attention_block_forward.2} parent=11 // pred_check_branch
        %508 = sbr.rel (%p506) target = $region64
      $region63: #{attention_block_forward.2} parent=11 // pred_region
        _
      $region64: #{attention_block_forward.2} parent=11 // pred_fallthru
        _
      // Predicated region
      $region65: #{attention_block_forward.2} parent=11 // pred_check
        %p509 = pneg %p345
      $region66: #{attention_block_forward.2} parent=11 // pred_check_branch
        %511 = sbr.rel (%p509) target = $region68
      $region67: #{attention_block_forward.2} parent=11 // pred_region
        _
      $region68: #{attention_block_forward.2} parent=11 // pred_fallthru
        _
      // Predicated region
      $region69: #{attention_block_forward.2} parent=11 // pred_check
        %p512 = pneg %p366
      $region70: #{attention_block_forward.2} parent=11 // pred_check_branch
        %514 = sbr.rel (%p512) target = $region72
      $region71: #{attention_block_forward.2} parent=11 // pred_region
        _
      $region72: #{attention_block_forward.2} parent=11 // pred_fallthru
        _
      // Predicated region
      $region73: #{attention_block_forward.2} parent=11 // pred_check
        %p515 = pneg %p387
      $region74: #{attention_block_forward.2} parent=11 // pred_check_branch
        %517 = sbr.rel (%p515) target = $region76
      $region75: #{attention_block_forward.2} parent=11 // pred_region
        _
      $region76: #{attention_block_forward.2} parent=11 // pred_fallthru
        _
      // Predicated region
      $region77: #{attention_block_forward.2} parent=11 // pred_check
        %p518 = pneg %p408
      $region78: #{attention_block_forward.2} parent=11 // pred_check_branch
        %520 = sbr.rel (%p518) target = $region80
      $region79: #{attention_block_forward.2} parent=11 // pred_region
        _
      $region80: #{attention_block_forward.2} parent=11 // pred_fallthru
        _
      // Predicated region
      $region81: #{attention_block_forward.2} parent=11 // pred_check
        %p521 = pneg %p429
      $region82: #{attention_block_forward.2} parent=11 // pred_check_branch
        %523 = sbr.rel (%p521) target = $region84
      $region83: #{attention_block_forward.2} parent=11 // pred_region
        _
      $region84: #{attention_block_forward.2} parent=11 // pred_fallthru
        _
    $region12: #{attention_block_forward.2} parent=5 // pred_fallthru
      _
    %p524 = scmp.lt.s32.totalorder %s25, 2
    // Predicated region
    $region85: #{attention_block_forward.2} parent=5 // pred_check
      %p525 = pneg %p524
    $region86: #{attention_block_forward.2} parent=5 // pred_check_branch
      %527 = sbr.rel (%p525) target = $region88
    $region87: #{attention_block_forward.2} parent=5 // pred_region
      // Predicated region
      $region89: #{attention_block_forward.2} parent=87 // pred_check
        %p528 = pneg %p45
      $region90: #{attention_block_forward.2} parent=87 // pred_check_branch
        %530 = sbr.rel (%p528) target = $region92
      $region91: #{attention_block_forward.2} parent=87 // pred_region
        %p531 = scmp.lt.s32.totalorder %s25, 1
        %s532 = scalar_select %p531, %s25, 1
        %s533 = smul.addr %s532, 32
        %s534 = smul.addr %s533, 8
        %s535 = scalar_lea.vmem %s0, %s534
      $region92: #{attention_block_forward.2} parent=87 // pred_fallthru
        _
    $region88: #{attention_block_forward.2} parent=5 // pred_fallthru
      _
    %p536 = scmp.le.s32.totalorder 1, %s25
    %p537 = scmp.lt.s32.totalorder %s25, 3
    %p538 = pnand %p536, %p537
    %p539 = pneg %p538
    // Predicated region
    $region93: #{attention_block_forward.2} parent=5 // pred_check
      _
    $region94: #{attention_block_forward.2} parent=5 // pred_check_branch
      %541 = sbr.rel (%p538) target = $region96
    $region95: #{attention_block_forward.2} parent=5 // pred_region
      %s542 = ssub.s32 %s25, 1
      %p543 = scmp.lt.s32.totalorder %s30, 1
      %s544 = scalar_select %p543, %s30, 1
      %s545 = smul.addr %s544, 32
      %s546 = smul.addr %s545, 8
      %s547 = scalar_lea.vmem %s0, %s546
      %p548 = pneg %p51
      %p549 = pneg %p48
      %p550 = pneg %p72
      %p551 = pneg %p69
      %p552 = pneg %p93
      %p553 = pneg %p90
      %p554 = pneg %p114
      %p555 = pneg %p111
      %p556 = pneg %p135
      %p557 = pneg %p132
      %p558 = pneg %p156
      %p559 = pneg %p153
      %p560 = pneg %p177
      %p561 = pneg %p174
      %p562 = pneg %p198
      %p563 = pneg %p195
      %p564 = pneg %p219
      %p565 = pneg %p216
      %p566 = pneg %p240
      %p567 = pneg %p237
      %p568 = pneg %p261
      %p569 = pneg %p258
      %p570 = pneg %p282
      %p571 = pneg %p279
      %p572 = pneg %p303
      %p573 = pneg %p300
      %p574 = pneg %p324
      %p575 = pneg %p321
      %p576 = pneg %p345
      %p577 = pneg %p342
      %p578 = pneg %p366
      %p579 = pneg %p363
      %p580 = pneg %p387
      %p581 = pneg %p384
      %p582 = pneg %p408
      %p583 = pneg %p405
      %p584 = pneg %p429
      %p585 = pneg %p426
      %p586 = pneg %p455
      %p587 = pneg %p452
      %p588 = scmp.lt.s32.totalorder %s30, 1
      %s589 = scalar_select %p588, %s30, 1
      %s590 = smul.addr %s589, 2
      %s591 = smul.addr %s590, 8
      %s592 = scalar_lea.vmem %s19, %s591
      %p593 = scmp.lt.s32.totalorder %s30, 1
      %s594 = scalar_select %p593, %s30, 1
      %s595 = smul.addr %s594, 32
      %s596 = smul.addr %s595, 8
      %s597 = scalar_lea.vmem %s0, %s596
      %p598 = scmp.lt.s32.totalorder %s30, 1
      %s599 = scalar_select %p598, %s30, 1
      %s600 = smul.addr %s599, 2
      %s601 = smul.addr %s600, 8
      %s602 = scalar_lea.vmem %s19, %s601
      %v604 = vld [vmem:[%s597] sm:$0xff]
      %v605 = vld [vmem:[%s597 + $0x8] sm:$0xff]
      %v606 = vld [vmem:[%s597 + $0x10] sm:$0xff]
      %v607 = vld [vmem:[%s597 + $0x18] sm:$0xff]
      %v608 = vld [vmem:[%s597 + $0x20] sm:$0xff]
      %v609 = vld [vmem:[%s597 + $0x28] sm:$0xff]
      %v610 = vld [vmem:[%s597 + $0x30] sm:$0xff]
      %v611 = vld [vmem:[%s597 + $0x38] sm:$0xff]
      %v612 = vld [vmem:[%s597 + $0x40] sm:$0xff]
      %v613 = vld [vmem:[%s597 + $0x48] sm:$0xff]
      %v614 = vld [vmem:[%s597 + $0x50] sm:$0xff]
      %v615 = vld [vmem:[%s597 + $0x58] sm:$0xff]
      %v616 = vld [vmem:[%s597 + $0x60] sm:$0xff]
      %v617 = vld [vmem:[%s597 + $0x68] sm:$0xff]
      %v618 = vld [vmem:[%s597 + $0x70] sm:$0xff]
      %v619 = vld [vmem:[%s597 + $0x78] sm:$0xff]
      %v620 = vld [vmem:[%s597 + $0x80] sm:$0xff]
      %v621 = vld [vmem:[%s597 + $0x88] sm:$0xff]
      %v622 = vld [vmem:[%s597 + $0x90] sm:$0xff]
      %v623 = vld [vmem:[%s597 + $0x98] sm:$0xff]
      %v624 = vld [vmem:[%s597 + $0xa0] sm:$0xff]
      %v625 = vld [vmem:[%s597 + $0xa8] sm:$0xff]
      %v626 = vld [vmem:[%s597 + $0xb0] sm:$0xff]
      %v627 = vld [vmem:[%s597 + $0xb8] sm:$0xff]
      %v628 = vld [vmem:[%s597 + $0xc0] sm:$0xff]
      %v629 = vld [vmem:[%s597 + $0xc8] sm:$0xff]
      %v630 = vld [vmem:[%s597 + $0xd0] sm:$0xff]
      %v631 = vld [vmem:[%s597 + $0xd8] sm:$0xff]
      %v632 = vld [vmem:[%s597 + $0xe0] sm:$0xff]
      %v633 = vld [vmem:[%s597 + $0xe8] sm:$0xff]
      %v634 = vld [vmem:[%s597 + $0xf0] sm:$0xff]
      %v635 = vld [vmem:[%s597 + $0xf8] sm:$0xff]
      %v636 = vld [vmem:[%s1] sm:$0xff]
      %v637 = vld [vmem:[%s1 + $0x8] sm:$0xff]
      %v638 = vpack.c.bf16 %v605, %v604
      %v639 = vpack.c.bf16 %v607, %v606
      %v640 = vpack.c.bf16 %v609, %v608
      %v641 = vpack.c.bf16 %v611, %v610
      %v642 = vpack.c.bf16 %v613, %v612
      %v643 = vpack.c.bf16 %v615, %v614
      %v644 = vpack.c.bf16 %v617, %v616
      %v645 = vpack.c.bf16 %v619, %v618
      %v646 = vpack.c.bf16 %v621, %v620
      %v647 = vpack.c.bf16 %v623, %v622
      %v648 = vpack.c.bf16 %v625, %v624
      %v649 = vpack.c.bf16 %v627, %v626
      %v650 = vpack.c.bf16 %v629, %v628
      %v651 = vpack.c.bf16 %v631, %v630
      %v652 = vpack.c.bf16 %v633, %v632
      %v653 = vpack.c.bf16 %v635, %v634
      %v656 = vunpack.c.l.b16 %v636
      %v657 = vunpack.c.h.b16 %v636
      %v658 = vunpack.c.l.b16 %v637
      %v659 = vunpack.c.h.b16 %v637
      %v660 = vpack.c.b16 %v658, %v656
      %v661 = vpack.c.b16 %v659, %v657
      %664 = vmatprep.subr.bf16.mxu0 0
      %665 = vmatpush1.bf16.msra.mxu0 %v638
      %666 = vmatprep.subr.bf16.mxu0 0
      %667 = vmatpush1.bf16.msra.mxu0 %v639
      %668 = vmatprep.subr.bf16.mxu0 0
      %669 = vmatpush1.bf16.msra.mxu0 %v640
      %670 = vmatprep.subr.bf16.mxu0 0
      %671 = vmatpush1.bf16.msra.mxu0 %v641
      %672 = vmatprep.subr.bf16.mxu0 0
      %673 = vmatpush1.bf16.msra.mxu0 %v642
      %674 = vmatprep.subr.bf16.mxu0 0
      %675 = vmatpush1.bf16.msra.mxu0 %v643
      %676 = vmatprep.subr.bf16.mxu0 0
      %677 = vmatpush1.bf16.msra.mxu0 %v644
      %678 = vmatprep.subr.bf16.mxu0 0
      %679 = vmatpush1.bf16.msra.mxu0 %v645
      %680 = vmatprep.subr.bf16.mxu0 0
      %681 = vmatpush1.bf16.msra.mxu0 %v646
      %682 = vmatprep.subr.bf16.mxu0 0
      %683 = vmatpush1.bf16.msra.mxu0 %v647
      %684 = vmatprep.subr.bf16.mxu0 0
      %685 = vmatpush1.bf16.msra.mxu0 %v648
      %686 = vmatprep.subr.bf16.mxu0 0
      %687 = vmatpush1.bf16.msra.mxu0 %v649
      %688 = vmatprep.subr.bf16.mxu0 0
      %689 = vmatpush1.bf16.msra.mxu0 %v650
      %690 = vmatprep.subr.bf16.mxu0 0
      %691 = vmatpush1.bf16.msra.mxu0 %v651
      %692 = vmatprep.subr.bf16.mxu0 0
      %693 = vmatpush1.bf16.msra.mxu0 %v652
      %694 = vmatprep.subr.bf16.mxu0 0
      %695 = vmatpush1.bf16.msra.mxu0 %v653
      %696 = vmatprep.mubr.bf16.mxu0 %v661
      %697 = vmatmul.mubr.bf16.gmra.mrb[0].mxu0 %v660
      %v698 = vpop.f32.mrb[0].mxu0
      %v699 = vadd.f32 0.0, %v698
      %v700 = vpop.f32.mrb[0].mxu0
      %v701 = vpop.f32.mrb[0].mxu0
      %v702 = vadd.f32 0.0, %v701
      %v703 = vpop.f32.mrb[0].mxu0
      %704 = vdwg.mxu0
      %vm705 = vcmask 261120
      %v706 = vsel %vm705, %v699, 0.0
      %707 = vadd.xlane.f32.xlu0 %v706
      %v708 = vpop.xlane.xlu0 %707
      %v709 = vsel %vm705, %v702, 0.0
      %710 = vadd.xlane.f32.xlu0 %v709
      %v711 = vpop.xlane.xlu0 %710
      %v712 = vrcp.pop 32.0
      %v713 = vmul.f32 %v708, %v712
      %v714 = vmul.f32 %v711, %v712
      %v715 = vsub.f32 %v699, %v713
      %v716 = vsub.f32 %v702, %v714
      %v717 = vmul.f32 %v715, %v715
      %v718 = vmul.f32 %v716, %v716
      %v719 = vsel %vm705, %v717, 0.0
      %720 = vadd.xlane.f32.xlu0 %v719
      %v721 = vpop.xlane.xlu0 %720
      %v722 = vsel %vm705, %v718, 0.0
      %723 = vadd.xlane.f32.xlu0 %v722
      %v724 = vpop.xlane.xlu0 %723
      %v725 = vmul.f32 %v721, %v712
      %v726 = vmul.f32 %v724, %v712
      %v727 = vadd.f32 %v725, 1e-05
      %v728 = vadd.f32 %v726, 1e-05
      %v729 = vrsqrt.pop %v727
      %v730 = vrsqrt.pop %v728
      %v731 = vmul.f32 %v715, %v729
      %v732 = vmul.f32 %v716, %v730
      %v733 = vld [vmem:[%s2] sm:$0x1]
      %v735 = vlaneseq
      %v736 = vshrl.u32 %v735, 7
      %v737 = vsub.s32 0, %v736
      %v738 = vrot.slane %v733, %v737
      %v740 = vmul.f32 %v731, %v738
      %v741 = vmul.f32 %v732, %v738
      %v742 = vld [vmem:[%s3] sm:$0x1]
      %v744 = vlaneseq
      %v745 = vshrl.u32 %v744, 7
      %v746 = vsub.s32 0, %v745
      %v747 = vrot.slane %v742, %v746
      %v749 = vadd.f32 %v740, %v747
      %v750 = vadd.f32 %v741, %v747
      %v751 = vpack.c.bf16 %v750, %v749
      %v752 = vld [vmem:[%s4] sm:$0xf]
      %v753 = vld [vmem:[%s4 + $0x4] sm:$0xf]
      %v754 = vld [vmem:[%s4 + $0x8] sm:$0xf]
      %v755 = vld [vmem:[%s4 + $0xc] sm:$0xf]
      %v756 = vld [vmem:[%s5] sm:$0x1]
      %v758 = vlaneseq
      %v759 = vshrl.u32 %v758, 7
      %v760 = vsub.s32 0, %v759
      %v761 = vrot.slane %v756, %v760
      %v767 = vunpack.c.l.b16 %v752
      %v768 = vunpack.c.l.b16 %v753
      %v769 = vunpack.c.l.b16 %v754
      %v770 = vunpack.c.l.b16 %v755
      %v771 = vpack.c.b16 %v768, %v767
      %v772 = vpack.c.b16 %v770, %v769
      %v776 = vsel %vm705, %v751, 0
      %778 = vmatprep.subr.bf16.mxu0 0
      %779 = vmatpush1.bf16.msra.mxu0 %v771
      %780 = vmatprep.subr.bf16.mxu0 0
      %781 = vmatpush1.bf16.msra.mxu0 %v772
      %782 = vmatprep.subr.bf16.mxu0 0
      %783 = vmatpush1.bf16.msra.mxu0 0
      %784 = vmatprep.subr.bf16.mxu0 0
      %785 = vmatpush1.bf16.msra.mxu0 0
      %786 = vmatprep.subr.bf16.mxu0 0
      %787 = vmatpush1.bf16.msra.mxu0 0
      %788 = vmatprep.subr.bf16.mxu0 0
      %789 = vmatpush1.bf16.msra.mxu0 0
      %790 = vmatprep.subr.bf16.mxu0 0
      %791 = vmatpush1.bf16.msra.mxu0 0
      %792 = vmatprep.subr.bf16.mxu0 0
      %793 = vmatpush1.bf16.msra.mxu0 0
      %794 = vmatprep.subr.bf16.mxu0 0
      %795 = vmatpush1.bf16.msra.mxu0 0
      %796 = vmatprep.subr.bf16.mxu0 0
      %797 = vmatpush1.bf16.msra.mxu0 0
      %798 = vmatprep.subr.bf16.mxu0 0
      %799 = vmatpush1.bf16.msra.mxu0 0
      %800 = vmatprep.subr.bf16.mxu0 0
      %801 = vmatpush1.bf16.msra.mxu0 0
      %802 = vmatprep.subr.bf16.mxu0 0
      %803 = vmatpush1.bf16.msra.mxu0 0
      %804 = vmatprep.subr.bf16.mxu0 0
      %805 = vmatpush1.bf16.msra.mxu0 0
      %806 = vmatprep.subr.bf16.mxu0 0
      %807 = vmatpush1.bf16.msra.mxu0 0
      %808 = vmatprep.subr.bf16.mxu0 0
      %809 = vmatpush1.bf16.msra.mxu0 0
      %810 = vmatprep.mubr.bf16.mxu0 0
      %811 = vmatmul.mubr.bf16.gmra.mrb[0].mxu0 %v776
      %v812 = vpop.f32.mrb[0].mxu0
      %v813 = vadd.f32 %v761, %v812
      %v814 = vpop.f32.mrb[0].mxu0
      %v815 = vpop.f32.mrb[0].mxu0
      %v816 = vadd.f32 %v761, %v815
      %v817 = vpop.f32.mrb[0].mxu0
      %818 = vdwg.mxu0
      %v819 = vld [vmem:[%s6] sm:$0xf]
      %v820 = vld [vmem:[%s6 + $0x4] sm:$0xf]
      %v821 = vld [vmem:[%s6 + $0x8] sm:$0xf]
      %v822 = vld [vmem:[%s6 + $0xc] sm:$0xf]
      %v823 = vld [vmem:[%s7] sm:$0x1]
      %v825 = vlaneseq
      %v826 = vshrl.u32 %v825, 7
      %v827 = vsub.s32 0, %v826
      %v828 = vrot.slane %v823, %v827
      %v834 = vunpack.c.l.b16 %v819
      %v835 = vunpack.c.l.b16 %v820
      %v836 = vunpack.c.l.b16 %v821
      %v837 = vunpack.c.l.b16 %v822
      %v838 = vpack.c.b16 %v835, %v834
      %v839 = vpack.c.b16 %v837, %v836
      %842 = vmatprep.subr.bf16.mxu0 0
      %843 = vmatpush1.bf16.msra.mxu0 %v838
      %844 = vmatprep.subr.bf16.mxu0 0
      %845 = vmatpush1.bf16.msra.mxu0 %v839
      %846 = vmatprep.subr.bf16.mxu0 0
      %847 = vmatpush1.bf16.msra.mxu0 0
      %848 = vmatprep.subr.bf16.mxu0 0
      %849 = vmatpush1.bf16.msra.mxu0 0
      %850 = vmatprep.subr.bf16.mxu0 0
      %851 = vmatpush1.bf16.msra.mxu0 0
      %852 = vmatprep.subr.bf16.mxu0 0
      %853 = vmatpush1.bf16.msra.mxu0 0
      %854 = vmatprep.subr.bf16.mxu0 0
      %855 = vmatpush1.bf16.msra.mxu0 0
      %856 = vmatprep.subr.bf16.mxu0 0
      %857 = vmatpush1.bf16.msra.mxu0 0
      %858 = vmatprep.subr.bf16.mxu0 0
      %859 = vmatpush1.bf16.msra.mxu0 0
      %860 = vmatprep.subr.bf16.mxu0 0
      %861 = vmatpush1.bf16.msra.mxu0 0
      %862 = vmatprep.subr.bf16.mxu0 0
      %863 = vmatpush1.bf16.msra.mxu0 0
      %864 = vmatprep.subr.bf16.mxu0 0
      %865 = vmatpush1.bf16.msra.mxu0 0
      %866 = vmatprep.subr.bf16.mxu0 0
      %867 = vmatpush1.bf16.msra.mxu0 0
      %868 = vmatprep.subr.bf16.mxu0 0
      %869 = vmatpush1.bf16.msra.mxu0 0
      %870 = vmatprep.subr.bf16.mxu0 0
      %871 = vmatpush1.bf16.msra.mxu0 0
      %872 = vmatprep.subr.bf16.mxu0 0
      %873 = vmatpush1.bf16.msra.mxu0 0
      %874 = vmatprep.mubr.bf16.mxu0 0
      %875 = vmatmul.mubr.bf16.gmra.mrb[0].mxu0 %v776
      %v876 = vpop.f32.mrb[0].mxu0
      %v877 = vadd.f32 %v828, %v876
      %v878 = vpop.f32.mrb[0].mxu0
      %v879 = vpop.f32.mrb[0].mxu0
      %v880 = vadd.f32 %v828, %v879
      %v881 = vpop.f32.mrb[0].mxu0
      %882 = vdwg.mxu0
      %v883 = vld [vmem:[%s8] sm:$0xf]
      %v884 = vld [vmem:[%s8 + $0x4] sm:$0xf]
      %v885 = vld [vmem:[%s8 + $0x8] sm:$0xf]
      %v886 = vld [vmem:[%s8 + $0xc] sm:$0xf]
      %v887 = vld [vmem:[%s9] sm:$0x1]
      %v889 = vlaneseq
      %v890 = vshrl.u32 %v889, 7
      %v891 = vsub.s32 0, %v890
      %v892 = vrot.slane %v887, %v891
      %v898 = vunpack.c.l.b16 %v883
      %v899 = vunpack.c.l.b16 %v884
      %v900 = vunpack.c.l.b16 %v885
      %v901 = vunpack.c.l.b16 %v886
      %v902 = vpack.c.b16 %v899, %v898
      %v903 = vpack.c.b16 %v901, %v900
      %906 = vmatprep.subr.bf16.mxu0 0
      %907 = vmatpush1.bf16.msra.mxu0 %v902
      %908 = vmatprep.subr.bf16.mxu0 0
      %909 = vmatpush1.bf16.msra.mxu0 %v903
      %910 = vmatprep.subr.bf16.mxu0 0
      %911 = vmatpush1.bf16.msra.mxu0 0
      %912 = vmatprep.subr.bf16.mxu0 0
      %913 = vmatpush1.bf16.msra.mxu0 0
      %914 = vmatprep.subr.bf16.mxu0 0
      %915 = vmatpush1.bf16.msra.mxu0 0
      %916 = vmatprep.subr.bf16.mxu0 0
      %917 = vmatpush1.bf16.msra.mxu0 0
      %918 = vmatprep.subr.bf16.mxu0 0
      %919 = vmatpush1.bf16.msra.mxu0 0
      %920 = vmatprep.subr.bf16.mxu0 0
      %921 = vmatpush1.bf16.msra.mxu0 0
      %922 = vmatprep.subr.bf16.mxu0 0
      %923 = vmatpush1.bf16.msra.mxu0 0
      %924 = vmatprep.subr.bf16.mxu0 0
      %925 = vmatpush1.bf16.msra.mxu0 0
      %926 = vmatprep.subr.bf16.mxu0 0
      %927 = vmatpush1.bf16.msra.mxu0 0
      %928 = vmatprep.subr.bf16.mxu0 0
      %929 = vmatpush1.bf16.msra.mxu0 0
      %930 = vmatprep.subr.bf16.mxu0 0
      %931 = vmatpush1.bf16.msra.mxu0 0
      %932 = vmatprep.subr.bf16.mxu0 0
      %933 = vmatpush1.bf16.msra.mxu0 0
      %934 = vmatprep.subr.bf16.mxu0 0
      %935 = vmatpush1.bf16.msra.mxu0 0
      %936 = vmatprep.subr.bf16.mxu0 0
      %937 = vmatpush1.bf16.msra.mxu0 0
      %938 = vmatprep.mubr.bf16.mxu0 0
      %939 = vmatmul.mubr.bf16.gmra.mrb[0].mxu0 %v776
      %v940 = vpop.f32.mrb[0].mxu0
      %v941 = vadd.f32 %v892, %v940
      %v942 = vpop.f32.mrb[0].mxu0
      %v943 = vpop.f32.mrb[0].mxu0
      %v944 = vadd.f32 %v892, %v943
      %v945 = vpop.f32.mrb[0].mxu0
      %946 = vdwg.mxu0
      %vm947 = vcmp.gt.f32.partialorder %v813, 0.0
      %vm948 = vcmp.gt.f32.partialorder %v816, 0.0
      %v949 = vadd.f32 %v813, 1.0
      %v950 = vadd.f32 %v816, 1.0
      %v951 = vmul.f32 %v813, 1.442695
      %v952 = vpow.pop %v951
      %v953 = vmul.f32 %v816, 1.442695
      %v954 = vpow.pop %v953
      %v955 = vsel %vm947, %v949, %v952
      %v956 = vsel %vm948, %v950, %v954
      %vm957 = vcmp.gt.f32.partialorder %v877, 0.0
      %vm958 = vcmp.gt.f32.partialorder %v880, 0.0
      %v959 = vadd.f32 %v877, 1.0
      %v960 = vadd.f32 %v880, 1.0
      %v961 = vmul.f32 %v877, 1.442695
      %v962 = vpow.pop %v961
      %v963 = vmul.f32 %v880, 1.442695
      %v964 = vpow.pop %v963
      %v965 = vsel %vm957, %v959, %v962
      %v966 = vsel %vm958, %v960, %v964
      %v967 = vmul.f32 %v941, 0.0625
      %v968 = vmul.f32 %v944, 0.0625
      %v969 = vld [vmem:[%s12] sm:$0xf]
      %v970 = vld [vmem:[%s12 + $0x4] sm:$0xf]
      %v971 = vld [vmem:[%s12 + $0x8] sm:$0xf]
      %v972 = vld [vmem:[%s12 + $0xc] sm:$0xf]
      %v973 = vpack.c.bf16 %v966, %v965
      %v974 = vpack.c.bf16 %v968, %v967
      %975 = vxpose.xlu0.c.b16.start [1/8] %v973, 128
      %976 = vxpose.xlu0.c.b16.cont [2/8] 0, 128
      %977 = vxpose.xlu0.c.b16.cont [3/8] 0, 128
      %978 = vxpose.xlu0.c.b16.cont [4/8] 0, 128
      %979 = vxpose.xlu0.c.b16.cont [5/8] 0, 128
      %980 = vxpose.xlu0.c.b16.cont [6/8] 0, 128
      %981 = vxpose.xlu0.c.b16.cont [7/8] 0, 128
      %982 = vxpose.xlu0.c.b16.end [8/8] 0, 128
      %v983 = vpop.trf.xlu0
      %v984 = vpop.trf.xlu0
      %v985 = vpop.trf.xlu0
      %v986 = vpop.trf.xlu0
      %v987 = vpop.trf.xlu0
      %v988 = vpop.trf.xlu0
      %v989 = vpop.trf.xlu0
      %v990 = vpop.trf.xlu0
      %vm991 = vcmask 130048
      %v993 = vsel %vm991, %v983, 0
      %v996 = vsel %vm991, %v984, 0
      %998 = vmatprep.subr.bf16.mxu0 0
      %999 = vmatpush1.bf16.msra.mxu0 %v974
      %1000 = vmatprep.subr.bf16.mxu0 0
      %1001 = vmatpush1.bf16.msra.mxu0 0
      %1002 = vmatprep.subr.bf16.mxu0 0
      %1003 = vmatpush1.bf16.msra.mxu0 0
      %1004 = vmatprep.subr.bf16.mxu0 0
      %1005 = vmatpush1.bf16.msra.mxu0 0
      %1006 = vmatprep.subr.bf16.mxu0 0
      %1007 = vmatpush1.bf16.msra.mxu0 0
      %1008 = vmatprep.subr.bf16.mxu0 0
      %1009 = vmatpush1.bf16.msra.mxu0 0
      %1010 = vmatprep.subr.bf16.mxu0 0
      %1011 = vmatpush1.bf16.msra.mxu0 0
      %1012 = vmatprep.subr.bf16.mxu0 0
      %1013 = vmatpush1.bf16.msra.mxu0 0
      %1014 = vmatprep.subr.bf16.mxu0 0
      %1015 = vmatpush1.bf16.msra.mxu0 0
      %1016 = vmatprep.subr.bf16.mxu0 0
      %1017 = vmatpush1.bf16.msra.mxu0 0
      %1018 = vmatprep.subr.bf16.mxu0 0
      %1019 = vmatpush1.bf16.msra.mxu0 0
      %1020 = vmatprep.subr.bf16.mxu0 0
      %1021 = vmatpush1.bf16.msra.mxu0 0
      %1022 = vmatprep.subr.bf16.mxu0 0
      %1023 = vmatpush1.bf16.msra.mxu0 0
      %1024 = vmatprep.subr.bf16.mxu0 0
      %1025 = vmatpush1.bf16.msra.mxu0 0
      %1026 = vmatprep.subr.bf16.mxu0 0
      %1027 = vmatpush1.bf16.msra.mxu0 0
      %1028 = vmatprep.subr.bf16.mxu0 0
      %1029 = vmatpush1.bf16.msra.mxu0 0
      %1030 = vmatprep.mubr.bf16.mxu0 0
      %1031 = vmatmul.mubr.bf16.gmra.mrb[0].mxu0 %v993
      %v1032 = vpop.f32.mrb[0].mxu0
      %v1033 = vadd.f32 0.0, %v1032
      %v1034 = vpop.f32.mrb[0].mxu0
      %v1035 = vpop.f32.mrb[0].mxu0
      %v1036 = vadd.f32 0.0, %v1035
      %v1037 = vpop.f32.mrb[0].mxu0
      %1038 = vmatprep.mubr.bf16.mxu0 0
      %1039 = vmatmul.mubr.bf16.gmra.mrb[0].mxu0 %v996
      %v1040 = vpop.f32.mrb[0].mxu0
      %v1041 = vadd.f32 0.0, %v1040
      %v1042 = vpop.f32.mrb[0].mxu0
      %v1043 = vpop.f32.mrb[0].mxu0
      %v1044 = vadd.f32 0.0, %v1043
      %v1045 = vpop.f32.mrb[0].mxu0
      %1046 = vdwg.mxu0
      %v1047 = vunpack.c.l.bf16 %v969
      %v1048 = vunpack.c.l.bf16 %v970
      %v1049 = vunpack.c.l.bf16 %v971
      %v1050 = vunpack.c.l.bf16 %v972
      %v1051 = vmul.f32 %v1033, %v1047
      %v1052 = vmul.f32 %v1036, %v1048
      %v1053 = vmul.f32 %v1041, %v1049
      %v1054 = vmul.f32 %v1044, %v1050
      %v1055 = vsel %vm705, %v965, 0.0
      %v1056 = vsel %vm705, %v966, 0.0
      %v1057 = vadd.f32 %v1055, %v1056
      %v1058 = vrot.slane %v1057, 4
      %v1059 = vadd.f32 %v1057, %v1058
      %v1060 = vrot.slane %v1059, 2
      %v1061 = vadd.f32 %v1059, %v1060
      %v1062 = vrot.slane %v1061, 1
      %v1063 = vadd.f32 %v1061, %v1062
      %v1064 = vmul.f32 %v955, %v1063
      %v1065 = vmul.f32 %v956, %v1063
      %v1066 = vpack.c.bf16 %v1065, %v1064
      %v1071 = vunpack.c.l.b16 %v969
      %v1072 = vunpack.c.l.b16 %v970
      %v1073 = vunpack.c.l.b16 %v971
      %v1074 = vunpack.c.l.b16 %v972
      %v1075 = vpack.c.b16 %v1072, %v1071
      %v1076 = vpack.c.b16 %v1074, %v1073
      %v1080 = vsel %vm705, %v1066, 0
      %1082 = vmatprep.subr.bf16.mxu0 0
      %1083 = vmatpush1.bf16.msra.mxu0 %v1075
      %1084 = vmatprep.subr.bf16.mxu0 0
      %1085 = vmatpush1.bf16.msra.mxu0 %v1076
      %1086 = vmatprep.subr.bf16.mxu0 0
      %1087 = vmatpush1.bf16.msra.mxu0 0
      %1088 = vmatprep.subr.bf16.mxu0 0
      %1089 = vmatpush1.bf16.msra.mxu0 0
      %1090 = vmatprep.subr.bf16.mxu0 0
      %1091 = vmatpush1.bf16.msra.mxu0 0
      %1092 = vmatprep.subr.bf16.mxu0 0
      %1093 = vmatpush1.bf16.msra.mxu0 0
      %1094 = vmatprep.subr.bf16.mxu0 0
      %1095 = vmatpush1.bf16.msra.mxu0 0
      %1096 = vmatprep.subr.bf16.mxu0 0
      %1097 = vmatpush1.bf16.msra.mxu0 0
      %1098 = vmatprep.subr.bf16.mxu0 0
      %1099 = vmatpush1.bf16.msra.mxu0 0
      %1100 = vmatprep.subr.bf16.mxu0 0
      %1101 = vmatpush1.bf16.msra.mxu0 0
      %1102 = vmatprep.subr.bf16.mxu0 0
      %1103 = vmatpush1.bf16.msra.mxu0 0
      %1104 = vmatprep.subr.bf16.mxu0 0
      %1105 = vmatpush1.bf16.msra.mxu0 0
      %1106 = vmatprep.subr.bf16.mxu0 0
      %1107 = vmatpush1.bf16.msra.mxu0 0
      %1108 = vmatprep.subr.bf16.mxu0 0
      %1109 = vmatpush1.bf16.msra.mxu0 0
      %1110 = vmatprep.subr.bf16.mxu0 0
      %1111 = vmatpush1.bf16.msra.mxu0 0
      %1112 = vmatprep.subr.bf16.mxu0 0
      %1113 = vmatpush1.bf16.msra.mxu0 0
      %1114 = vmatprep.mubr.bf16.mxu0 0
      %1115 = vmatmul.mubr.bf16.gmra.mrb[0].mxu0 %v1080
      %v1116 = vpop.f32.mrb[0].mxu0
      %v1117 = vadd.f32 1e-06, %v1116
      %v1118 = vpop.f32.mrb[0].mxu0
      %v1119 = vpop.f32.mrb[0].mxu0
      %v1120 = vadd.f32 1e-06, %v1119
      %v1121 = vpop.f32.mrb[0].mxu0
      %1122 = vdwg.mxu0
      %v1123 = vrcp.pop %v1117
      %v1124 = vrcp.pop %v1120
      %v1125 = vpack.c.bf16 %v956, %v955
      %v1126 = vpack.c.bf16 %v1052, %v1051
      %v1127 = vpack.c.bf16 %v1054, %v1053
      %v1129 = vsel %vm705, %v1125, 0
      %1131 = vmatprep.subr.bf16.mxu0 0
      %1132 = vmatpush1.bf16.msra.mxu0 %v1126
      %1133 = vmatprep.subr.bf16.mxu0 0
      %1134 = vmatpush1.bf16.msra.mxu0 %v1127
      %1135 = vmatprep.subr.bf16.mxu0 0
      %1136 = vmatpush1.bf16.msra.mxu0 0
      %1137 = vmatprep.subr.bf16.mxu0 0
      %1138 = vmatpush1.bf16.msra.mxu0 0
      %1139 = vmatprep.subr.bf16.mxu0 0
      %1140 = vmatpush1.bf16.msra.mxu0 0
      %1141 = vmatprep.subr.bf16.mxu0 0
      %1142 = vmatpush1.bf16.msra.mxu0 0
      %1143 = vmatprep.subr.bf16.mxu0 0
      %1144 = vmatpush1.bf16.msra.mxu0 0
      %1145 = vmatprep.subr.bf16.mxu0 0
      %1146 = vmatpush1.bf16.msra.mxu0 0
      %1147 = vmatprep.subr.bf16.mxu0 0
      %1148 = vmatpush1.bf16.msra.mxu0 0
      %1149 = vmatprep.subr.bf16.mxu0 0
      %1150 = vmatpush1.bf16.msra.mxu0 0
      %1151 = vmatprep.subr.bf16.mxu0 0
      %1152 = vmatpush1.bf16.msra.mxu0 0
      %1153 = vmatprep.subr.bf16.mxu0 0
      %1154 = vmatpush1.bf16.msra.mxu0 0
      %1155 = vmatprep.subr.bf16.mxu0 0
      %1156 = vmatpush1.bf16.msra.mxu0 0
      %1157 = vmatprep.subr.bf16.mxu0 0
      %1158 = vmatpush1.bf16.msra.mxu0 0
      %1159 = vmatprep.subr.bf16.mxu0 0
      %1160 = vmatpush1.bf16.msra.mxu0 0
      %1161 = vmatprep.subr.bf16.mxu0 0
      %1162 = vmatpush1.bf16.msra.mxu0 0
      %1163 = vmatprep.mubr.bf16.mxu0 0
      %1164 = vmatmul.mubr.bf16.gmra.mrb[0].mxu0 %v1129
      %v1165 = vpop.f32.mrb[0].mxu0
      %v1166 = vadd.f32 0.0, %v1165
      %v1167 = vpop.f32.mrb[0].mxu0
      %v1168 = vpop.f32.mrb[0].mxu0
      %v1169 = vadd.f32 0.0, %v1168
      %v1170 = vpop.f32.mrb[0].mxu0
      %1171 = vdwg.mxu0
      %v1172 = vmul.f32 %v1166, %v1123
      %v1173 = vmul.f32 %v1169, %v1124
      %v1174 = vmul.f32 %v1172, 16.0
      %v1175 = vmul.f32 %v1173, 16.0
      %v1176 = vpack.c.bf16 %v1175, %v1174
      %v1177 = vld [vmem:[%s10] sm:$0xf]
      %v1178 = vld [vmem:[%s10 + $0x4] sm:$0xf]
      %v1179 = vld [vmem:[%s10 + $0x8] sm:$0xf]
      %v1180 = vld [vmem:[%s10 + $0xc] sm:$0xf]
      %v1181 = vld [vmem:[%s11] sm:$0x1]
      %v1183 = vlaneseq
      %v1184 = vshrl.u32 %v1183, 7
      %v1185 = vsub.s32 0, %v1184
      %v1186 = vrot.slane %v1181, %v1185
      %v1192 = vunpack.c.l.b16 %v1177
      %v1193 = vunpack.c.l.b16 %v1178
      %v1194 = vunpack.c.l.b16 %v1179
      %v1195 = vunpack.c.l.b16 %v1180
      %v1196 = vpack.c.b16 %v1193, %v1192
      %v1197 = vpack.c.b16 %v1195, %v1194
      %v1201 = vsel %vm705, %v1176, 0
      %1203 = vmatprep.subr.bf16.mxu0 0
      %1204 = vmatpush1.bf16.msra.mxu0 %v1196
      %1205 = vmatprep.subr.bf16.mxu0 0
      %1206 = vmatpush1.bf16.msra.mxu0 %v1197
      %1207 = vmatprep.subr.bf16.mxu0 0
      %1208 = vmatpush1.bf16.msra.mxu0 0
      %1209 = vmatprep.subr.bf16.mxu0 0
      %1210 = vmatpush1.bf16.msra.mxu0 0
      %1211 = vmatprep.subr.bf16.mxu0 0
      %1212 = vmatpush1.bf16.msra.mxu0 0
      %1213 = vmatprep.subr.bf16.mxu0 0
      %1214 = vmatpush1.bf16.msra.mxu0 0
      %1215 = vmatprep.subr.bf16.mxu0 0
      %1216 = vmatpush1.bf16.msra.mxu0 0
      %1217 = vmatprep.subr.bf16.mxu0 0
      %1218 = vmatpush1.bf16.msra.mxu0 0
      %1219 = vmatprep.subr.bf16.mxu0 0
      %1220 = vmatpush1.bf16.msra.mxu0 0
      %1221 = vmatprep.subr.bf16.mxu0 0
      %1222 = vmatpush1.bf16.msra.mxu0 0
      %1223 = vmatprep.subr.bf16.mxu0 0
      %1224 = vmatpush1.bf16.msra.mxu0 0
      %1225 = vmatprep.subr.bf16.mxu0 0
      %1226 = vmatpush1.bf16.msra.mxu0 0
      %1227 = vmatprep.subr.bf16.mxu0 0
      %1228 = vmatpush1.bf16.msra.mxu0 0
      %1229 = vmatprep.subr.bf16.mxu0 0
      %1230 = vmatpush1.bf16.msra.mxu0 0
      %1231 = vmatprep.subr.bf16.mxu0 0
      %1232 = vmatpush1.bf16.msra.mxu0 0
      %1233 = vmatprep.subr.bf16.mxu0 0
      %1234 = vmatpush1.bf16.msra.mxu0 0
      %1235 = vmatprep.mubr.bf16.mxu0 0
      %1236 = vmatmul.mubr.bf16.gmra.mrb[0].mxu0 %v1201
      %v1237 = vpop.f32.mrb[0].mxu0
      %v1238 = vadd.f32 %v1186, %v1237
      %v1239 = vpop.f32.mrb[0].mxu0
      %v1240 = vpop.f32.mrb[0].mxu0
      %v1241 = vadd.f32 %v1186, %v1240
      %v1242 = vpop.f32.mrb[0].mxu0
      %1243 = vdwg.mxu0
      %v1244 = vadd.f32 %v699, %v1238
      %v1245 = vadd.f32 %v702, %v1241
      %v1246 = vsel %vm705, %v1244, 0.0
      %1247 = vadd.xlane.f32.xlu0 %v1246
      %v1248 = vpop.xlane.xlu0 %1247
      %v1249 = vsel %vm705, %v1245, 0.0
      %1250 = vadd.xlane.f32.xlu0 %v1249
      %v1251 = vpop.xlane.xlu0 %1250
      %v1252 = vmul.f32 %v1248, %v712
      %v1253 = vmul.f32 %v1251, %v712
      %v1254 = vsub.f32 %v1244, %v1252
      %v1255 = vsub.f32 %v1245, %v1253
      %v1256 = vmul.f32 %v1254, %v1254
      %v1257 = vmul.f32 %v1255, %v1255
      %v1258 = vsel %vm705, %v1256, 0.0
      %1259 = vadd.xlane.f32.xlu0 %v1258
      %v1260 = vpop.xlane.xlu0 %1259
      %v1261 = vsel %vm705, %v1257, 0.0
      %1262 = vadd.xlane.f32.xlu0 %v1261
      %v1263 = vpop.xlane.xlu0 %1262
      %v1264 = vmul.f32 %v1260, %v712
      %v1265 = vmul.f32 %v1263, %v712
      %v1266 = vadd.f32 %v1264, 1e-05
      %v1267 = vadd.f32 %v1265, 1e-05
      %v1268 = vrsqrt.pop %v1266
      %v1269 = vrsqrt.pop %v1267
      %v1270 = vmul.f32 %v1254, %v1268
      %v1271 = vmul.f32 %v1255, %v1269
      %v1272 = vld [vmem:[%s13] sm:$0x1]
      %v1274 = vlaneseq
      %v1275 = vshrl.u32 %v1274, 7
      %v1276 = vsub.s32 0, %v1275
      %v1277 = vrot.slane %v1272, %v1276
      %v1279 = vmul.f32 %v1270, %v1277
      %v1280 = vmul.f32 %v1271, %v1277
      %v1281 = vld [vmem:[%s14] sm:$0x1]
      %v1283 = vlaneseq
      %v1284 = vshrl.u32 %v1283, 7
      %v1285 = vsub.s32 0, %v1284
      %v1286 = vrot.slane %v1281, %v1285
      %v1288 = vadd.f32 %v1279, %v1286
      %v1289 = vadd.f32 %v1280, %v1286
      %v1290 = vpack.c.bf16 %v1289, %v1288
      %v1291 = vld [vmem:[%s15] sm:$0xf]
      %v1292 = vld [vmem:[%s15 + $0x4] sm:$0xf]
      %v1293 = vld [vmem:[%s15 + $0x8] sm:$0xf]
      %v1294 = vld [vmem:[%s15 + $0xc] sm:$0xf]
      %v1295 = vld [vmem:[%s16] sm:$0x1]
      %v1297 = vlaneseq
      %v1298 = vshrl.u32 %v1297, 7
      %v1299 = vsub.s32 0, %v1298
      %v1300 = vrot.slane %v1295, %v1299
      %v1306 = vunpack.c.l.b16 %v1291
      %v1307 = vunpack.c.l.b16 %v1292
      %v1308 = vunpack.c.l.b16 %v1293
      %v1309 = vunpack.c.l.b16 %v1294
      %v1310 = vpack.c.b16 %v1307, %v1306
      %v1311 = vpack.c.b16 %v1309, %v1308
      %v1315 = vsel %vm705, %v1290, 0
      %1317 = vmatprep.subr.bf16.mxu0 0
      %1318 = vmatpush1.bf16.msra.mxu0 %v1310
      %1319 = vmatprep.subr.bf16.mxu0 0
      %1320 = vmatpush1.bf16.msra.mxu0 %v1311
      %1321 = vmatprep.subr.bf16.mxu0 0
      %1322 = vmatpush1.bf16.msra.mxu0 0
      %1323 = vmatprep.subr.bf16.mxu0 0
      %1324 = vmatpush1.bf16.msra.mxu0 0
      %1325 = vmatprep.subr.bf16.mxu0 0
      %1326 = vmatpush1.bf16.msra.mxu0 0
      %1327 = vmatprep.subr.bf16.mxu0 0
      %1328 = vmatpush1.bf16.msra.mxu0 0
      %1329 = vmatprep.subr.bf16.mxu0 0
      %1330 = vmatpush1.bf16.msra.mxu0 0
      %1331 = vmatprep.subr.bf16.mxu0 0
      %1332 = vmatpush1.bf16.msra.mxu0 0
      %1333 = vmatprep.subr.bf16.mxu0 0
      %1334 = vmatpush1.bf16.msra.mxu0 0
      %1335 = vmatprep.subr.bf16.mxu0 0
      %1336 = vmatpush1.bf16.msra.mxu0 0
      %1337 = vmatprep.subr.bf16.mxu0 0
      %1338 = vmatpush1.bf16.msra.mxu0 0
      %1339 = vmatprep.subr.bf16.mxu0 0
      %1340 = vmatpush1.bf16.msra.mxu0 0
      %1341 = vmatprep.subr.bf16.mxu0 0
      %1342 = vmatpush1.bf16.msra.mxu0 0
      %1343 = vmatprep.subr.bf16.mxu0 0
      %1344 = vmatpush1.bf16.msra.mxu0 0
      %1345 = vmatprep.subr.bf16.mxu0 0
      %1346 = vmatpush1.bf16.msra.mxu0 0
      %1347 = vmatprep.subr.bf16.mxu0 0
      %1348 = vmatpush1.bf16.msra.mxu0 0
      %1349 = vmatprep.mubr.bf16.mxu0 0
      %1350 = vmatmul.mubr.bf16.gmra.mrb[0].mxu0 %v1315
      %v1351 = vpop.f32.mrb[0].mxu0
      %v1352 = vadd.f32 %v1300, %v1351
      %v1353 = vpop.f32.mrb[0].mxu0
      %v1354 = vpop.f32.mrb[0].mxu0
      %v1355 = vadd.f32 %v1300, %v1354
      %v1356 = vpop.f32.mrb[0].mxu0
      %1357 = vdwg.mxu0
      %v1358 = vmax.f32 %v1352, 0.0
      %v1359 = vmax.f32 %v1355, 0.0
      %v1360 = vpack.c.bf16 %v1359, %v1358
      %v1361 = vld [vmem:[%s17] sm:$0xf]
      %v1362 = vld [vmem:[%s17 + $0x4] sm:$0xf]
      %v1363 = vld [vmem:[%s17 + $0x8] sm:$0xf]
      %v1364 = vld [vmem:[%s17 + $0xc] sm:$0xf]
      %v1365 = vld [vmem:[%s17 + $0x10] sm:$0xf]
      %v1366 = vld [vmem:[%s17 + $0x14] sm:$0xf]
      %v1367 = vld [vmem:[%s17 + $0x18] sm:$0xf]
      %v1368 = vld [vmem:[%s17 + $0x1c] sm:$0xf]
      %v1369 = vld [vmem:[%s17 + $0x20] sm:$0xf]
      %v1370 = vld [vmem:[%s17 + $0x24] sm:$0xf]
      %v1371 = vld [vmem:[%s17 + $0x28] sm:$0xf]
      %v1372 = vld [vmem:[%s17 + $0x2c] sm:$0xf]
      %v1373 = vld [vmem:[%s17 + $0x30] sm:$0xf]
      %v1374 = vld [vmem:[%s17 + $0x34] sm:$0xf]
      %v1375 = vld [vmem:[%s17 + $0x38] sm:$0xf]
      %v1376 = vld [vmem:[%s17 + $0x3c] sm:$0xf]
      %v1377 = vld [vmem:[%s18] sm:$0x1]
      %v1379 = vlaneseq
      %v1380 = vshrl.u32 %v1379, 7
      %v1381 = vsub.s32 0, %v1380
      %v1382 = vrot.slane %v1377, %v1381
      %v1400 = vunpack.c.l.b16 %v1361
      %v1401 = vunpack.c.l.b16 %v1362
      %v1402 = vunpack.c.l.b16 %v1363
      %v1403 = vunpack.c.l.b16 %v1364
      %v1404 = vunpack.c.l.b16 %v1365
      %v1405 = vunpack.c.l.b16 %v1366
      %v1406 = vunpack.c.l.b16 %v1367
      %v1407 = vunpack.c.l.b16 %v1368
      %v1408 = vunpack.c.l.b16 %v1369
      %v1409 = vunpack.c.l.b16 %v1370
      %v1410 = vunpack.c.l.b16 %v1371
      %v1411 = vunpack.c.l.b16 %v1372
      %v1412 = vunpack.c.l.b16 %v1373
      %v1413 = vunpack.c.l.b16 %v1374
      %v1414 = vunpack.c.l.b16 %v1375
      %v1415 = vunpack.c.l.b16 %v1376
      %v1416 = vpack.c.b16 %v1401, %v1400
      %v1417 = vpack.c.b16 %v1403, %v1402
      %v1418 = vpack.c.b16 %v1405, %v1404
      %v1419 = vpack.c.b16 %v1407, %v1406
      %v1420 = vpack.c.b16 %v1409, %v1408
      %v1421 = vpack.c.b16 %v1411, %v1410
      %v1422 = vpack.c.b16 %v1413, %v1412
      %v1423 = vpack.c.b16 %v1415, %v1414
      %1432 = vmatprep.subr.bf16.mxu0 0
      %1433 = vmatpush1.bf16.msra.mxu0 %v1416
      %1434 = vmatprep.subr.bf16.mxu0 0
      %1435 = vmatpush1.bf16.msra.mxu0 %v1417
      %1436 = vmatprep.subr.bf16.mxu0 0
      %1437 = vmatpush1.bf16.msra.mxu0 %v1418
      %1438 = vmatprep.subr.bf16.mxu0 0
      %1439 = vmatpush1.bf16.msra.mxu0 %v1419
      %1440 = vmatprep.subr.bf16.mxu0 0
      %1441 = vmatpush1.bf16.msra.mxu0 %v1420
      %1442 = vmatprep.subr.bf16.mxu0 0
      %1443 = vmatpush1.bf16.msra.mxu0 %v1421
      %1444 = vmatprep.subr.bf16.mxu0 0
      %1445 = vmatpush1.bf16.msra.mxu0 %v1422
      %1446 = vmatprep.subr.bf16.mxu0 0
      %1447 = vmatpush1.bf16.msra.mxu0 %v1423
      %1448 = vmatprep.subr.bf16.mxu0 0
      %1449 = vmatpush1.bf16.msra.mxu0 0
      %1450 = vmatprep.subr.bf16.mxu0 0
      %1451 = vmatpush1.bf16.msra.mxu0 0
      %1452 = vmatprep.subr.bf16.mxu0 0
      %1453 = vmatpush1.bf16.msra.mxu0 0
      %1454 = vmatprep.subr.bf16.mxu0 0
      %1455 = vmatpush1.bf16.msra.mxu0 0
      %1456 = vmatprep.subr.bf16.mxu0 0
      %1457 = vmatpush1.bf16.msra.mxu0 0
      %1458 = vmatprep.subr.bf16.mxu0 0
      %1459 = vmatpush1.bf16.msra.mxu0 0
      %1460 = vmatprep.subr.bf16.mxu0 0
      %1461 = vmatpush1.bf16.msra.mxu0 0
      %1462 = vmatprep.subr.bf16.mxu0 0
      %1463 = vmatpush1.bf16.msra.mxu0 0
      %1464 = vmatprep.mubr.bf16.mxu0 0
      %1465 = vmatmul.mubr.bf16.gmra.mrb[0].mxu0 %v1360
      %v1466 = vpop.f32.mrb[0].mxu0
      %v1467 = vadd.f32 %v1382, %v1466
      %v1468 = vpop.f32.mrb[0].mxu0
      %v1469 = vpop.f32.mrb[0].mxu0
      %v1470 = vadd.f32 %v1382, %v1469
      %v1471 = vpop.f32.mrb[0].mxu0
      %1472 = vdwg.mxu0
      %v1473 = vadd.f32 %v1244, %v1467
      %v1474 = vadd.f32 %v1245, %v1470
      %1475 = vst.msk [vmem:[%s602] sm:$0xff] %vm705, %v1473
      %1476 = vst.msk [vmem:[%s602 + $0x8] sm:$0xff] %vm705, %v1474
      %p1477 = scmp.lt.s32.totalorder %s30, 1
      %s1478 = scalar_select %p1477, %s30, 1
      %s1479 = smul.addr %s1478, 2
      %s1480 = smul.addr %s1479, 8
      %s1481 = scalar_lea.vmem %s19, %s1480
      // Predicated region
      $region97: #{attention_block_forward.2} parent=95 // pred_check
        %p1482 = pneg %p452
      $region98: #{attention_block_forward.2} parent=95 // pred_check_branch
        %1484 = sbr.rel (%p1482) target = $region100
      $region99: #{attention_block_forward.2} parent=95 // pred_region
        _
      $region100: #{attention_block_forward.2} parent=95 // pred_fallthru
        _
    $region96: #{attention_block_forward.2} parent=5 // pred_fallthru
      _
    %p1485 = scmp.le.s32.totalorder 2, %s25
    // Predicated region
    $region101: #{attention_block_forward.2} parent=5 // pred_check
      %p1486 = pneg %p1485
    $region102: #{attention_block_forward.2} parent=5 // pred_check_branch
      %1488 = sbr.rel (%p1486) target = $region104
    $region103: #{attention_block_forward.2} parent=5 // pred_region
      %s1489 = ssub.s32 %s25, 2
      // Predicated region
      $region105: #{attention_block_forward.2} parent=103 // pred_check
        %p1490 = pneg %p458
      $region106: #{attention_block_forward.2} parent=103 // pred_check_branch
        %1492 = sbr.rel (%p1490) target = $region108
      $region107: #{attention_block_forward.2} parent=103 // pred_region
        %p1493 = scmp.lt.s32.totalorder %s31, 1
        %s1494 = scalar_select %p1493, %s31, 1
        %s1495 = smul.addr %s1494, 2
        %s1496 = smul.addr %s1495, 8
        %s1497 = scalar_lea.vmem %s19, %s1496
      $region108: #{attention_block_forward.2} parent=103 // pred_fallthru
        _
    $region104: #{attention_block_forward.2} parent=5 // pred_fallthru
      _
  $region6: #{attention_block_forward.2} parent=0 // loop_footer
    %s29 = sadd.s32 1, %s25
  $region7: #{attention_block_forward.2} parent=0 // loop_footer_branch
    %24 = sbr.rel target = $region3
  $region8: #{attention_block_forward.2} parent=0 // loop_exit
    _

// kernel: attention_block_forward.3
$region0: #{attention_block_forward.3}
  #allocation0 [shape = 'u32[]', space=smem, size = 0x4, offset = 0x4, fixed_abs, tag = 'smem constant byte address 0x4 - core index']
  #allocation1 [shape = 'u32[144,128]{1,0:T(1,128)}', space=vmem, size = 0x12000, scoped, tag = 'internal scratch']
  %s0 = inlined_call_operand.vmem [shape: f32[2,16,16,32], index: 0, kind: input, shape index: {}]
  %s1 = inlined_call_operand.vmem [shape: f32[2,16,32], index: 1, kind: input, shape index: {}]
  %s2 = inlined_call_operand.vmem [shape: bf16[256,16], index: 2, kind: input, shape index: {}]
  %s3 = inlined_call_operand.vmem [shape: f32[9,1,32], index: 3, kind: input, shape index: {}]
  %s4 = inlined_call_operand.vmem [shape: f32[1,32], index: 4, kind: input, shape index: {}]
  %s5 = inlined_call_operand.vmem [shape: bf16[32,16], index: 5, kind: input, shape index: {}]
  %s6 = inlined_call_operand.vmem [shape: f32[1,16], index: 6, kind: input, shape index: {}]
  %s7 = inlined_call_operand.vmem [shape: f32[2,16,16,16], index: 7, kind: output, shape index: {}]
  %s8 = sld [smem:[#allocation0]]
  $region61: #{attention_block_forward.3} parent=0
    _
  %s10 = ssub.s32 1, %s8
  %s11 = scalar_select 0, %s10, %s8
  loop: start=0, step=1, limit=4
  $region2: #{attention_block_forward.3} parent=0 // loop_pre_header
    _
  $region3: #{attention_block_forward.3} parent=0 // loop_header
    %s13 = sphi 0, %s17
    %p14 = scmp.ge.s32.totalorder %s13, 4
    %s23 = sphi 0, %s25
    %s26 = sphi 0, %s23
    %s27 = sphi 0, %s26
    %s43 = sphi 0, %s27
    %s49 = sphi 0, %s51
    %s52 = sphi 0, %s49
    %s53 = sphi 0, %s52
    %s69 = sphi 0, %s53
    %s73 = sphi 0, %s73
    %s75 = sphi 0, %s73
    %s76 = sphi 0, %s75
    %s90 = sphi 0, %s76
    %s94 = sphi 0, %s94
    %s96 = sphi 0, %s94
    %s97 = sphi 0, %s96
    %s111 = sphi 0, %s97
    %s115 = sphi 0, %s115
    %s117 = sphi 0, %s115
    %s118 = sphi 0, %s117
    %s132 = sphi 0, %s118
    %s136 = sphi 0, %s136
    %s138 = sphi 0, %s136
    %s139 = sphi 0, %s138
    %s153 = sphi 0, %s139
    %s157 = sphi 0, %s157
    %s159 = sphi 0, %s157
    %s160 = sphi 0, %s159
    %s174 = sphi 0, %s160
    %s180 = sphi 0, %s182
    %s183 = sphi 0, %s180
    %s184 = sphi 0, %s183
    %s200 = sphi 0, %s184
  $region4: #{attention_block_forward.3} parent=0 // loop_header_branch
    %16 = sbr.rel (%p14) target = $region8
  $region5: #{attention_block_forward.3} parent=0 // loop_body
    %s18 = ssub.s32 %s13, 1
    %s19 = ssub.s32 %s13, 2
    %s20 = sadd.s32 %s13, 1
    %s21 = ssub.s32 %s13, %s20
    %p22 = scmp.eq.s32.totalorder %s21, 0
    %s24 = sadd.s32 %s23, 1
    %s25 = scalar_select %p22, %s23, %s24
    %p28 = pneg %p22
    %p29 = scmp.eq.s32.totalorder %s13, 1
    %p30 = por %p28, %p29
    %p31 = scmp.ne.s32.totalorder %s23, %s26
    %p32 = scmp.eq.s32.totalorder %s13, 0
    %p33 = por %p31, %p32
    %p34 = scmp.ne.s32.totalorder %s23, %s26
    %p35 = scmp.eq.s32.totalorder %s18, 1
    %p36 = por %p34, %p35
    %p37 = scmp.ne.s32.totalorder %s26, %s27
    %p38 = scmp.eq.s32.totalorder %s18, 0
    %p39 = por %p37, %p38
    %p40 = scmp.ne.s32.totalorder %s26, %s27
    %p41 = scmp.eq.s32.totalorder %s19, 1
    %p42 = por %p40, %p41
    %p44 = scmp.ne.s32.totalorder %s27, %s43
    %p45 = scmp.eq.s32.totalorder %s19, 0
    %p46 = por %p44, %p45
    %s47 = ssub.s32 %s13, %s20
    %p48 = scmp.eq.s32.totalorder %s47, 0
    %s50 = sadd.s32 %s49, 1
    %s51 = scalar_select %p48, %s49, %s50
    %p54 = pneg %p48
    %p55 = scmp.eq.s32.totalorder %s13, 1
    %p56 = por %p54, %p55
    %p57 = scmp.ne.s32.totalorder %s49, %s52
    %p58 = scmp.eq.s32.totalorder %s13, 0
    %p59 = por %p57, %p58
    %p60 = scmp.ne.s32.totalorder %s49, %s52
    %p61 = scmp.eq.s32.totalorder %s18, 1
    %p62 = por %p60, %p61
    %p63 = scmp.ne.s32.totalorder %s52, %s53
    %p64 = scmp.eq.s32.totalorder %s18, 0
    %p65 = por %p63, %p64
    %p66 = scmp.ne.s32.totalorder %s52, %s53
    %p67 = scmp.eq.s32.totalorder %s19, 1
    %p68 = por %p66, %p67
    %p70 = scmp.ne.s32.totalorder %s53, %s69
    %p71 = scmp.eq.s32.totalorder %s19, 0
    %p72 = por %p70, %p71
    %s74 = sadd.s32 %s73, 1
    %p77 = scmp.eq.s32.totalorder %s13, 1
    %p78 = scmp.ne.s32.totalorder %s73, %s75
    %p79 = scmp.eq.s32.totalorder %s13, 0
    %p80 = por %p78, %p79
    %p81 = scmp.ne.s32.totalorder %s73, %s75
    %p82 = scmp.eq.s32.totalorder %s18, 1
    %p83 = por %p81, %p82
    %p84 = scmp.ne.s32.totalorder %s75, %s76
    %p85 = scmp.eq.s32.totalorder %s18, 0
    %p86 = por %p84, %p85
    %p87 = scmp.ne.s32.totalorder %s75, %s76
    %p88 = scmp.eq.s32.totalorder %s19, 1
    %p89 = por %p87, %p88
    %p91 = scmp.ne.s32.totalorder %s76, %s90
    %p92 = scmp.eq.s32.totalorder %s19, 0
    %p93 = por %p91, %p92
    %s95 = sadd.s32 %s94, 1
    %p98 = scmp.eq.s32.totalorder %s13, 1
    %p99 = scmp.ne.s32.totalorder %s94, %s96
    %p100 = scmp.eq.s32.totalorder %s13, 0
    %p101 = por %p99, %p100
    %p102 = scmp.ne.s32.totalorder %s94, %s96
    %p103 = scmp.eq.s32.totalorder %s18, 1
    %p104 = por %p102, %p103
    %p105 = scmp.ne.s32.totalorder %s96, %s97
    %p106 = scmp.eq.s32.totalorder %s18, 0
    %p107 = por %p105, %p106
    %p108 = scmp.ne.s32.totalorder %s96, %s97
    %p109 = scmp.eq.s32.totalorder %s19, 1
    %p110 = por %p108, %p109
    %p112 = scmp.ne.s32.totalorder %s97, %s111
    %p113 = scmp.eq.s32.totalorder %s19, 0
    %p114 = por %p112, %p113
    %s116 = sadd.s32 %s115, 1
    %p119 = scmp.eq.s32.totalorder %s13, 1
    %p120 = scmp.ne.s32.totalorder %s115, %s117
    %p121 = scmp.eq.s32.totalorder %s13, 0
    %p122 = por %p120, %p121
    %p123 = scmp.ne.s32.totalorder %s115, %s117
    %p124 = scmp.eq.s32.totalorder %s18, 1
    %p125 = por %p123, %p124
    %p126 = scmp.ne.s32.totalorder %s117, %s118
    %p127 = scmp.eq.s32.totalorder %s18, 0
    %p128 = por %p126, %p127
    %p129 = scmp.ne.s32.totalorder %s117, %s118
    %p130 = scmp.eq.s32.totalorder %s19, 1
    %p131 = por %p129, %p130
    %p133 = scmp.ne.s32.totalorder %s118, %s132
    %p134 = scmp.eq.s32.totalorder %s19, 0
    %p135 = por %p133, %p134
    %s137 = sadd.s32 %s136, 1
    %p140 = scmp.eq.s32.totalorder %s13, 1
    %p141 = scmp.ne.s32.totalorder %s136, %s138
    %p142 = scmp.eq.s32.totalorder %s13, 0
    %p143 = por %p141, %p142
    %p144 = scmp.ne.s32.totalorder %s136, %s138
    %p145 = scmp.eq.s32.totalorder %s18, 1
    %p146 = por %p144, %p145
    %p147 = scmp.ne.s32.totalorder %s138, %s139
    %p148 = scmp.eq.s32.totalorder %s18, 0
    %p149 = por %p147, %p148
    %p150 = scmp.ne.s32.totalorder %s138, %s139
    %p151 = scmp.eq.s32.totalorder %s19, 1
    %p152 = por %p150, %p151
    %p154 = scmp.ne.s32.totalorder %s139, %s153
    %p155 = scmp.eq.s32.totalorder %s19, 0
    %p156 = por %p154, %p155
    %s158 = sadd.s32 %s157, 1
    %p161 = scmp.eq.s32.totalorder %s13, 1
    %p162 = scmp.ne.s32.totalorder %s157, %s159
    %p163 = scmp.eq.s32.totalorder %s13, 0
    %p164 = por %p162, %p163
    %p165 = scmp.ne.s32.totalorder %s157, %s159
    %p166 = scmp.eq.s32.totalorder %s18, 1
    %p167 = por %p165, %p166
    %p168 = scmp.ne.s32.totalorder %s159, %s160
    %p169 = scmp.eq.s32.totalorder %s18, 0
    %p170 = por %p168, %p169
    %p171 = scmp.ne.s32.totalorder %s159, %s160
    %p172 = scmp.eq.s32.totalorder %s19, 1
    %p173 = por %p171, %p172
    %p175 = scmp.ne.s32.totalorder %s160, %s174
    %p176 = scmp.eq.s32.totalorder %s19, 0
    %p177 = por %p175, %p176
    %s178 = ssub.s32 %s13, %s20
    %p179 = scmp.eq.s32.totalorder %s178, 0
    %s181 = sadd.s32 %s180, 1
    %s182 = scalar_select %p179, %s180, %s181
    %p185 = pneg %p179
    %p186 = scmp.eq.s32.totalorder %s13, 1
    %p187 = por %p185, %p186
    %p188 = scmp.ne.s32.totalorder %s180, %s183
    %p189 = scmp.eq.s32.totalorder %s13, 0
    %p190 = por %p188, %p189
    %p191 = scmp.ne.s32.totalorder %s180, %s183
    %p192 = scmp.eq.s32.totalorder %s18, 1
    %p193 = por %p191, %p192
    %p194 = scmp.ne.s32.totalorder %s183, %s184
    %p195 = scmp.eq.s32.totalorder %s18, 0
    %p196 = por %p194, %p195
    %p197 = scmp.ne.s32.totalorder %s183, %s184
    %p198 = scmp.eq.s32.totalorder %s19, 1
    %p199 = por %p197, %p198
    %p201 = scmp.ne.s32.totalorder %s184, %s200
    %p202 = scmp.eq.s32.totalorder %s19, 0
    %p203 = por %p201, %p202
    %p204 = scmp.le.s32.totalorder 1, %s13
    %p205 = scmp.lt.s32.totalorder %s13, 3
    %p206 = pnand %p204, %p205
    %p207 = pneg %p206
    // Predicated region
    $region9: #{attention_block_forward.3} parent=5 // pred_check
      _
    $region10: #{attention_block_forward.3} parent=5 // pred_check_branch
      %209 = sbr.rel (%p206) target = $region12
    $region11: #{attention_block_forward.3} parent=5 // pred_region
      %s210 = ssub.s32 %s13, 1
      // Predicated region
      $region13: #{attention_block_forward.3} parent=11 // pred_check
        %p211 = pneg %p86
      $region14: #{attention_block_forward.3} parent=11 // pred_check_branch
        %213 = sbr.rel (%p211) target = $region16
      $region15: #{attention_block_forward.3} parent=11 // pred_region
        _
      $region16: #{attention_block_forward.3} parent=11 // pred_fallthru
        _
      // Predicated region
      $region17: #{attention_block_forward.3} parent=11 // pred_check
        %p214 = pneg %p107
      $region18: #{attention_block_forward.3} parent=11 // pred_check_branch
        %216 = sbr.rel (%p214) target = $region20
      $region19: #{attention_block_forward.3} parent=11 // pred_region
        _
      $region20: #{attention_block_forward.3} parent=11 // pred_fallthru
        _
      // Predicated region
      $region21: #{attention_block_forward.3} parent=11 // pred_check
        %p217 = pneg %p128
      $region22: #{attention_block_forward.3} parent=11 // pred_check_branch
        %219 = sbr.rel (%p217) target = $region24
      $region23: #{attention_block_forward.3} parent=11 // pred_region
        _
      $region24: #{attention_block_forward.3} parent=11 // pred_fallthru
        _
      // Predicated region
      $region25: #{attention_block_forward.3} parent=11 // pred_check
        %p220 = pneg %p149
      $region26: #{attention_block_forward.3} parent=11 // pred_check_branch
        %222 = sbr.rel (%p220) target = $region28
      $region27: #{attention_block_forward.3} parent=11 // pred_region
        _
      $region28: #{attention_block_forward.3} parent=11 // pred_fallthru
        _
      // Predicated region
      $region29: #{attention_block_forward.3} parent=11 // pred_check
        %p223 = pneg %p170
      $region30: #{attention_block_forward.3} parent=11 // pred_check_branch
        %225 = sbr.rel (%p223) target = $region32
      $region31: #{attention_block_forward.3} parent=11 // pred_region
        _
      $region32: #{attention_block_forward.3} parent=11 // pred_fallthru
        _
    $region12: #{attention_block_forward.3} parent=5 // pred_fallthru
      _
    %p226 = scmp.lt.s32.totalorder %s13, 2
    // Predicated region
    $region33: #{attention_block_forward.3} parent=5 // pred_check
      %p227 = pneg %p226
    $region34: #{attention_block_forward.3} parent=5 // pred_check_branch
      %229 = sbr.rel (%p227) target = $region36
    $region35: #{attention_block_forward.3} parent=5 // pred_region
      // Predicated region
      $region37: #{attention_block_forward.3} parent=35 // pred_check
        %p230 = pneg %p33
      $region38: #{attention_block_forward.3} parent=35 // pred_check_branch
        %232 = sbr.rel (%p230) target = $region40
      $region39: #{attention_block_forward.3} parent=35 // pred_region
        %p233 = scmp.lt.s32.totalorder %s13, 1
        %s234 = scalar_select %p233, %s13, 1
        %s235 = smul.addr %s234, 32
        %s236 = smul.addr %s235, 8
        %s237 = scalar_lea.vmem %s0, %s236
      $region40: #{attention_block_forward.3} parent=35 // pred_fallthru
        _
      // Predicated region
      $region41: #{attention_block_forward.3} parent=35 // pred_check
        %p238 = pneg %p59
      $region42: #{attention_block_forward.3} parent=35 // pred_check_branch
        %240 = sbr.rel (%p238) target = $region44
      $region43: #{attention_block_forward.3} parent=35 // pred_region
        %p241 = scmp.lt.s32.totalorder %s13, 1
        %s242 = scalar_select %p241, %s13, 1
        %s243 = smul.addr %s242, 2
        %s244 = smul.addr %s243, 8
        %s245 = scalar_lea.vmem %s1, %s244
      $region44: #{attention_block_forward.3} parent=35 // pred_fallthru
        _
    $region36: #{attention_block_forward.3} parent=5 // pred_fallthru
      _
    %p246 = scmp.le.s32.totalorder 1, %s13
    %p247 = scmp.lt.s32.totalorder %s13, 3
    %p248 = pnand %p246, %p247
    %p249 = pneg %p248
    // Predicated region
    $region45: #{attention_block_forward.3} parent=5 // pred_check
      _
    $region46: #{attention_block_forward.3} parent=5 // pred_check_branch
      %251 = sbr.rel (%p248) target = $region48
    $region47: #{attention_block_forward.3} parent=5 // pred_region
      %s252 = ssub.s32 %s13, 1
      %p253 = scmp.lt.s32.totalorder %s18, 1
      %s254 = scalar_select %p253, %s18, 1
      %s255 = smul.addr %s254, 32
      %s256 = smul.addr %s255, 8
      %s257 = scalar_lea.vmem %s0, %s256
      %p258 = pneg %p39
      %p259 = pneg %p36
      %p260 = scmp.lt.s32.totalorder %s18, 1
      %s261 = scalar_select %p260, %s18, 1
      %s262 = smul.addr %s261, 2
      %s263 = smul.addr %s262, 8
      %s264 = scalar_lea.vmem %s1, %s263
      %p265 = pneg %p65
      %p266 = pneg %p62
      %p267 = pneg %p86
      %p268 = pneg %p83
      %p269 = pneg %p107
      %p270 = pneg %p104
      %p271 = pneg %p128
      %p272 = pneg %p125
      %p273 = pneg %p149
      %p274 = pneg %p146
      %p275 = pneg %p170
      %p276 = pneg %p167
      %p277 = pneg %p196
      %p278 = pneg %p193
      %p279 = scmp.lt.s32.totalorder %s18, 1
      %s280 = scalar_select %p279, %s18, 1
      %s281 = smul.addr %s280, 32
      %s282 = smul.addr %s281, 8
      %s283 = scalar_lea.vmem %s7, %s282
      %p284 = scmp.lt.s32.totalorder %s18, 1
      %s285 = scalar_select %p284, %s18, 1
      %s286 = smul.addr %s285, 32
      %s287 = smul.addr %s286, 8
      %s288 = scalar_lea.vmem %s0, %s287
      %p289 = scmp.lt.s32.totalorder %s18, 1
      %s290 = scalar_select %p289, %s18, 1
      %s291 = smul.addr %s290, 2
      %s292 = smul.addr %s291, 8
      %s293 = scalar_lea.vmem %s1, %s292
      %p294 = scmp.lt.s32.totalorder %s18, 1
      %s295 = scalar_select %p294, %s18, 1
      %s296 = smul.addr %s295, 32
      %s297 = smul.addr %s296, 8
      %s298 = scalar_lea.vmem %s7, %s297
      %v300 = vld [vmem:[%s288] sm:$0xff]
      %v301 = vld [vmem:[%s288 + $0x8] sm:$0xff]
      %v302 = vld [vmem:[%s288 + $0x10] sm:$0xff]
      %v303 = vld [vmem:[%s288 + $0x18] sm:$0xff]
      %v304 = vld [vmem:[%s288 + $0x20] sm:$0xff]
      %v305 = vld [vmem:[%s288 + $0x28] sm:$0xff]
      %v306 = vld [vmem:[%s288 + $0x30] sm:$0xff]
      %v307 = vld [vmem:[%s288 + $0x38] sm:$0xff]
      %v308 = vld [vmem:[%s288 + $0x40] sm:$0xff]
      %v309 = vld [vmem:[%s288 + $0x48] sm:$0xff]
      %v310 = vld [vmem:[%s288 + $0x50] sm:$0xff]
      %v311 = vld [vmem:[%s288 + $0x58] sm:$0xff]
      %v312 = vld [vmem:[%s288 + $0x60] sm:$0xff]
      %v313 = vld [vmem:[%s288 + $0x68] sm:$0xff]
      %v314 = vld [vmem:[%s288 + $0x70] sm:$0xff]
      %v315 = vld [vmem:[%s288 + $0x78] sm:$0xff]
      %v316 = vld [vmem:[%s288 + $0x80] sm:$0xff]
      %v317 = vld [vmem:[%s288 + $0x88] sm:$0xff]
      %v318 = vld [vmem:[%s288 + $0x90] sm:$0xff]
      %v319 = vld [vmem:[%s288 + $0x98] sm:$0xff]
      %v320 = vld [vmem:[%s288 + $0xa0] sm:$0xff]
      %v321 = vld [vmem:[%s288 + $0xa8] sm:$0xff]
      %v322 = vld [vmem:[%s288 + $0xb0] sm:$0xff]
      %v323 = vld [vmem:[%s288 + $0xb8] sm:$0xff]
      %v324 = vld [vmem:[%s288 + $0xc0] sm:$0xff]
      %v325 = vld [vmem:[%s288 + $0xc8] sm:$0xff]
      %v326 = vld [vmem:[%s288 + $0xd0] sm:$0xff]
      %v327 = vld [vmem:[%s288 + $0xd8] sm:$0xff]
      %v328 = vld [vmem:[%s288 + $0xe0] sm:$0xff]
      %v329 = vld [vmem:[%s288 + $0xe8] sm:$0xff]
      %v330 = vld [vmem:[%s288 + $0xf0] sm:$0xff]
      %v331 = vld [vmem:[%s288 + $0xf8] sm:$0xff]
      %v332 = vld [vmem:[%s293] sm:$0xff]
      %v333 = vld [vmem:[%s293 + $0x8] sm:$0xff]
      %v334 = vld [vmem:[%s2] sm:$0xf]
      %v335 = vld [vmem:[%s2 + $0x4] sm:$0xf]
      %v336 = vld [vmem:[%s2 + $0x8] sm:$0xf]
      %v337 = vld [vmem:[%s2 + $0xc] sm:$0xf]
      %v338 = vld [vmem:[%s2 + $0x10] sm:$0xf]
      %v339 = vld [vmem:[%s2 + $0x14] sm:$0xf]
      %v340 = vld [vmem:[%s2 + $0x18] sm:$0xf]
      %v341 = vld [vmem:[%s2 + $0x1c] sm:$0xf]
      %v342 = vld [vmem:[%s2 + $0x20] sm:$0xf]
      %v343 = vld [vmem:[%s2 + $0x24] sm:$0xf]
      %v344 = vld [vmem:[%s2 + $0x28] sm:$0xf]
      %v345 = vld [vmem:[%s2 + $0x2c] sm:$0xf]
      %v346 = vld [vmem:[%s2 + $0x30] sm:$0xf]
      %v347 = vld [vmem:[%s2 + $0x34] sm:$0xf]
      %v348 = vld [vmem:[%s2 + $0x38] sm:$0xf]
      %v349 = vld [vmem:[%s2 + $0x3c] sm:$0xf]
      %v350 = vld [vmem:[%s2 + $0x40] sm:$0xf]
      %v351 = vld [vmem:[%s2 + $0x44] sm:$0xf]
      %v352 = vld [vmem:[%s2 + $0x48] sm:$0xf]
      %v353 = vld [vmem:[%s2 + $0x4c] sm:$0xf]
      %v354 = vld [vmem:[%s2 + $0x50] sm:$0xf]
      %v355 = vld [vmem:[%s2 + $0x54] sm:$0xf]
      %v356 = vld [vmem:[%s2 + $0x58] sm:$0xf]
      %v357 = vld [vmem:[%s2 + $0x5c] sm:$0xf]
      %v358 = vld [vmem:[%s2 + $0x60] sm:$0xf]
      %v359 = vld [vmem:[%s2 + $0x64] sm:$0xf]
      %v360 = vld [vmem:[%s2 + $0x68] sm:$0xf]
      %v361 = vld [vmem:[%s2 + $0x6c] sm:$0xf]
      %v362 = vld [vmem:[%s2 + $0x70] sm:$0xf]
      %v363 = vld [vmem:[%s2 + $0x74] sm:$0xf]
      %v364 = vld [vmem:[%s2 + $0x78] sm:$0xf]
      %v365 = vld [vmem:[%s2 + $0x7c] sm:$0xf]
      %v366 = vpack.c.bf16 %v333, %v332
      %v399 = vunpack.c.l.b16 %v334
      %v400 = vunpack.c.l.b16 %v335
      %v401 = vunpack.c.l.b16 %v336
      %v402 = vunpack.c.l.b16 %v337
      %v403 = vunpack.c.l.b16 %v338
      %v404 = vunpack.c.l.b16 %v339
      %v405 = vunpack.c.l.b16 %v340
      %v406 = vunpack.c.l.b16 %v341
      %v407 = vunpack.c.l.b16 %v342
      %v408 = vunpack.c.l.b16 %v343
      %v409 = vunpack.c.l.b16 %v344
      %v410 = vunpack.c.l.b16 %v345
      %v411 = vunpack.c.l.b16 %v346
      %v412 = vunpack.c.l.b16 %v347
      %v413 = vunpack.c.l.b16 %v348
      %v414 = vunpack.c.l.b16 %v349
      %v415 = vunpack.c.l.b16 %v350
      %v416 = vunpack.c.l.b16 %v351
      %v417 = vunpack.c.l.b16 %v352
      %v418 = vunpack.c.l.b16 %v353
      %v419 = vunpack.c.l.b16 %v354
      %v420 = vunpack.c.l.b16 %v355
      %v421 = vunpack.c.l.b16 %v356
      %v422 = vunpack.c.l.b16 %v357
      %v423 = vunpack.c.l.b16 %v358
      %v424 = vunpack.c.l.b16 %v359
      %v425 = vunpack.c.l.b16 %v360
      %v426 = vunpack.c.l.b16 %v361
      %v427 = vunpack.c.l.b16 %v362
      %v428 = vunpack.c.l.b16 %v363
      %v429 = vunpack.c.l.b16 %v364
      %v430 = vunpack.c.l.b16 %v365
      %v431 = vpack.c.b16 %v400, %v399
      %v432 = vpack.c.b16 %v402, %v401
      %v433 = vpack.c.b16 %v404, %v403
      %v434 = vpack.c.b16 %v406, %v405
      %v435 = vpack.c.b16 %v408, %v407
      %v436 = vpack.c.b16 %v410, %v409
      %v437 = vpack.c.b16 %v412, %v411
      %v438 = vpack.c.b16 %v414, %v413
      %v439 = vpack.c.b16 %v416, %v415
      %v440 = vpack.c.b16 %v418, %v417
      %v441 = vpack.c.b16 %v420, %v419
      %v442 = vpack.c.b16 %v422, %v421
      %v443 = vpack.c.b16 %v424, %v423
      %v444 = vpack.c.b16 %v426, %v425
      %v445 = vpack.c.b16 %v428, %v427
      %v446 = vpack.c.b16 %v430, %v429
      %vm447 = vcmask 130048
      %v449 = vsel %vm447, %v431, 0
      %v452 = vsel %vm447, %v432, 0
      %v455 = vsel %vm447, %v433, 0
      %v458 = vsel %vm447, %v434, 0
      %v461 = vsel %vm447, %v435, 0
      %v464 = vsel %vm447, %v436, 0
      %v467 = vsel %vm447, %v437, 0
      %v470 = vsel %vm447, %v438, 0
      %v473 = vsel %vm447, %v439, 0
      %v476 = vsel %vm447, %v440, 0
      %v479 = vsel %vm447, %v441, 0
      %v482 = vsel %vm447, %v442, 0
      %v485 = vsel %vm447, %v443, 0
      %v488 = vsel %vm447, %v444, 0
      %v491 = vsel %vm447, %v445, 0
      %v494 = vsel %vm447, %v446, 0
      %496 = vmatprep.subr.bf16.mxu0 0
      %497 = vmatpush1.bf16.msra.mxu0 %v366
      %498 = vmatprep.subr.bf16.mxu0 0
      %499 = vmatpush1.bf16.msra.mxu0 0
      %500 = vmatprep.subr.bf16.mxu0 0
      %501 = vmatpush1.bf16.msra.mxu0 0
      %502 = vmatprep.subr.bf16.mxu0 0
      %503 = vmatpush1.bf16.msra.mxu0 0
      %504 = vmatprep.subr.bf16.mxu0 0
      %505 = vmatpush1.bf16.msra.mxu0 0
      %506 = vmatprep.subr.bf16.mxu0 0
      %507 = vmatpush1.bf16.msra.mxu0 0
      %508 = vmatprep.subr.bf16.mxu0 0
      %509 = vmatpush1.bf16.msra.mxu0 0
      %510 = vmatprep.subr.bf16.mxu0 0
      %511 = vmatpush1.bf16.msra.mxu0 0
      %512 = vmatprep.subr.bf16.mxu0 0
      %513 = vmatpush1.bf16.msra.mxu0 0
      %514 = vmatprep.subr.bf16.mxu0 0
      %515 = vmatpush1.bf16.msra.mxu0 0
      %516 = vmatprep.subr.bf16.mxu0 0
      %517 = vmatpush1.bf16.msra.mxu0 0
      %518 = vmatprep.subr.bf16.mxu0 0
      %519 = vmatpush1.bf16.msra.mxu0 0
      %520 = vmatprep.subr.bf16.mxu0 0
      %521 = vmatpush1.bf16.msra.mxu0 0
      %522 = vmatprep.subr.bf16.mxu0 0
      %523 = vmatpush1.bf16.msra.mxu0 0
      %524 = vmatprep.subr.bf16.mxu0 0
      %525 = vmatpush1.bf16.msra.mxu0 0
      %526 = vmatprep.subr.bf16.mxu0 0
      %527 = vmatpush1.bf16.msra.mxu0 0
      %528 = vmatprep.mubr.bf16.mxu0 0
      %529 = vmatmul.mubr.bf16.gmra.mrb[0].mxu0 %v449
      %v530 = vpop.f32.mrb[0].mxu0
      %v531 = vadd.f32 0.0, %v530
      %v532 = vpop.f32.mrb[0].mxu0
      %v533 = vpop.f32.mrb[0].mxu0
      %v534 = vadd.f32 0.0, %v533
      %v535 = vpop.f32.mrb[0].mxu0
      %536 = vmatprep.mubr.bf16.mxu0 0
      %537 = vmatmul.mubr.bf16.gmra.mrb[0].mxu0 %v452
      %v538 = vpop.f32.mrb[0].mxu0
      %v539 = vadd.f32 0.0, %v538
      %v540 = vpop.f32.mrb[0].mxu0
      %v541 = vpop.f32.mrb[0].mxu0
      %v542 = vadd.f32 0.0, %v541
      %v543 = vpop.f32.mrb[0].mxu0
      %544 = vmatprep.mubr.bf16.mxu0 0
      %545 = vmatmul.mubr.bf16.gmra.mrb[0].mxu0 %v455
      %v546 = vpop.f32.mrb[0].mxu0
      %v547 = vadd.f32 0.0, %v546
      %v548 = vpop.f32.mrb[0].mxu0
      %v549 = vpop.f32.mrb[0].mxu0
      %v550 = vadd.f32 0.0, %v549
      %v551 = vpop.f32.mrb[0].mxu0
      %552 = vmatprep.mubr.bf16.mxu0 0
      %553 = vmatmul.mubr.bf16.gmra.mrb[0].mxu0 %v458
      %v554 = vpop.f32.mrb[0].mxu0
      %v555 = vadd.f32 0.0, %v554
      %v556 = vpop.f32.mrb[0].mxu0
      %v557 = vpop.f32.mrb[0].mxu0
      %v558 = vadd.f32 0.0, %v557
      %v559 = vpop.f32.mrb[0].mxu0
      %560 = vmatprep.mubr.bf16.mxu0 0
      %561 = vmatmul.mubr.bf16.gmra.mrb[0].mxu0 %v461
      %v562 = vpop.f32.mrb[0].mxu0
      %v563 = vadd.f32 0.0, %v562
      %v564 = vpop.f32.mrb[0].mxu0
      %v565 = vpop.f32.mrb[0].mxu0
      %v566 = vadd.f32 0.0, %v565
      %v567 = vpop.f32.mrb[0].mxu0
      %568 = vmatprep.mubr.bf16.mxu0 0
      %569 = vmatmul.mubr.bf16.gmra.mrb[0].mxu0 %v464
      %v570 = vpop.f32.mrb[0].mxu0
      %v571 = vadd.f32 0.0, %v570
      %v572 = vpop.f32.mrb[0].mxu0
      %v573 = vpop.f32.mrb[0].mxu0
      %v574 = vadd.f32 0.0, %v573
      %v575 = vpop.f32.mrb[0].mxu0
      %576 = vmatprep.mubr.bf16.mxu0 0
      %577 = vmatmul.mubr.bf16.gmra.mrb[0].mxu0 %v467
      %v578 = vpop.f32.mrb[0].mxu0
      %v579 = vadd.f32 0.0, %v578
      %v580 = vpop.f32.mrb[0].mxu0
      %v581 = vpop.f32.mrb[0].mxu0
      %v582 = vadd.f32 0.0, %v581
      %v583 = vpop.f32.mrb[0].mxu0
      %584 = vmatprep.mubr.bf16.mxu0 0
      %585 = vmatmul.mubr.bf16.gmra.mrb[0].mxu0 %v470
      %v586 = vpop.f32.mrb[0].mxu0
      %v587 = vadd.f32 0.0, %v586
      %v588 = vpop.f32.mrb[0].mxu0
      %v589 = vpop.f32.mrb[0].mxu0
      %v590 = vadd.f32 0.0, %v589
      %v591 = vpop.f32.mrb[0].mxu0
      %592 = vmatprep.mubr.bf16.mxu0 0
      %593 = vmatmul.mubr.bf16.gmra.mrb[0].mxu0 %v473
      %v594 = vpop.f32.mrb[0].mxu0
      %v595 = vadd.f32 0.0, %v594
      %v596 = vpop.f32.mrb[0].mxu0
      %v597 = vpop.f32.mrb[0].mxu0
      %v598 = vadd.f32 0.0, %v597
      %v599 = vpop.f32.mrb[0].mxu0
      %600 = vmatprep.mubr.bf16.mxu0 0
      %601 = vmatmul.mubr.bf16.gmra.mrb[0].mxu0 %v476
      %v602 = vpop.f32.mrb[0].mxu0
      %v603 = vadd.f32 0.0, %v602
      %v604 = vpop.f32.mrb[0].mxu0
      %v605 = vpop.f32.mrb[0].mxu0
      %v606 = vadd.f32 0.0, %v605
      %v607 = vpop.f32.mrb[0].mxu0
      %608 = vmatprep.mubr.bf16.mxu0 0
      %609 = vmatmul.mubr.bf16.gmra.mrb[0].mxu0 %v479
      %v610 = vpop.f32.mrb[0].mxu0
      %v611 = vadd.f32 0.0, %v610
      %v612 = vpop.f32.mrb[0].mxu0
      %v613 = vpop.f32.mrb[0].mxu0
      %v614 = vadd.f32 0.0, %v613
      %v615 = vpop.f32.mrb[0].mxu0
      %616 = vmatprep.mubr.bf16.mxu0 0
      %617 = vmatmul.mubr.bf16.gmra.mrb[0].mxu0 %v482
      %v618 = vpop.f32.mrb[0].mxu0
      %v619 = vadd.f32 0.0, %v618
      %v620 = vpop.f32.mrb[0].mxu0
      %v621 = vpop.f32.mrb[0].mxu0
      %v622 = vadd.f32 0.0, %v621
      %v623 = vpop.f32.mrb[0].mxu0
      %624 = vmatprep.mubr.bf16.mxu0 0
      %625 = vmatmul.mubr.bf16.gmra.mrb[0].mxu0 %v485
      %v626 = vpop.f32.mrb[0].mxu0
      %v627 = vadd.f32 0.0, %v626
      %v628 = vpop.f32.mrb[0].mxu0
      %v629 = vpop.f32.mrb[0].mxu0
      %v630 = vadd.f32 0.0, %v629
      %v631 = vpop.f32.mrb[0].mxu0
      %632 = vmatprep.mubr.bf16.mxu0 0
      %633 = vmatmul.mubr.bf16.gmra.mrb[0].mxu0 %v488
      %v634 = vpop.f32.mrb[0].mxu0
      %v635 = vadd.f32 0.0, %v634
      %v636 = vpop.f32.mrb[0].mxu0
      %v637 = vpop.f32.mrb[0].mxu0
      %v638 = vadd.f32 0.0, %v637
      %v639 = vpop.f32.mrb[0].mxu0
      %640 = vmatprep.mubr.bf16.mxu0 0
      %641 = vmatmul.mubr.bf16.gmra.mrb[0].mxu0 %v491
      %v642 = vpop.f32.mrb[0].mxu0
      %v643 = vadd.f32 0.0, %v642
      %v644 = vpop.f32.mrb[0].mxu0
      %v645 = vpop.f32.mrb[0].mxu0
      %v646 = vadd.f32 0.0, %v645
      %v647 = vpop.f32.mrb[0].mxu0
      %648 = vmatprep.mubr.bf16.mxu0 0
      %649 = vmatmul.mubr.bf16.gmra.mrb[0].mxu0 %v494
      %v650 = vpop.f32.mrb[0].mxu0
      %v651 = vadd.f32 0.0, %v650
      %v652 = vpop.f32.mrb[0].mxu0
      %v653 = vpop.f32.mrb[0].mxu0
      %v654 = vadd.f32 0.0, %v653
      %v655 = vpop.f32.mrb[0].mxu0
      %656 = vdwg.mxu0
      %v657 = vadd.f32 %v300, %v531
      %v658 = vadd.f32 %v301, %v534
      %v659 = vadd.f32 %v302, %v539
      %v660 = vadd.f32 %v303, %v542
      %v661 = vadd.f32 %v304, %v547
      %v662 = vadd.f32 %v305, %v550
      %v663 = vadd.f32 %v306, %v555
      %v664 = vadd.f32 %v307, %v558
      %v665 = vadd.f32 %v308, %v563
      %v666 = vadd.f32 %v309, %v566
      %v667 = vadd.f32 %v310, %v571
      %v668 = vadd.f32 %v311, %v574
      %v669 = vadd.f32 %v312, %v579
      %v670 = vadd.f32 %v313, %v582
      %v671 = vadd.f32 %v314, %v587
      %v672 = vadd.f32 %v315, %v590
      %v673 = vadd.f32 %v316, %v595
      %v674 = vadd.f32 %v317, %v598
      %v675 = vadd.f32 %v318, %v603
      %v676 = vadd.f32 %v319, %v606
      %v677 = vadd.f32 %v320, %v611
      %v678 = vadd.f32 %v321, %v614
      %v679 = vadd.f32 %v322, %v619
      %v680 = vadd.f32 %v323, %v622
      %v681 = vadd.f32 %v324, %v627
      %v682 = vadd.f32 %v325, %v630
      %v683 = vadd.f32 %v326, %v635
      %v684 = vadd.f32 %v327, %v638
      %v685 = vadd.f32 %v328, %v643
      %v686 = vadd.f32 %v329, %v646
      %v687 = vadd.f32 %v330, %v651
      %v688 = vadd.f32 %v331, %v654
      %vm721 = vcmask 1040384
      %v722 = vrot.slane %v657, 7
      %v723 = vrot.slane %v658, 7
      %v724 = vsel %vm721, %v722, %v723
      %v725 = vrot.slane %v659, 7
      %v726 = vrot.slane %v660, 7
      %v727 = vsel %vm721, %v725, %v726
      %v728 = vrot.slane %v661, 7
      %v729 = vrot.slane %v662, 7
      %v730 = vsel %vm721, %v728, %v729
      %v731 = vrot.slane %v663, 7
      %v732 = vrot.slane %v664, 7
      %v733 = vsel %vm721, %v731, %v732
      %v734 = vrot.slane %v665, 7
      %v735 = vrot.slane %v666, 7
      %v736 = vsel %vm721, %v734, %v735
      %v737 = vrot.slane %v667, 7
      %v738 = vrot.slane %v668, 7
      %v739 = vsel %vm721, %v737, %v738
      %v740 = vrot.slane %v669, 7
      %v741 = vrot.slane %v670, 7
      %v742 = vsel %vm721, %v740, %v741
      %v743 = vrot.slane %v671, 7
      %v744 = vrot.slane %v672, 7
      %v745 = vsel %vm721, %v743, %v744
      %v746 = vrot.slane %v673, 7
      %v747 = vrot.slane %v674, 7
      %v748 = vsel %vm721, %v746, %v747
      %v749 = vrot.slane %v675, 7
      %v750 = vrot.slane %v676, 7
      %v751 = vsel %vm721, %v749, %v750
      %v752 = vrot.slane %v677, 7
      %v753 = vrot.slane %v678, 7
      %v754 = vsel %vm721, %v752, %v753
      %v755 = vrot.slane %v679, 7
      %v756 = vrot.slane %v680, 7
      %v757 = vsel %vm721, %v755, %v756
      %v758 = vrot.slane %v681, 7
      %v759 = vrot.slane %v682, 7
      %v760 = vsel %vm721, %v758, %v759
      %v761 = vrot.slane %v683, 7
      %v762 = vrot.slane %v684, 7
      %v763 = vsel %vm721, %v761, %v762
      %v764 = vrot.slane %v685, 7
      %v765 = vrot.slane %v686, 7
      %v766 = vsel %vm721, %v764, %v765
      %v767 = vrot.slane %v687, 7
      %v768 = vrot.slane %v688, 7
      %v769 = vsel %vm721, %v767, %v768
      %v818 = vsel %vm721, 0.0, %v722
      %v819 = vsel %vm721, 0.0, %v725
      %v820 = vsel %vm721, 0.0, %v728
      %v821 = vsel %vm721, 0.0, %v731
      %v822 = vsel %vm721, 0.0, %v734
      %v823 = vsel %vm721, 0.0, %v737
      %v824 = vsel %vm721, 0.0, %v740
      %v825 = vsel %vm721, 0.0, %v743
      %v826 = vsel %vm721, 0.0, %v746
      %v827 = vsel %vm721, 0.0, %v749
      %v828 = vsel %vm721, 0.0, %v752
      %v829 = vsel %vm721, 0.0, %v755
      %v830 = vsel %vm721, 0.0, %v758
      %v831 = vsel %vm721, 0.0, %v761
      %v832 = vsel %vm721, 0.0, %v764
      %v833 = vsel %vm721, 0.0, %v767
      %v834 = vsel %vm721, %v723, 0.0
      %v835 = vsel %vm721, %v726, 0.0
      %v836 = vsel %vm721, %v729, 0.0
      %v837 = vsel %vm721, %v732, 0.0
      %v838 = vsel %vm721, %v735, 0.0
      %v839 = vsel %vm721, %v738, 0.0
      %v840 = vsel %vm721, %v741, 0.0
      %v841 = vsel %vm721, %v744, 0.0
      %v842 = vsel %vm721, %v747, 0.0
      %v843 = vsel %vm721, %v750, 0.0
      %v844 = vsel %vm721, %v753, 0.0
      %v845 = vsel %vm721, %v756, 0.0
      %v846 = vsel %vm721, %v759, 0.0
      %v847 = vsel %vm721, %v762, 0.0
      %v848 = vsel %vm721, %v765, 0.0
      %v849 = vsel %vm721, %v768, 0.0
      %v850 = vld [vmem:[%s3] sm:$0x1]
      %v852 = vlaneseq
      %v853 = vshrl.u32 %v852, 7
      %v854 = vsub.s32 0, %v853
      %v855 = vrot.slane %v850, %v854
      %v857 = vmul.f32 %v855, 0.0
      %v858 = vmul.f32 %v818, %v855
      %v859 = vmul.f32 %v724, %v855
      %v860 = vmul.f32 %v819, %v855
      %v861 = vmul.f32 %v727, %v855
      %v862 = vmul.f32 %v820, %v855
      %v863 = vmul.f32 %v730, %v855
      %v864 = vmul.f32 %v821, %v855
      %v865 = vmul.f32 %v733, %v855
      %v866 = vmul.f32 %v822, %v855
      %v867 = vmul.f32 %v736, %v855
      %v868 = vmul.f32 %v823, %v855
      %v869 = vmul.f32 %v739, %v855
      %v870 = vmul.f32 %v824, %v855
      %v871 = vmul.f32 %v742, %v855
      %v872 = vmul.f32 %v825, %v855
      %v873 = vmul.f32 %v745, %v855
      %v874 = vmul.f32 %v826, %v855
      %v875 = vmul.f32 %v748, %v855
      %v876 = vmul.f32 %v827, %v855
      %v877 = vmul.f32 %v751, %v855
      %v878 = vmul.f32 %v828, %v855
      %v879 = vmul.f32 %v754, %v855
      %v880 = vmul.f32 %v829, %v855
      %v881 = vmul.f32 %v757, %v855
      %v882 = vmul.f32 %v830, %v855
      %v883 = vmul.f32 %v760, %v855
      %v884 = vmul.f32 %v831, %v855
      %v885 = vmul.f32 %v763, %v855
      %v886 = vmul.f32 %v832, %v855
      %v887 = vmul.f32 %v766, %v855
      %v888 = vadd.f32 %v857, 0.0
      %v889 = vadd.f32 %v858, 0.0
      %v890 = vadd.f32 %v859, 0.0
      %v891 = vadd.f32 %v860, 0.0
      %v892 = vadd.f32 %v861, 0.0
      %v893 = vadd.f32 %v862, 0.0
      %v894 = vadd.f32 %v863, 0.0
      %v895 = vadd.f32 %v864, 0.0
      %v896 = vadd.f32 %v865, 0.0
      %v897 = vadd.f32 %v866, 0.0
      %v898 = vadd.f32 %v867, 0.0
      %v899 = vadd.f32 %v868, 0.0
      %v900 = vadd.f32 %v869, 0.0
      %v901 = vadd.f32 %v870, 0.0
      %v902 = vadd.f32 %v871, 0.0
      %v903 = vadd.f32 %v872, 0.0
      %v904 = vadd.f32 %v873, 0.0
      %v905 = vadd.f32 %v874, 0.0
      %v906 = vadd.f32 %v875, 0.0
      %v907 = vadd.f32 %v876, 0.0
      %v908 = vadd.f32 %v877, 0.0
      %v909 = vadd.f32 %v878, 0.0
      %v910 = vadd.f32 %v879, 0.0
      %v911 = vadd.f32 %v880, 0.0
      %v912 = vadd.f32 %v881, 0.0
      %v913 = vadd.f32 %v882, 0.0
      %v914 = vadd.f32 %v883, 0.0
      %v915 = vadd.f32 %v884, 0.0
      %v916 = vadd.f32 %v885, 0.0
      %v917 = vadd.f32 %v886, 0.0
      %v918 = vadd.f32 %v887, 0.0
      %s919 = scalar_lea.vmem %s3, 1
      %v920 = vld [vmem:[%s919] sm:$0x1]
      %vm951 = vcmask 1046528
      %v952 = vrot.slane %v818, 1
      %v953 = vrot.slane %v724, 1
      %v954 = vsel %vm951, %v952, %v953
      %v955 = vrot.slane %v834, 1
      %v956 = vsel %vm951, %v953, %v955
      %v957 = vrot.slane %v819, 1
      %v958 = vrot.slane %v727, 1
      %v959 = vsel %vm951, %v957, %v958
      %v960 = vrot.slane %v835, 1
      %v961 = vsel %vm951, %v958, %v960
      %v962 = vrot.slane %v820, 1
      %v963 = vrot.slane %v730, 1
      %v964 = vsel %vm951, %v962, %v963
      %v965 = vrot.slane %v836, 1
      %v966 = vsel %vm951, %v963, %v965
      %v967 = vrot.slane %v821, 1
      %v968 = vrot.slane %v733, 1
      %v969 = vsel %vm951, %v967, %v968
      %v970 = vrot.slane %v837, 1
      %v971 = vsel %vm951, %v968, %v970
      %v972 = vrot.slane %v822, 1
      %v973 = vrot.slane %v736, 1
      %v974 = vsel %vm951, %v972, %v973
      %v975 = vrot.slane %v838, 1
      %v976 = vsel %vm951, %v973, %v975
      %v977 = vrot.slane %v823, 1
      %v978 = vrot.slane %v739, 1
      %v979 = vsel %vm951, %v977, %v978
      %v980 = vrot.slane %v839, 1
      %v981 = vsel %vm951, %v978, %v980
      %v982 = vrot.slane %v824, 1
      %v983 = vrot.slane %v742, 1
      %v984 = vsel %vm951, %v982, %v983
      %v985 = vrot.slane %v840, 1
      %v986 = vsel %vm951, %v983, %v985
      %v987 = vrot.slane %v825, 1
      %v988 = vrot.slane %v745, 1
      %v989 = vsel %vm951, %v987, %v988
      %v990 = vrot.slane %v841, 1
      %v991 = vsel %vm951, %v988, %v990
      %v992 = vrot.slane %v826, 1
      %v993 = vrot.slane %v748, 1
      %v994 = vsel %vm951, %v992, %v993
      %v995 = vrot.slane %v842, 1
      %v996 = vsel %vm951, %v993, %v995
      %v997 = vrot.slane %v827, 1
      %v998 = vrot.slane %v751, 1
      %v999 = vsel %vm951, %v997, %v998
      %v1000 = vrot.slane %v843, 1
      %v1001 = vsel %vm951, %v998, %v1000
      %v1002 = vrot.slane %v828, 1
      %v1003 = vrot.slane %v754, 1
      %v1004 = vsel %vm951, %v1002, %v1003
      %v1005 = vrot.slane %v844, 1
      %v1006 = vsel %vm951, %v1003, %v1005
      %v1007 = vrot.slane %v829, 1
      %v1008 = vrot.slane %v757, 1
      %v1009 = vsel %vm951, %v1007, %v1008
      %v1010 = vrot.slane %v845, 1
      %v1011 = vsel %vm951, %v1008, %v1010
      %v1012 = vrot.slane %v830, 1
      %v1013 = vrot.slane %v760, 1
      %v1014 = vsel %vm951, %v1012, %v1013
      %v1015 = vrot.slane %v846, 1
      %v1016 = vsel %vm951, %v1013, %v1015
      %v1017 = vrot.slane %v831, 1
      %v1018 = vrot.slane %v763, 1
      %v1019 = vsel %vm951, %v1017, %v1018
      %v1020 = vrot.slane %v847, 1
      %v1021 = vsel %vm951, %v1018, %v1020
      %v1022 = vrot.slane %v832, 1
      %v1023 = vrot.slane %v766, 1
      %v1024 = vsel %vm951, %v1022, %v1023
      %v1025 = vrot.slane %v848, 1
      %v1026 = vsel %vm951, %v1023, %v1025
      %v1058 = vlaneseq
      %v1059 = vshrl.u32 %v1058, 7
      %v1060 = vsub.s32 0, %v1059
      %v1061 = vrot.slane %v920, %v1060
      %v1063 = vmul.f32 %v1061, 0.0
      %v1064 = vmul.f32 %v954, %v1061
      %v1065 = vmul.f32 %v956, %v1061
      %v1066 = vmul.f32 %v959, %v1061
      %v1067 = vmul.f32 %v961, %v1061
      %v1068 = vmul.f32 %v964, %v1061
      %v1069 = vmul.f32 %v966, %v1061
      %v1070 = vmul.f32 %v969, %v1061
      %v1071 = vmul.f32 %v971, %v1061
      %v1072 = vmul.f32 %v974, %v1061
      %v1073 = vmul.f32 %v976, %v1061
      %v1074 = vmul.f32 %v979, %v1061
      %v1075 = vmul.f32 %v981, %v1061
      %v1076 = vmul.f32 %v984, %v1061
      %v1077 = vmul.f32 %v986, %v1061
      %v1078 = vmul.f32 %v989, %v1061
      %v1079 = vmul.f32 %v991, %v1061
      %v1080 = vmul.f32 %v994, %v1061
      %v1081 = vmul.f32 %v996, %v1061
      %v1082 = vmul.f32 %v999, %v1061
      %v1083 = vmul.f32 %v1001, %v1061
      %v1084 = vmul.f32 %v1004, %v1061
      %v1085 = vmul.f32 %v1006, %v1061
      %v1086 = vmul.f32 %v1009, %v1061
      %v1087 = vmul.f32 %v1011, %v1061
      %v1088 = vmul.f32 %v1014, %v1061
      %v1089 = vmul.f32 %v1016, %v1061
      %v1090 = vmul.f32 %v1019, %v1061
      %v1091 = vmul.f32 %v1021, %v1061
      %v1092 = vmul.f32 %v1024, %v1061
      %v1093 = vmul.f32 %v1026, %v1061
      %v1094 = vadd.f32 %v888, %v1063
      %v1095 = vadd.f32 %v889, %v1064
      %v1096 = vadd.f32 %v890, %v1065
      %v1097 = vadd.f32 %v891, %v1066
      %v1098 = vadd.f32 %v892, %v1067
      %v1099 = vadd.f32 %v893, %v1068
      %v1100 = vadd.f32 %v894, %v1069
      %v1101 = vadd.f32 %v895, %v1070
      %v1102 = vadd.f32 %v896, %v1071
      %v1103 = vadd.f32 %v897, %v1072
      %v1104 = vadd.f32 %v898, %v1073
      %v1105 = vadd.f32 %v899, %v1074
      %v1106 = vadd.f32 %v900, %v1075
      %v1107 = vadd.f32 %v901, %v1076
      %v1108 = vadd.f32 %v902, %v1077
      %v1109 = vadd.f32 %v903, %v1078
      %v1110 = vadd.f32 %v904, %v1079
      %v1111 = vadd.f32 %v905, %v1080
      %v1112 = vadd.f32 %v906, %v1081
      %v1113 = vadd.f32 %v907, %v1082
      %v1114 = vadd.f32 %v908, %v1083
      %v1115 = vadd.f32 %v909, %v1084
      %v1116 = vadd.f32 %v910, %v1085
      %v1117 = vadd.f32 %v911, %v1086
      %v1118 = vadd.f32 %v912, %v1087
      %v1119 = vadd.f32 %v913, %v1088
      %v1120 = vadd.f32 %v914, %v1089
      %v1121 = vadd.f32 %v915, %v1090
      %v1122 = vadd.f32 %v916, %v1091
      %v1123 = vadd.f32 %v917, %v1092
      %v1124 = vadd.f32 %v918, %v1093
      %s1125 = scalar_lea.vmem %s3, 2
      %v1126 = vld [vmem:[%s1125] sm:$0x1]
      %vm1127 = vcmask 1045504
      %v1128 = vrot.slane %v818, 2
      %v1129 = vrot.slane %v724, 2
      %v1130 = vsel %vm1127, %v1128, %v1129
      %v1131 = vrot.slane %v834, 2
      %v1132 = vsel %vm1127, %v1129, %v1131
      %v1133 = vrot.slane %v819, 2
      %v1134 = vrot.slane %v727, 2
      %v1135 = vsel %vm1127, %v1133, %v1134
      %v1136 = vrot.slane %v835, 2
      %v1137 = vsel %vm1127, %v1134, %v1136
      %v1138 = vrot.slane %v820, 2
      %v1139 = vrot.slane %v730, 2
      %v1140 = vsel %vm1127, %v1138, %v1139
      %v1141 = vrot.slane %v836, 2
      %v1142 = vsel %vm1127, %v1139, %v1141
      %v1143 = vrot.slane %v821, 2
      %v1144 = vrot.slane %v733, 2
      %v1145 = vsel %vm1127, %v1143, %v1144
      %v1146 = vrot.slane %v837, 2
      %v1147 = vsel %vm1127, %v1144, %v1146
      %v1148 = vrot.slane %v822, 2
      %v1149 = vrot.slane %v736, 2
      %v1150 = vsel %vm1127, %v1148, %v1149
      %v1151 = vrot.slane %v838, 2
      %v1152 = vsel %vm1127, %v1149, %v1151
      %v1153 = vrot.slane %v823, 2
      %v1154 = vrot.slane %v739, 2
      %v1155 = vsel %vm1127, %v1153, %v1154
      %v1156 = vrot.slane %v839, 2
      %v1157 = vsel %vm1127, %v1154, %v1156
      %v1158 = vrot.slane %v824, 2
      %v1159 = vrot.slane %v742, 2
      %v1160 = vsel %vm1127, %v1158, %v1159
      %v1161 = vrot.slane %v840, 2
      %v1162 = vsel %vm1127, %v1159, %v1161
      %v1163 = vrot.slane %v825, 2
      %v1164 = vrot.slane %v745, 2
      %v1165 = vsel %vm1127, %v1163, %v1164
      %v1166 = vrot.slane %v841, 2
      %v1167 = vsel %vm1127, %v1164, %v1166
      %v1168 = vrot.slane %v826, 2
      %v1169 = vrot.slane %v748, 2
      %v1170 = vsel %vm1127, %v1168, %v1169
      %v1171 = vrot.slane %v842, 2
      %v1172 = vsel %vm1127, %v1169, %v1171
      %v1173 = vrot.slane %v827, 2
      %v1174 = vrot.slane %v751, 2
      %v1175 = vsel %vm1127, %v1173, %v1174
      %v1176 = vrot.slane %v843, 2
      %v1177 = vsel %vm1127, %v1174, %v1176
      %v1178 = vrot.slane %v828, 2
      %v1179 = vrot.slane %v754, 2
      %v1180 = vsel %vm1127, %v1178, %v1179
      %v1181 = vrot.slane %v844, 2
      %v1182 = vsel %vm1127, %v1179, %v1181
      %v1183 = vrot.slane %v829, 2
      %v1184 = vrot.slane %v757, 2
      %v1185 = vsel %vm1127, %v1183, %v1184
      %v1186 = vrot.slane %v845, 2
      %v1187 = vsel %vm1127, %v1184, %v1186
      %v1188 = vrot.slane %v830, 2
      %v1189 = vrot.slane %v760, 2
      %v1190 = vsel %vm1127, %v1188, %v1189
      %v1191 = vrot.slane %v846, 2
      %v1192 = vsel %vm1127, %v1189, %v1191
      %v1193 = vrot.slane %v831, 2
      %v1194 = vrot.slane %v763, 2
      %v1195 = vsel %vm1127, %v1193, %v1194
      %v1196 = vrot.slane %v847, 2
      %v1197 = vsel %vm1127, %v1194, %v1196
      %v1198 = vrot.slane %v832, 2
      %v1199 = vrot.slane %v766, 2
      %v1200 = vsel %vm1127, %v1198, %v1199
      %v1201 = vrot.slane %v848, 2
      %v1202 = vsel %vm1127, %v1199, %v1201
      %v1234 = vlaneseq
      %v1235 = vshrl.u32 %v1234, 7
      %v1236 = vsub.s32 0, %v1235
      %v1237 = vrot.slane %v1126, %v1236
      %v1239 = vmul.f32 %v1237, 0.0
      %v1240 = vmul.f32 %v1130, %v1237
      %v1241 = vmul.f32 %v1132, %v1237
      %v1242 = vmul.f32 %v1135, %v1237
      %v1243 = vmul.f32 %v1137, %v1237
      %v1244 = vmul.f32 %v1140, %v1237
      %v1245 = vmul.f32 %v1142, %v1237
      %v1246 = vmul.f32 %v1145, %v1237
      %v1247 = vmul.f32 %v1147, %v1237
      %v1248 = vmul.f32 %v1150, %v1237
      %v1249 = vmul.f32 %v1152, %v1237
      %v1250 = vmul.f32 %v1155, %v1237
      %v1251 = vmul.f32 %v1157, %v1237
      %v1252 = vmul.f32 %v1160, %v1237
      %v1253 = vmul.f32 %v1162, %v1237
      %v1254 = vmul.f32 %v1165, %v1237
      %v1255 = vmul.f32 %v1167, %v1237
      %v1256 = vmul.f32 %v1170, %v1237
      %v1257 = vmul.f32 %v1172, %v1237
      %v1258 = vmul.f32 %v1175, %v1237
      %v1259 = vmul.f32 %v1177, %v1237
      %v1260 = vmul.f32 %v1180, %v1237
      %v1261 = vmul.f32 %v1182, %v1237
      %v1262 = vmul.f32 %v1185, %v1237
      %v1263 = vmul.f32 %v1187, %v1237
      %v1264 = vmul.f32 %v1190, %v1237
      %v1265 = vmul.f32 %v1192, %v1237
      %v1266 = vmul.f32 %v1195, %v1237
      %v1267 = vmul.f32 %v1197, %v1237
      %v1268 = vmul.f32 %v1200, %v1237
      %v1269 = vmul.f32 %v1202, %v1237
      %v1270 = vadd.f32 %v1094, %v1239
      %v1271 = vadd.f32 %v1095, %v1240
      %v1272 = vadd.f32 %v1096, %v1241
      %v1273 = vadd.f32 %v1097, %v1242
      %v1274 = vadd.f32 %v1098, %v1243
      %v1275 = vadd.f32 %v1099, %v1244
      %v1276 = vadd.f32 %v1100, %v1245
      %v1277 = vadd.f32 %v1101, %v1246
      %v1278 = vadd.f32 %v1102, %v1247
      %v1279 = vadd.f32 %v1103, %v1248
      %v1280 = vadd.f32 %v1104, %v1249
      %v1281 = vadd.f32 %v1105, %v1250
      %v1282 = vadd.f32 %v1106, %v1251
      %v1283 = vadd.f32 %v1107, %v1252
      %v1284 = vadd.f32 %v1108, %v1253
      %v1285 = vadd.f32 %v1109, %v1254
      %v1286 = vadd.f32 %v1110, %v1255
      %v1287 = vadd.f32 %v1111, %v1256
      %v1288 = vadd.f32 %v1112, %v1257
      %v1289 = vadd.f32 %v1113, %v1258
      %v1290 = vadd.f32 %v1114, %v1259
      %v1291 = vadd.f32 %v1115, %v1260
      %v1292 = vadd.f32 %v1116, %v1261
      %v1293 = vadd.f32 %v1117, %v1262
      %v1294 = vadd.f32 %v1118, %v1263
      %v1295 = vadd.f32 %v1119, %v1264
      %v1296 = vadd.f32 %v1120, %v1265
      %v1297 = vadd.f32 %v1121, %v1266
      %v1298 = vadd.f32 %v1122, %v1267
      %v1299 = vadd.f32 %v1123, %v1268
      %v1300 = vadd.f32 %v1124, %v1269
      %s1301 = scalar_lea.vmem %s3, 3
      %v1302 = vld [vmem:[%s1301] sm:$0x1]
      %v1304 = vlaneseq
      %v1305 = vshrl.u32 %v1304, 7
      %v1306 = vsub.s32 0, %v1305
      %v1307 = vrot.slane %v1302, %v1306
      %v1309 = vmul.f32 %v818, %v1307
      %v1310 = vmul.f32 %v724, %v1307
      %v1311 = vmul.f32 %v819, %v1307
      %v1312 = vmul.f32 %v727, %v1307
      %v1313 = vmul.f32 %v820, %v1307
      %v1314 = vmul.f32 %v730, %v1307
      %v1315 = vmul.f32 %v821, %v1307
      %v1316 = vmul.f32 %v733, %v1307
      %v1317 = vmul.f32 %v822, %v1307
      %v1318 = vmul.f32 %v736, %v1307
      %v1319 = vmul.f32 %v823, %v1307
      %v1320 = vmul.f32 %v739, %v1307
      %v1321 = vmul.f32 %v824, %v1307
      %v1322 = vmul.f32 %v742, %v1307
      %v1323 = vmul.f32 %v825, %v1307
      %v1324 = vmul.f32 %v745, %v1307
      %v1325 = vmul.f32 %v826, %v1307
      %v1326 = vmul.f32 %v748, %v1307
      %v1327 = vmul.f32 %v827, %v1307
      %v1328 = vmul.f32 %v751, %v1307
      %v1329 = vmul.f32 %v828, %v1307
      %v1330 = vmul.f32 %v754, %v1307
      %v1331 = vmul.f32 %v829, %v1307
      %v1332 = vmul.f32 %v757, %v1307
      %v1333 = vmul.f32 %v830, %v1307
      %v1334 = vmul.f32 %v760, %v1307
      %v1335 = vmul.f32 %v831, %v1307
      %v1336 = vmul.f32 %v763, %v1307
      %v1337 = vmul.f32 %v832, %v1307
      %v1338 = vmul.f32 %v766, %v1307
      %v1339 = vmul.f32 %v833, %v1307
      %v1340 = vmul.f32 %v769, %v1307
      %v1341 = vadd.f32 %v1270, %v1309
      %v1342 = vadd.f32 %v1270, %v1310
      %v1343 = vadd.f32 %v1271, %v1311
      %v1344 = vadd.f32 %v1272, %v1312
      %v1345 = vadd.f32 %v1273, %v1313
      %v1346 = vadd.f32 %v1274, %v1314
      %v1347 = vadd.f32 %v1275, %v1315
      %v1348 = vadd.f32 %v1276, %v1316
      %v1349 = vadd.f32 %v1277, %v1317
      %v1350 = vadd.f32 %v1278, %v1318
      %v1351 = vadd.f32 %v1279, %v1319
      %v1352 = vadd.f32 %v1280, %v1320
      %v1353 = vadd.f32 %v1281, %v1321
      %v1354 = vadd.f32 %v1282, %v1322
      %v1355 = vadd.f32 %v1283, %v1323
      %v1356 = vadd.f32 %v1284, %v1324
      %v1357 = vadd.f32 %v1285, %v1325
      %v1358 = vadd.f32 %v1286, %v1326
      %v1359 = vadd.f32 %v1287, %v1327
      %v1360 = vadd.f32 %v1288, %v1328
      %v1361 = vadd.f32 %v1289, %v1329
      %v1362 = vadd.f32 %v1290, %v1330
      %v1363 = vadd.f32 %v1291, %v1331
      %v1364 = vadd.f32 %v1292, %v1332
      %v1365 = vadd.f32 %v1293, %v1333
      %v1366 = vadd.f32 %v1294, %v1334
      %v1367 = vadd.f32 %v1295, %v1335
      %v1368 = vadd.f32 %v1296, %v1336
      %v1369 = vadd.f32 %v1297, %v1337
      %v1370 = vadd.f32 %v1298, %v1338
      %v1371 = vadd.f32 %v1299, %v1339
      %v1372 = vadd.f32 %v1300, %v1340
      %s1373 = scalar_lea.vmem %s3, 4
      %v1374 = vld [vmem:[%s1373] sm:$0x1]
      %v1376 = vlaneseq
      %v1377 = vshrl.u32 %v1376, 7
      %v1378 = vsub.s32 0, %v1377
      %v1379 = vrot.slane %v1374, %v1378
      %v1381 = vmul.f32 %v818, %v1379
      %v1382 = vmul.f32 %v724, %v1379
      %v1383 = vmul.f32 %v834, %v1379
      %v1384 = vmul.f32 %v819, %v1379
      %v1385 = vmul.f32 %v727, %v1379
      %v1386 = vmul.f32 %v835, %v1379
      %v1387 = vmul.f32 %v820, %v1379
      %v1388 = vmul.f32 %v730, %v1379
      %v1389 = vmul.f32 %v836, %v1379
      %v1390 = vmul.f32 %v821, %v1379
      %v1391 = vmul.f32 %v733, %v1379
      %v1392 = vmul.f32 %v837, %v1379
      %v1393 = vmul.f32 %v822, %v1379
      %v1394 = vmul.f32 %v736, %v1379
      %v1395 = vmul.f32 %v838, %v1379
      %v1396 = vmul.f32 %v823, %v1379
      %v1397 = vmul.f32 %v739, %v1379
      %v1398 = vmul.f32 %v839, %v1379
      %v1399 = vmul.f32 %v824, %v1379
      %v1400 = vmul.f32 %v742, %v1379
      %v1401 = vmul.f32 %v840, %v1379
      %v1402 = vmul.f32 %v825, %v1379
      %v1403 = vmul.f32 %v745, %v1379
      %v1404 = vmul.f32 %v841, %v1379
      %v1405 = vmul.f32 %v826, %v1379
      %v1406 = vmul.f32 %v748, %v1379
      %v1407 = vmul.f32 %v842, %v1379
      %v1408 = vmul.f32 %v827, %v1379
      %v1409 = vmul.f32 %v751, %v1379
      %v1410 = vmul.f32 %v843, %v1379
      %v1411 = vmul.f32 %v828, %v1379
      %v1412 = vmul.f32 %v754, %v1379
      %v1413 = vmul.f32 %v844, %v1379
      %v1414 = vmul.f32 %v829, %v1379
      %v1415 = vmul.f32 %v757, %v1379
      %v1416 = vmul.f32 %v845, %v1379
      %v1417 = vmul.f32 %v830, %v1379
      %v1418 = vmul.f32 %v760, %v1379
      %v1419 = vmul.f32 %v846, %v1379
      %v1420 = vmul.f32 %v831, %v1379
      %v1421 = vmul.f32 %v763, %v1379
      %v1422 = vmul.f32 %v847, %v1379
      %v1423 = vmul.f32 %v832, %v1379
      %v1424 = vmul.f32 %v766, %v1379
      %v1425 = vmul.f32 %v848, %v1379
      %v1426 = vmul.f32 %v833, %v1379
      %v1427 = vmul.f32 %v769, %v1379
      %v1428 = vmul.f32 %v849, %v1379
      %v1477 = vrot.slane %v1381, 1
      %v1478 = vrot.slane %v1382, 1
      %v1479 = vsel %vm951, %v1477, %v1478
      %v1480 = vrot.slane %v1383, 1
      %v1481 = vsel %vm951, %v1478, %v1480
      %v1482 = vrot.slane %v1384, 1
      %v1483 = vrot.slane %v1385, 1
      %v1484 = vsel %vm951, %v1482, %v1483
      %v1485 = vrot.slane %v1386, 1
      %v1486 = vsel %vm951, %v1483, %v1485
      %v1487 = vrot.slane %v1387, 1
      %v1488 = vrot.slane %v1388, 1
      %v1489 = vsel %vm951, %v1487, %v1488
      %v1490 = vrot.slane %v1389, 1
      %v1491 = vsel %vm951, %v1488, %v1490
      %v1492 = vrot.slane %v1390, 1
      %v1493 = vrot.slane %v1391, 1
      %v1494 = vsel %vm951, %v1492, %v1493
      %v1495 = vrot.slane %v1392, 1
      %v1496 = vsel %vm951, %v1493, %v1495
      %v1497 = vrot.slane %v1393, 1
      %v1498 = vrot.slane %v1394, 1
      %v1499 = vsel %vm951, %v1497, %v1498
      %v1500 = vrot.slane %v1395, 1
      %v1501 = vsel %vm951, %v1498, %v1500
      %v1502 = vrot.slane %v1396, 1
      %v1503 = vrot.slane %v1397, 1
      %v1504 = vsel %vm951, %v1502, %v1503
      %v1505 = vrot.slane %v1398, 1
      %v1506 = vsel %vm951, %v1503, %v1505
      %v1507 = vrot.slane %v1399, 1
      %v1508 = vrot.slane %v1400, 1
      %v1509 = vsel %vm951, %v1507, %v1508
      %v1510 = vrot.slane %v1401, 1
      %v1511 = vsel %vm951, %v1508, %v1510
      %v1512 = vrot.slane %v1402, 1
      %v1513 = vrot.slane %v1403, 1
      %v1514 = vsel %vm951, %v1512, %v1513
      %v1515 = vrot.slane %v1404, 1
      %v1516 = vsel %vm951, %v1513, %v1515
      %v1517 = vrot.slane %v1405, 1
      %v1518 = vrot.slane %v1406, 1
      %v1519 = vsel %vm951, %v1517, %v1518
      %v1520 = vrot.slane %v1407, 1
      %v1521 = vsel %vm951, %v1518, %v1520
      %v1522 = vrot.slane %v1408, 1
      %v1523 = vrot.slane %v1409, 1
      %v1524 = vsel %vm951, %v1522, %v1523
      %v1525 = vrot.slane %v1410, 1
      %v1526 = vsel %vm951, %v1523, %v1525
      %v1527 = vrot.slane %v1411, 1
      %v1528 = vrot.slane %v1412, 1
      %v1529 = vsel %vm951, %v1527, %v1528
      %v1530 = vrot.slane %v1413, 1
      %v1531 = vsel %vm951, %v1528, %v1530
      %v1532 = vrot.slane %v1414, 1
      %v1533 = vrot.slane %v1415, 1
      %v1534 = vsel %vm951, %v1532, %v1533
      %v1535 = vrot.slane %v1416, 1
      %v1536 = vsel %vm951, %v1533, %v1535
      %v1537 = vrot.slane %v1417, 1
      %v1538 = vrot.slane %v1418, 1
      %v1539 = vsel %vm951, %v1537, %v1538
      %v1540 = vrot.slane %v1419, 1
      %v1541 = vsel %vm951, %v1538, %v1540
      %v1542 = vrot.slane %v1420, 1
      %v1543 = vrot.slane %v1421, 1
      %v1544 = vsel %vm951, %v1542, %v1543
      %v1545 = vrot.slane %v1422, 1
      %v1546 = vsel %vm951, %v1543, %v1545
      %v1547 = vrot.slane %v1423, 1
      %v1548 = vrot.slane %v1424, 1
      %v1549 = vsel %vm951, %v1547, %v1548
      %v1550 = vrot.slane %v1425, 1
      %v1551 = vsel %vm951, %v1548, %v1550
      %v1552 = vrot.slane %v1426, 1
      %v1553 = vrot.slane %v1427, 1
      %v1554 = vsel %vm951, %v1552, %v1553
      %v1555 = vrot.slane %v1428, 1
      %v1556 = vsel %vm951, %v1553, %v1555
      %v1589 = vadd.f32 %v1341, %v1479
      %v1590 = vadd.f32 %v1342, %v1481
      %v1591 = vadd.f32 %v1343, %v1484
      %v1592 = vadd.f32 %v1344, %v1486
      %v1593 = vadd.f32 %v1345, %v1489
      %v1594 = vadd.f32 %v1346, %v1491
      %v1595 = vadd.f32 %v1347, %v1494
      %v1596 = vadd.f32 %v1348, %v1496
      %v1597 = vadd.f32 %v1349, %v1499
      %v1598 = vadd.f32 %v1350, %v1501
      %v1599 = vadd.f32 %v1351, %v1504
      %v1600 = vadd.f32 %v1352, %v1506
      %v1601 = vadd.f32 %v1353, %v1509
      %v1602 = vadd.f32 %v1354, %v1511
      %v1603 = vadd.f32 %v1355, %v1514
      %v1604 = vadd.f32 %v1356, %v1516
      %v1605 = vadd.f32 %v1357, %v1519
      %v1606 = vadd.f32 %v1358, %v1521
      %v1607 = vadd.f32 %v1359, %v1524
      %v1608 = vadd.f32 %v1360, %v1526
      %v1609 = vadd.f32 %v1361, %v1529
      %v1610 = vadd.f32 %v1362, %v1531
      %v1611 = vadd.f32 %v1363, %v1534
      %v1612 = vadd.f32 %v1364, %v1536
      %v1613 = vadd.f32 %v1365, %v1539
      %v1614 = vadd.f32 %v1366, %v1541
      %v1615 = vadd.f32 %v1367, %v1544
      %v1616 = vadd.f32 %v1368, %v1546
      %v1617 = vadd.f32 %v1369, %v1549
      %v1618 = vadd.f32 %v1370, %v1551
      %v1619 = vadd.f32 %v1371, %v1554
      %v1620 = vadd.f32 %v1372, %v1556
      %s1621 = scalar_lea.vmem %s3, 5
      %v1622 = vld [vmem:[%s1621] sm:$0x1]
      %v1624 = vlaneseq
      %v1625 = vshrl.u32 %v1624, 7
      %v1626 = vsub.s32 0, %v1625
      %v1627 = vrot.slane %v1622, %v1626
      %v1629 = vmul.f32 %v818, %v1627
      %v1630 = vmul.f32 %v724, %v1627
      %v1631 = vmul.f32 %v834, %v1627
      %v1632 = vmul.f32 %v819, %v1627
      %v1633 = vmul.f32 %v727, %v1627
      %v1634 = vmul.f32 %v835, %v1627
      %v1635 = vmul.f32 %v820, %v1627
      %v1636 = vmul.f32 %v730, %v1627
      %v1637 = vmul.f32 %v836, %v1627
      %v1638 = vmul.f32 %v821, %v1627
      %v1639 = vmul.f32 %v733, %v1627
      %v1640 = vmul.f32 %v837, %v1627
      %v1641 = vmul.f32 %v822, %v1627
      %v1642 = vmul.f32 %v736, %v1627
      %v1643 = vmul.f32 %v838, %v1627
      %v1644 = vmul.f32 %v823, %v1627
      %v1645 = vmul.f32 %v739, %v1627
      %v1646 = vmul.f32 %v839, %v1627
      %v1647 = vmul.f32 %v824, %v1627
      %v1648 = vmul.f32 %v742, %v1627
      %v1649 = vmul.f32 %v840, %v1627
      %v1650 = vmul.f32 %v825, %v1627
      %v1651 = vmul.f32 %v745, %v1627
      %v1652 = vmul.f32 %v841, %v1627
      %v1653 = vmul.f32 %v826, %v1627
      %v1654 = vmul.f32 %v748, %v1627
      %v1655 = vmul.f32 %v842, %v1627
      %v1656 = vmul.f32 %v827, %v1627
      %v1657 = vmul.f32 %v751, %v1627
      %v1658 = vmul.f32 %v843, %v1627
      %v1659 = vmul.f32 %v828, %v1627
      %v1660 = vmul.f32 %v754, %v1627
      %v1661 = vmul.f32 %v844, %v1627
      %v1662 = vmul.f32 %v829, %v1627
      %v1663 = vmul.f32 %v757, %v1627
      %v1664 = vmul.f32 %v845, %v1627
      %v1665 = vmul.f32 %v830, %v1627
      %v1666 = vmul.f32 %v760, %v1627
      %v1667 = vmul.f32 %v846, %v1627
      %v1668 = vmul.f32 %v831, %v1627
      %v1669 = vmul.f32 %v763, %v1627
      %v1670 = vmul.f32 %v847, %v1627
      %v1671 = vmul.f32 %v832, %v1627
      %v1672 = vmul.f32 %v766, %v1627
      %v1673 = vmul.f32 %v848, %v1627
      %v1674 = vmul.f32 %v833, %v1627
      %v1675 = vmul.f32 %v769, %v1627
      %v1676 = vmul.f32 %v849, %v1627
      %v1725 = vrot.slane %v1629, 2
      %v1726 = vrot.slane %v1630, 2
      %v1727 = vsel %vm1127, %v1725, %v1726
      %v1728 = vrot.slane %v1631, 2
      %v1729 = vsel %vm1127, %v1726, %v1728
      %v1730 = vrot.slane %v1632, 2
      %v1731 = vrot.slane %v1633, 2
      %v1732 = vsel %vm1127, %v1730, %v1731
      %v1733 = vrot.slane %v1634, 2
      %v1734 = vsel %vm1127, %v1731, %v1733
      %v1735 = vrot.slane %v1635, 2
      %v1736 = vrot.slane %v1636, 2
      %v1737 = vsel %vm1127, %v1735, %v1736
      %v1738 = vrot.slane %v1637, 2
      %v1739 = vsel %vm1127, %v1736, %v1738
      %v1740 = vrot.slane %v1638, 2
      %v1741 = vrot.slane %v1639, 2
      %v1742 = vsel %vm1127, %v1740, %v1741
      %v1743 = vrot.slane %v1640, 2
      %v1744 = vsel %vm1127, %v1741, %v1743
      %v1745 = vrot.slane %v1641, 2
      %v1746 = vrot.slane %v1642, 2
      %v1747 = vsel %vm1127, %v1745, %v1746
      %v1748 = vrot.slane %v1643, 2
      %v1749 = vsel %vm1127, %v1746, %v1748
      %v1750 = vrot.slane %v1644, 2
      %v1751 = vrot.slane %v1645, 2
      %v1752 = vsel %vm1127, %v1750, %v1751
      %v1753 = vrot.slane %v1646, 2
      %v1754 = vsel %vm1127, %v1751, %v1753
      %v1755 = vrot.slane %v1647, 2
      %v1756 = vrot.slane %v1648, 2
      %v1757 = vsel %vm1127, %v1755, %v1756
      %v1758 = vrot.slane %v1649, 2
      %v1759 = vsel %vm1127, %v1756, %v1758
      %v1760 = vrot.slane %v1650, 2
      %v1761 = vrot.slane %v1651, 2
      %v1762 = vsel %vm1127, %v1760, %v1761
      %v1763 = vrot.slane %v1652, 2
      %v1764 = vsel %vm1127, %v1761, %v1763
      %v1765 = vrot.slane %v1653, 2
      %v1766 = vrot.slane %v1654, 2
      %v1767 = vsel %vm1127, %v1765, %v1766
      %v1768 = vrot.slane %v1655, 2
      %v1769 = vsel %vm1127, %v1766, %v1768
      %v1770 = vrot.slane %v1656, 2
      %v1771 = vrot.slane %v1657, 2
      %v1772 = vsel %vm1127, %v1770, %v1771
      %v1773 = vrot.slane %v1658, 2
      %v1774 = vsel %vm1127, %v1771, %v1773
      %v1775 = vrot.slane %v1659, 2
      %v1776 = vrot.slane %v1660, 2
      %v1777 = vsel %vm1127, %v1775, %v1776
      %v1778 = vrot.slane %v1661, 2
      %v1779 = vsel %vm1127, %v1776, %v1778
      %v1780 = vrot.slane %v1662, 2
      %v1781 = vrot.slane %v1663, 2
      %v1782 = vsel %vm1127, %v1780, %v1781
      %v1783 = vrot.slane %v1664, 2
      %v1784 = vsel %vm1127, %v1781, %v1783
      %v1785 = vrot.slane %v1665, 2
      %v1786 = vrot.slane %v1666, 2
      %v1787 = vsel %vm1127, %v1785, %v1786
      %v1788 = vrot.slane %v1667, 2
      %v1789 = vsel %vm1127, %v1786, %v1788
      %v1790 = vrot.slane %v1668, 2
      %v1791 = vrot.slane %v1669, 2
      %v1792 = vsel %vm1127, %v1790, %v1791
      %v1793 = vrot.slane %v1670, 2
      %v1794 = vsel %vm1127, %v1791, %v1793
      %v1795 = vrot.slane %v1671, 2
      %v1796 = vrot.slane %v1672, 2
      %v1797 = vsel %vm1127, %v1795, %v1796
      %v1798 = vrot.slane %v1673, 2
      %v1799 = vsel %vm1127, %v1796, %v1798
      %v1800 = vrot.slane %v1674, 2
      %v1801 = vrot.slane %v1675, 2
      %v1802 = vsel %vm1127, %v1800, %v1801
      %v1803 = vrot.slane %v1676, 2
      %v1804 = vsel %vm1127, %v1801, %v1803
      %v1837 = vadd.f32 %v1589, %v1727
      %v1838 = vadd.f32 %v1590, %v1729
      %v1839 = vadd.f32 %v1591, %v1732
      %v1840 = vadd.f32 %v1592, %v1734
      %v1841 = vadd.f32 %v1593, %v1737
      %v1842 = vadd.f32 %v1594, %v1739
      %v1843 = vadd.f32 %v1595, %v1742
      %v1844 = vadd.f32 %v1596, %v1744
      %v1845 = vadd.f32 %v1597, %v1747
      %v1846 = vadd.f32 %v1598, %v1749
      %v1847 = vadd.f32 %v1599, %v1752
      %v1848 = vadd.f32 %v1600, %v1754
      %v1849 = vadd.f32 %v1601, %v1757
      %v1850 = vadd.f32 %v1602, %v1759
      %v1851 = vadd.f32 %v1603, %v1762
      %v1852 = vadd.f32 %v1604, %v1764
      %v1853 = vadd.f32 %v1605, %v1767
      %v1854 = vadd.f32 %v1606, %v1769
      %v1855 = vadd.f32 %v1607, %v1772
      %v1856 = vadd.f32 %v1608, %v1774
      %v1857 = vadd.f32 %v1609, %v1777
      %v1858 = vadd.f32 %v1610, %v1779
      %v1859 = vadd.f32 %v1611, %v1782
      %v1860 = vadd.f32 %v1612, %v1784
      %v1861 = vadd.f32 %v1613, %v1787
      %v1862 = vadd.f32 %v1614, %v1789
      %v1863 = vadd.f32 %v1615, %v1792
      %v1864 = vadd.f32 %v1616, %v1794
      %v1865 = vadd.f32 %v1617, %v1797
      %v1866 = vadd.f32 %v1618, %v1799
      %v1867 = vadd.f32 %v1619, %v1802
      %v1868 = vadd.f32 %v1620, %v1804
      %s1869 = scalar_lea.vmem %s3, 6
      %v1870 = vld [vmem:[%s1869] sm:$0x1]
      %v1872 = vlaneseq
      %v1873 = vshrl.u32 %v1872, 7
      %v1874 = vsub.s32 0, %v1873
      %v1875 = vrot.slane %v1870, %v1874
      %v1877 = vmul.f32 %v819, %v1875
      %v1878 = vmul.f32 %v727, %v1875
      %v1879 = vmul.f32 %v820, %v1875
      %v1880 = vmul.f32 %v730, %v1875
      %v1881 = vmul.f32 %v821, %v1875
      %v1882 = vmul.f32 %v733, %v1875
      %v1883 = vmul.f32 %v822, %v1875
      %v1884 = vmul.f32 %v736, %v1875
      %v1885 = vmul.f32 %v823, %v1875
      %v1886 = vmul.f32 %v739, %v1875
      %v1887 = vmul.f32 %v824, %v1875
      %v1888 = vmul.f32 %v742, %v1875
      %v1889 = vmul.f32 %v825, %v1875
      %v1890 = vmul.f32 %v745, %v1875
      %v1891 = vmul.f32 %v826, %v1875
      %v1892 = vmul.f32 %v748, %v1875
      %v1893 = vmul.f32 %v827, %v1875
      %v1894 = vmul.f32 %v751, %v1875
      %v1895 = vmul.f32 %v828, %v1875
      %v1896 = vmul.f32 %v754, %v1875
      %v1897 = vmul.f32 %v829, %v1875
      %v1898 = vmul.f32 %v757, %v1875
      %v1899 = vmul.f32 %v830, %v1875
      %v1900 = vmul.f32 %v760, %v1875
      %v1901 = vmul.f32 %v831, %v1875
      %v1902 = vmul.f32 %v763, %v1875
      %v1903 = vmul.f32 %v832, %v1875
      %v1904 = vmul.f32 %v766, %v1875
      %v1905 = vmul.f32 %v833, %v1875
      %v1906 = vmul.f32 %v769, %v1875
      %v1907 = vmul.f32 %v1875, 0.0
      %v1908 = vadd.f32 %v1837, %v1877
      %v1909 = vadd.f32 %v1838, %v1878
      %v1910 = vadd.f32 %v1839, %v1879
      %v1911 = vadd.f32 %v1840, %v1880
      %v1912 = vadd.f32 %v1841, %v1881
      %v1913 = vadd.f32 %v1842, %v1882
      %v1914 = vadd.f32 %v1843, %v1883
      %v1915 = vadd.f32 %v1844, %v1884
      %v1916 = vadd.f32 %v1845, %v1885
      %v1917 = vadd.f32 %v1846, %v1886
      %v1918 = vadd.f32 %v1847, %v1887
      %v1919 = vadd.f32 %v1848, %v1888
      %v1920 = vadd.f32 %v1849, %v1889
      %v1921 = vadd.f32 %v1850, %v1890
      %v1922 = vadd.f32 %v1851, %v1891
      %v1923 = vadd.f32 %v1852, %v1892
      %v1924 = vadd.f32 %v1853, %v1893
      %v1925 = vadd.f32 %v1854, %v1894
      %v1926 = vadd.f32 %v1855, %v1895
      %v1927 = vadd.f32 %v1856, %v1896
      %v1928 = vadd.f32 %v1857, %v1897
      %v1929 = vadd.f32 %v1858, %v1898
      %v1930 = vadd.f32 %v1859, %v1899
      %v1931 = vadd.f32 %v1860, %v1900
      %v1932 = vadd.f32 %v1861, %v1901
      %v1933 = vadd.f32 %v1862, %v1902
      %v1934 = vadd.f32 %v1863, %v1903
      %v1935 = vadd.f32 %v1864, %v1904
      %v1936 = vadd.f32 %v1865, %v1905
      %v1937 = vadd.f32 %v1866, %v1906
      %v1938 = vadd.f32 %v1867, %v1907
      %v1939 = vadd.f32 %v1868, %v1907
      %s1940 = scalar_lea.vmem %s3, 7
      %v1941 = vld [vmem:[%s1940] sm:$0x1]
      %v1943 = vlaneseq
      %v1944 = vshrl.u32 %v1943, 7
      %v1945 = vsub.s32 0, %v1944
      %v1946 = vrot.slane %v1941, %v1945
      %v1948 = vmul.f32 %v819, %v1946
      %v1949 = vmul.f32 %v727, %v1946
      %v1950 = vmul.f32 %v835, %v1946
      %v1951 = vmul.f32 %v820, %v1946
      %v1952 = vmul.f32 %v730, %v1946
      %v1953 = vmul.f32 %v836, %v1946
      %v1954 = vmul.f32 %v821, %v1946
      %v1955 = vmul.f32 %v733, %v1946
      %v1956 = vmul.f32 %v837, %v1946
      %v1957 = vmul.f32 %v822, %v1946
      %v1958 = vmul.f32 %v736, %v1946
      %v1959 = vmul.f32 %v838, %v1946
      %v1960 = vmul.f32 %v823, %v1946
      %v1961 = vmul.f32 %v739, %v1946
      %v1962 = vmul.f32 %v839, %v1946
      %v1963 = vmul.f32 %v824, %v1946
      %v1964 = vmul.f32 %v742, %v1946
      %v1965 = vmul.f32 %v840, %v1946
      %v1966 = vmul.f32 %v825, %v1946
      %v1967 = vmul.f32 %v745, %v1946
      %v1968 = vmul.f32 %v841, %v1946
      %v1969 = vmul.f32 %v826, %v1946
      %v1970 = vmul.f32 %v748, %v1946
      %v1971 = vmul.f32 %v842, %v1946
      %v1972 = vmul.f32 %v827, %v1946
      %v1973 = vmul.f32 %v751, %v1946
      %v1974 = vmul.f32 %v843, %v1946
      %v1975 = vmul.f32 %v828, %v1946
      %v1976 = vmul.f32 %v754, %v1946
      %v1977 = vmul.f32 %v844, %v1946
      %v1978 = vmul.f32 %v829, %v1946
      %v1979 = vmul.f32 %v757, %v1946
      %v1980 = vmul.f32 %v845, %v1946
      %v1981 = vmul.f32 %v830, %v1946
      %v1982 = vmul.f32 %v760, %v1946
      %v1983 = vmul.f32 %v846, %v1946
      %v1984 = vmul.f32 %v831, %v1946
      %v1985 = vmul.f32 %v763, %v1946
      %v1986 = vmul.f32 %v847, %v1946
      %v1987 = vmul.f32 %v832, %v1946
      %v1988 = vmul.f32 %v766, %v1946
      %v1989 = vmul.f32 %v848, %v1946
      %v1990 = vmul.f32 %v833, %v1946
      %v1991 = vmul.f32 %v769, %v1946
      %v1992 = vmul.f32 %v849, %v1946
      %v1993 = vmul.f32 %v1946, 0.0
      %v2040 = vrot.slane %v1948, 1
      %v2041 = vrot.slane %v1949, 1
      %v2042 = vsel %vm951, %v2040, %v2041
      %v2043 = vrot.slane %v1950, 1
      %v2044 = vsel %vm951, %v2041, %v2043
      %v2045 = vrot.slane %v1951, 1
      %v2046 = vrot.slane %v1952, 1
      %v2047 = vsel %vm951, %v2045, %v2046
      %v2048 = vrot.slane %v1953, 1
      %v2049 = vsel %vm951, %v2046, %v2048
      %v2050 = vrot.slane %v1954, 1
      %v2051 = vrot.slane %v1955, 1
      %v2052 = vsel %vm951, %v2050, %v2051
      %v2053 = vrot.slane %v1956, 1
      %v2054 = vsel %vm951, %v2051, %v2053
      %v2055 = vrot.slane %v1957, 1
      %v2056 = vrot.slane %v1958, 1
      %v2057 = vsel %vm951, %v2055, %v2056
      %v2058 = vrot.slane %v1959, 1
      %v2059 = vsel %vm951, %v2056, %v2058
      %v2060 = vrot.slane %v1960, 1
      %v2061 = vrot.slane %v1961, 1
      %v2062 = vsel %vm951, %v2060, %v2061
      %v2063 = vrot.slane %v1962, 1
      %v2064 = vsel %vm951, %v2061, %v2063
      %v2065 = vrot.slane %v1963, 1
      %v2066 = vrot.slane %v1964, 1
      %v2067 = vsel %vm951, %v2065, %v2066
      %v2068 = vrot.slane %v1965, 1
      %v2069 = vsel %vm951, %v2066, %v2068
      %v2070 = vrot.slane %v1966, 1
      %v2071 = vrot.slane %v1967, 1
      %v2072 = vsel %vm951, %v2070, %v2071
      %v2073 = vrot.slane %v1968, 1
      %v2074 = vsel %vm951, %v2071, %v2073
      %v2075 = vrot.slane %v1969, 1
      %v2076 = vrot.slane %v1970, 1
      %v2077 = vsel %vm951, %v2075, %v2076
      %v2078 = vrot.slane %v1971, 1
      %v2079 = vsel %vm951, %v2076, %v2078
      %v2080 = vrot.slane %v1972, 1
      %v2081 = vrot.slane %v1973, 1
      %v2082 = vsel %vm951, %v2080, %v2081
      %v2083 = vrot.slane %v1974, 1
      %v2084 = vsel %vm951, %v2081, %v2083
      %v2085 = vrot.slane %v1975, 1
      %v2086 = vrot.slane %v1976, 1
      %v2087 = vsel %vm951, %v2085, %v2086
      %v2088 = vrot.slane %v1977, 1
      %v2089 = vsel %vm951, %v2086, %v2088
      %v2090 = vrot.slane %v1978, 1
      %v2091 = vrot.slane %v1979, 1
      %v2092 = vsel %vm951, %v2090, %v2091
      %v2093 = vrot.slane %v1980, 1
      %v2094 = vsel %vm951, %v2091, %v2093
      %v2095 = vrot.slane %v1981, 1
      %v2096 = vrot.slane %v1982, 1
      %v2097 = vsel %vm951, %v2095, %v2096
      %v2098 = vrot.slane %v1983, 1
      %v2099 = vsel %vm951, %v2096, %v2098
      %v2100 = vrot.slane %v1984, 1
      %v2101 = vrot.slane %v1985, 1
      %v2102 = vsel %vm951, %v2100, %v2101
      %v2103 = vrot.slane %v1986, 1
      %v2104 = vsel %vm951, %v2101, %v2103
      %v2105 = vrot.slane %v1987, 1
      %v2106 = vrot.slane %v1988, 1
      %v2107 = vsel %vm951, %v2105, %v2106
      %v2108 = vrot.slane %v1989, 1
      %v2109 = vsel %vm951, %v2106, %v2108
      %v2110 = vrot.slane %v1990, 1
      %v2111 = vrot.slane %v1991, 1
      %v2112 = vsel %vm951, %v2110, %v2111
      %v2113 = vrot.slane %v1992, 1
      %v2114 = vsel %vm951, %v2111, %v2113
      %v2115 = vrot.slane %v1993, 1
      %v2116 = vsel %vm951, %v2115, %v2115
      %v2148 = vadd.f32 %v1908, %v2042
      %v2149 = vadd.f32 %v1909, %v2044
      %v2150 = vadd.f32 %v1910, %v2047
      %v2151 = vadd.f32 %v1911, %v2049
      %v2152 = vadd.f32 %v1912, %v2052
      %v2153 = vadd.f32 %v1913, %v2054
      %v2154 = vadd.f32 %v1914, %v2057
      %v2155 = vadd.f32 %v1915, %v2059
      %v2156 = vadd.f32 %v1916, %v2062
      %v2157 = vadd.f32 %v1917, %v2064
      %v2158 = vadd.f32 %v1918, %v2067
      %v2159 = vadd.f32 %v1919, %v2069
      %v2160 = vadd.f32 %v1920, %v2072
      %v2161 = vadd.f32 %v1921, %v2074
      %v2162 = vadd.f32 %v1922, %v2077
      %v2163 = vadd.f32 %v1923, %v2079
      %v2164 = vadd.f32 %v1924, %v2082
      %v2165 = vadd.f32 %v1925, %v2084
      %v2166 = vadd.f32 %v1926, %v2087
      %v2167 = vadd.f32 %v1927, %v2089
      %v2168 = vadd.f32 %v1928, %v2092
      %v2169 = vadd.f32 %v1929, %v2094
      %v2170 = vadd.f32 %v1930, %v2097
      %v2171 = vadd.f32 %v1931, %v2099
      %v2172 = vadd.f32 %v1932, %v2102
      %v2173 = vadd.f32 %v1933, %v2104
      %v2174 = vadd.f32 %v1934, %v2107
      %v2175 = vadd.f32 %v1935, %v2109
      %v2176 = vadd.f32 %v1936, %v2112
      %v2177 = vadd.f32 %v1937, %v2114
      %v2178 = vadd.f32 %v1938, %v2116
      %v2179 = vadd.f32 %v1939, %v2116
      %s2180 = scalar_lea.vmem %s3, 8
      %v2181 = vld [vmem:[%s2180] sm:$0x1]
      %v2183 = vlaneseq
      %v2184 = vshrl.u32 %v2183, 7
      %v2185 = vsub.s32 0, %v2184
      %v2186 = vrot.slane %v2181, %v2185
      %v2188 = vmul.f32 %v819, %v2186
      %v2189 = vmul.f32 %v727, %v2186
      %v2190 = vmul.f32 %v835, %v2186
      %v2191 = vmul.f32 %v820, %v2186
      %v2192 = vmul.f32 %v730, %v2186
      %v2193 = vmul.f32 %v836, %v2186
      %v2194 = vmul.f32 %v821, %v2186
      %v2195 = vmul.f32 %v733, %v2186
      %v2196 = vmul.f32 %v837, %v2186
      %v2197 = vmul.f32 %v822, %v2186
      %v2198 = vmul.f32 %v736, %v2186
      %v2199 = vmul.f32 %v838, %v2186
      %v2200 = vmul.f32 %v823, %v2186
      %v2201 = vmul.f32 %v739, %v2186
      %v2202 = vmul.f32 %v839, %v2186
      %v2203 = vmul.f32 %v824, %v2186
      %v2204 = vmul.f32 %v742, %v2186
      %v2205 = vmul.f32 %v840, %v2186
      %v2206 = vmul.f32 %v825, %v2186
      %v2207 = vmul.f32 %v745, %v2186
      %v2208 = vmul.f32 %v841, %v2186
      %v2209 = vmul.f32 %v826, %v2186
      %v2210 = vmul.f32 %v748, %v2186
      %v2211 = vmul.f32 %v842, %v2186
      %v2212 = vmul.f32 %v827, %v2186
      %v2213 = vmul.f32 %v751, %v2186
      %v2214 = vmul.f32 %v843, %v2186
      %v2215 = vmul.f32 %v828, %v2186
      %v2216 = vmul.f32 %v754, %v2186
      %v2217 = vmul.f32 %v844, %v2186
      %v2218 = vmul.f32 %v829, %v2186
      %v2219 = vmul.f32 %v757, %v2186
      %v2220 = vmul.f32 %v845, %v2186
      %v2221 = vmul.f32 %v830, %v2186
      %v2222 = vmul.f32 %v760, %v2186
      %v2223 = vmul.f32 %v846, %v2186
      %v2224 = vmul.f32 %v831, %v2186
      %v2225 = vmul.f32 %v763, %v2186
      %v2226 = vmul.f32 %v847, %v2186
      %v2227 = vmul.f32 %v832, %v2186
      %v2228 = vmul.f32 %v766, %v2186
      %v2229 = vmul.f32 %v848, %v2186
      %v2230 = vmul.f32 %v833, %v2186
      %v2231 = vmul.f32 %v769, %v2186
      %v2232 = vmul.f32 %v849, %v2186
      %v2233 = vmul.f32 %v2186, 0.0
      %v2280 = vrot.slane %v2188, 2
      %v2281 = vrot.slane %v2189, 2
      %v2282 = vsel %vm1127, %v2280, %v2281
      %v2283 = vrot.slane %v2190, 2
      %v2284 = vsel %vm1127, %v2281, %v2283
      %v2285 = vrot.slane %v2191, 2
      %v2286 = vrot.slane %v2192, 2
      %v2287 = vsel %vm1127, %v2285, %v2286
      %v2288 = vrot.slane %v2193, 2
      %v2289 = vsel %vm1127, %v2286, %v2288
      %v2290 = vrot.slane %v2194, 2
      %v2291 = vrot.slane %v2195, 2
      %v2292 = vsel %vm1127, %v2290, %v2291
      %v2293 = vrot.slane %v2196, 2
      %v2294 = vsel %vm1127, %v2291, %v2293
      %v2295 = vrot.slane %v2197, 2
      %v2296 = vrot.slane %v2198, 2
      %v2297 = vsel %vm1127, %v2295, %v2296
      %v2298 = vrot.slane %v2199, 2
      %v2299 = vsel %vm1127, %v2296, %v2298
      %v2300 = vrot.slane %v2200, 2
      %v2301 = vrot.slane %v2201, 2
      %v2302 = vsel %vm1127, %v2300, %v2301
      %v2303 = vrot.slane %v2202, 2
      %v2304 = vsel %vm1127, %v2301, %v2303
      %v2305 = vrot.slane %v2203, 2
      %v2306 = vrot.slane %v2204, 2
      %v2307 = vsel %vm1127, %v2305, %v2306
      %v2308 = vrot.slane %v2205, 2
      %v2309 = vsel %vm1127, %v2306, %v2308
      %v2310 = vrot.slane %v2206, 2
      %v2311 = vrot.slane %v2207, 2
      %v2312 = vsel %vm1127, %v2310, %v2311
      %v2313 = vrot.slane %v2208, 2
      %v2314 = vsel %vm1127, %v2311, %v2313
      %v2315 = vrot.slane %v2209, 2
      %v2316 = vrot.slane %v2210, 2
      %v2317 = vsel %vm1127, %v2315, %v2316
      %v2318 = vrot.slane %v2211, 2
      %v2319 = vsel %vm1127, %v2316, %v2318
      %v2320 = vrot.slane %v2212, 2
      %v2321 = vrot.slane %v2213, 2
      %v2322 = vsel %vm1127, %v2320, %v2321
      %v2323 = vrot.slane %v2214, 2
      %v2324 = vsel %vm1127, %v2321, %v2323
      %v2325 = vrot.slane %v2215, 2
      %v2326 = vrot.slane %v2216, 2
      %v2327 = vsel %vm1127, %v2325, %v2326
      %v2328 = vrot.slane %v2217, 2
      %v2329 = vsel %vm1127, %v2326, %v2328
      %v2330 = vrot.slane %v2218, 2
      %v2331 = vrot.slane %v2219, 2
      %v2332 = vsel %vm1127, %v2330, %v2331
      %v2333 = vrot.slane %v2220, 2
      %v2334 = vsel %vm1127, %v2331, %v2333
      %v2335 = vrot.slane %v2221, 2
      %v2336 = vrot.slane %v2222, 2
      %v2337 = vsel %vm1127, %v2335, %v2336
      %v2338 = vrot.slane %v2223, 2
      %v2339 = vsel %vm1127, %v2336, %v2338
      %v2340 = vrot.slane %v2224, 2
      %v2341 = vrot.slane %v2225, 2
      %v2342 = vsel %vm1127, %v2340, %v2341
      %v2343 = vrot.slane %v2226, 2
      %v2344 = vsel %vm1127, %v2341, %v2343
      %v2345 = vrot.slane %v2227, 2
      %v2346 = vrot.slane %v2228, 2
      %v2347 = vsel %vm1127, %v2345, %v2346
      %v2348 = vrot.slane %v2229, 2
      %v2349 = vsel %vm1127, %v2346, %v2348
      %v2350 = vrot.slane %v2230, 2
      %v2351 = vrot.slane %v2231, 2
      %v2352 = vsel %vm1127, %v2350, %v2351
      %v2353 = vrot.slane %v2232, 2
      %v2354 = vsel %vm1127, %v2351, %v2353
      %v2355 = vrot.slane %v2233, 2
      %v2356 = vsel %vm1127, %v2355, %v2355
      %v2388 = vadd.f32 %v2148, %v2282
      %v2389 = vadd.f32 %v2149, %v2284
      %v2390 = vadd.f32 %v2150, %v2287
      %v2391 = vadd.f32 %v2151, %v2289
      %v2392 = vadd.f32 %v2152, %v2292
      %v2393 = vadd.f32 %v2153, %v2294
      %v2394 = vadd.f32 %v2154, %v2297
      %v2395 = vadd.f32 %v2155, %v2299
      %v2396 = vadd.f32 %v2156, %v2302
      %v2397 = vadd.f32 %v2157, %v2304
      %v2398 = vadd.f32 %v2158, %v2307
      %v2399 = vadd.f32 %v2159, %v2309
      %v2400 = vadd.f32 %v2160, %v2312
      %v2401 = vadd.f32 %v2161, %v2314
      %v2402 = vadd.f32 %v2162, %v2317
      %v2403 = vadd.f32 %v2163, %v2319
      %v2404 = vadd.f32 %v2164, %v2322
      %v2405 = vadd.f32 %v2165, %v2324
      %v2406 = vadd.f32 %v2166, %v2327
      %v2407 = vadd.f32 %v2167, %v2329
      %v2408 = vadd.f32 %v2168, %v2332
      %v2409 = vadd.f32 %v2169, %v2334
      %v2410 = vadd.f32 %v2170, %v2337
      %v2411 = vadd.f32 %v2171, %v2339
      %v2412 = vadd.f32 %v2172, %v2342
      %v2413 = vadd.f32 %v2173, %v2344
      %v2414 = vadd.f32 %v2174, %v2347
      %v2415 = vadd.f32 %v2175, %v2349
      %v2416 = vadd.f32 %v2176, %v2352
      %v2417 = vadd.f32 %v2177, %v2354
      %v2418 = vadd.f32 %v2178, %v2356
      %v2419 = vadd.f32 %v2179, %v2356
      %v2420 = vld [vmem:[%s4] sm:$0x1]
      %v2422 = vlaneseq
      %v2423 = vshrl.u32 %v2422, 7
      %v2424 = vsub.s32 0, %v2423
      %v2425 = vrot.slane %v2420, %v2424
      %v2427 = vadd.f32 %v2388, %v2425
      %v2428 = vadd.f32 %v2389, %v2425
      %v2429 = vadd.f32 %v2390, %v2425
      %v2430 = vadd.f32 %v2391, %v2425
      %v2431 = vadd.f32 %v2392, %v2425
      %v2432 = vadd.f32 %v2393, %v2425
      %v2433 = vadd.f32 %v2394, %v2425
      %v2434 = vadd.f32 %v2395, %v2425
      %v2435 = vadd.f32 %v2396, %v2425
      %v2436 = vadd.f32 %v2397, %v2425
      %v2437 = vadd.f32 %v2398, %v2425
      %v2438 = vadd.f32 %v2399, %v2425
      %v2439 = vadd.f32 %v2400, %v2425
      %v2440 = vadd.f32 %v2401, %v2425
      %v2441 = vadd.f32 %v2402, %v2425
      %v2442 = vadd.f32 %v2403, %v2425
      %v2443 = vadd.f32 %v2404, %v2425
      %v2444 = vadd.f32 %v2405, %v2425
      %v2445 = vadd.f32 %v2406, %v2425
      %v2446 = vadd.f32 %v2407, %v2425
      %v2447 = vadd.f32 %v2408, %v2425
      %v2448 = vadd.f32 %v2409, %v2425
      %v2449 = vadd.f32 %v2410, %v2425
      %v2450 = vadd.f32 %v2411, %v2425
      %v2451 = vadd.f32 %v2412, %v2425
      %v2452 = vadd.f32 %v2413, %v2425
      %v2453 = vadd.f32 %v2414, %v2425
      %v2454 = vadd.f32 %v2415, %v2425
      %v2455 = vadd.f32 %v2416, %v2425
      %v2456 = vadd.f32 %v2417, %v2425
      %v2457 = vadd.f32 %v2418, %v2425
      %v2458 = vadd.f32 %v2419, %v2425
      %v2459 = vmax.f32 %v2427, 0.0
      %v2460 = vmax.f32 %v2428, 0.0
      %v2461 = vmax.f32 %v2429, 0.0
      %v2462 = vmax.f32 %v2430, 0.0
      %v2463 = vmax.f32 %v2431, 0.0
      %v2464 = vmax.f32 %v2432, 0.0
      %v2465 = vmax.f32 %v2433, 0.0
      %v2466 = vmax.f32 %v2434, 0.0
      %v2467 = vmax.f32 %v2435, 0.0
      %v2468 = vmax.f32 %v2436, 0.0
      %v2469 = vmax.f32 %v2437, 0.0
      %v2470 = vmax.f32 %v2438, 0.0
      %v2471 = vmax.f32 %v2439, 0.0
      %v2472 = vmax.f32 %v2440, 0.0
      %v2473 = vmax.f32 %v2441, 0.0
      %v2474 = vmax.f32 %v2442, 0.0
      %v2475 = vmax.f32 %v2443, 0.0
      %v2476 = vmax.f32 %v2444, 0.0
      %v2477 = vmax.f32 %v2445, 0.0
      %v2478 = vmax.f32 %v2446, 0.0
      %v2479 = vmax.f32 %v2447, 0.0
      %v2480 = vmax.f32 %v2448, 0.0
      %v2481 = vmax.f32 %v2449, 0.0
      %v2482 = vmax.f32 %v2450, 0.0
      %v2483 = vmax.f32 %v2451, 0.0
      %v2484 = vmax.f32 %v2452, 0.0
      %v2485 = vmax.f32 %v2453, 0.0
      %v2486 = vmax.f32 %v2454, 0.0
      %v2487 = vmax.f32 %v2455, 0.0
      %v2488 = vmax.f32 %v2456, 0.0
      %v2489 = vmax.f32 %v2457, 0.0
      %v2490 = vmax.f32 %v2458, 0.0
      %v2491 = vpack.c.bf16 %v2460, %v2459
      %v2492 = vpack.c.bf16 %v2462, %v2461
      %v2493 = vpack.c.bf16 %v2464, %v2463
      %v2494 = vpack.c.bf16 %v2466, %v2465
      %v2495 = vpack.c.bf16 %v2468, %v2467
      %v2496 = vpack.c.bf16 %v2470, %v2469
      %v2497 = vpack.c.bf16 %v2472, %v2471
      %v2498 = vpack.c.bf16 %v2474, %v2473
      %v2499 = vpack.c.bf16 %v2476, %v2475
      %v2500 = vpack.c.bf16 %v2478, %v2477
      %v2501 = vpack.c.bf16 %v2480, %v2479
      %v2502 = vpack.c.bf16 %v2482, %v2481
      %v2503 = vpack.c.bf16 %v2484, %v2483
      %v2504 = vpack.c.bf16 %v2486, %v2485
      %v2505 = vpack.c.bf16 %v2488, %v2487
      %v2506 = vpack.c.bf16 %v2490, %v2489
      %v2507 = vld [vmem:[%s5] sm:$0xf]
      %v2508 = vld [vmem:[%s5 + $0x4] sm:$0xf]
      %v2509 = vld [vmem:[%s5 + $0x8] sm:$0xf]
      %v2510 = vld [vmem:[%s5 + $0xc] sm:$0xf]
      %v2511 = vld [vmem:[%s6] sm:$0x1]
      %v2513 = vlaneseq
      %v2514 = vshrl.u32 %v2513, 7
      %v2515 = vsub.s32 0, %v2514
      %v2516 = vrot.slane %v2511, %v2515
      %v2522 = vunpack.c.l.b16 %v2507
      %v2523 = vunpack.c.l.b16 %v2508
      %v2524 = vunpack.c.l.b16 %v2509
      %v2525 = vunpack.c.l.b16 %v2510
      %v2526 = vpack.c.b16 %v2523, %v2522
      %v2527 = vpack.c.b16 %v2525, %v2524
      %vm2530 = vcmask 261120
      %v2532 = vsel %vm2530, %v2491, 0
      %v2535 = vsel %vm2530, %v2492, 0
      %v2538 = vsel %vm2530, %v2493, 0
      %v2541 = vsel %vm2530, %v2494, 0
      %v2544 = vsel %vm2530, %v2495, 0
      %v2547 = vsel %vm2530, %v2496, 0
      %v2550 = vsel %vm2530, %v2497, 0
      %v2553 = vsel %vm2530, %v2498, 0
      %v2556 = vsel %vm2530, %v2499, 0
      %v2559 = vsel %vm2530, %v2500, 0
      %v2562 = vsel %vm2530, %v2501, 0
      %v2565 = vsel %vm2530, %v2502, 0
      %v2568 = vsel %vm2530, %v2503, 0
      %v2571 = vsel %vm2530, %v2504, 0
      %v2574 = vsel %vm2530, %v2505, 0
      %v2577 = vsel %vm2530, %v2506, 0
      %2579 = vmatprep.subr.bf16.mxu0 0
      %2580 = vmatpush1.bf16.msra.mxu0 %v2526
      %2581 = vmatprep.subr.bf16.mxu0 0
      %2582 = vmatpush1.bf16.msra.mxu0 %v2527
      %2583 = vmatprep.subr.bf16.mxu0 0
      %2584 = vmatpush1.bf16.msra.mxu0 0
      %2585 = vmatprep.subr.bf16.mxu0 0
      %2586 = vmatpush1.bf16.msra.mxu0 0
      %2587 = vmatprep.subr.bf16.mxu0 0
      %2588 = vmatpush1.bf16.msra.mxu0 0
      %2589 = vmatprep.subr.bf16.mxu0 0
      %2590 = vmatpush1.bf16.msra.mxu0 0
      %2591 = vmatprep.subr.bf16.mxu0 0
      %2592 = vmatpush1.bf16.msra.mxu0 0
      %2593 = vmatprep.subr.bf16.mxu0 0
      %2594 = vmatpush1.bf16.msra.mxu0 0
      %2595 = vmatprep.subr.bf16.mxu0 0
      %2596 = vmatpush1.bf16.msra.mxu0 0
      %2597 = vmatprep.subr.bf16.mxu0 0
      %2598 = vmatpush1.bf16.msra.mxu0 0
      %2599 = vmatprep.subr.bf16.mxu0 0
      %2600 = vmatpush1.bf16.msra.mxu0 0
      %2601 = vmatprep.subr.bf16.mxu0 0
      %2602 = vmatpush1.bf16.msra.mxu0 0
      %2603 = vmatprep.subr.bf16.mxu0 0
      %2604 = vmatpush1.bf16.msra.mxu0 0
      %2605 = vmatprep.subr.bf16.mxu0 0
      %2606 = vmatpush1.bf16.msra.mxu0 0
      %2607 = vmatprep.subr.bf16.mxu0 0
      %2608 = vmatpush1.bf16.msra.mxu0 0
      %2609 = vmatprep.subr.bf16.mxu0 0
      %2610 = vmatpush1.bf16.msra.mxu0 0
      %2611 = vmatprep.mubr.bf16.mxu0 0
      %2612 = vmatmul.mubr.bf16.gmra.mrb[0].mxu0 %v2532
      %v2613 = vpop.f32.mrb[0].mxu0
      %v2614 = vadd.f32 %v2516, %v2613
      %v2615 = vpop.f32.mrb[0].mxu0
      %v2616 = vpop.f32.mrb[0].mxu0
      %v2617 = vadd.f32 %v2516, %v2616
      %v2618 = vpop.f32.mrb[0].mxu0
      %2619 = vmatprep.mubr.bf16.mxu0 0
      %2620 = vmatmul.mubr.bf16.gmra.mrb[0].mxu0 %v2535
      %v2621 = vpop.f32.mrb[0].mxu0
      %v2622 = vadd.f32 %v2516, %v2621
      %v2623 = vpop.f32.mrb[0].mxu0
      %v2624 = vpop.f32.mrb[0].mxu0
      %v2625 = vadd.f32 %v2516, %v2624
      %v2626 = vpop.f32.mrb[0].mxu0
      %2627 = vmatprep.mubr.bf16.mxu0 0
      %2628 = vmatmul.mubr.bf16.gmra.mrb[0].mxu0 %v2538
      %v2629 = vpop.f32.mrb[0].mxu0
      %v2630 = vadd.f32 %v2516, %v2629
      %v2631 = vpop.f32.mrb[0].mxu0
      %v2632 = vpop.f32.mrb[0].mxu0
      %v2633 = vadd.f32 %v2516, %v2632
      %v2634 = vpop.f32.mrb[0].mxu0
      %2635 = vmatprep.mubr.bf16.mxu0 0
      %2636 = vmatmul.mubr.bf16.gmra.mrb[0].mxu0 %v2541
      %v2637 = vpop.f32.mrb[0].mxu0
      %v2638 = vadd.f32 %v2516, %v2637
      %v2639 = vpop.f32.mrb[0].mxu0
      %v2640 = vpop.f32.mrb[0].mxu0
      %v2641 = vadd.f32 %v2516, %v2640
      %v2642 = vpop.f32.mrb[0].mxu0
      %2643 = vmatprep.mubr.bf16.mxu0 0
      %2644 = vmatmul.mubr.bf16.gmra.mrb[0].mxu0 %v2544
      %v2645 = vpop.f32.mrb[0].mxu0
      %v2646 = vadd.f32 %v2516, %v2645
      %v2647 = vpop.f32.mrb[0].mxu0
      %v2648 = vpop.f32.mrb[0].mxu0
      %v2649 = vadd.f32 %v2516, %v2648
      %v2650 = vpop.f32.mrb[0].mxu0
      %2651 = vmatprep.mubr.bf16.mxu0 0
      %2652 = vmatmul.mubr.bf16.gmra.mrb[0].mxu0 %v2547
      %v2653 = vpop.f32.mrb[0].mxu0
      %v2654 = vadd.f32 %v2516, %v2653
      %v2655 = vpop.f32.mrb[0].mxu0
      %v2656 = vpop.f32.mrb[0].mxu0
      %v2657 = vadd.f32 %v2516, %v2656
      %v2658 = vpop.f32.mrb[0].mxu0
      %2659 = vmatprep.mubr.bf16.mxu0 0
      %2660 = vmatmul.mubr.bf16.gmra.mrb[0].mxu0 %v2550
      %v2661 = vpop.f32.mrb[0].mxu0
      %v2662 = vadd.f32 %v2516, %v2661
      %v2663 = vpop.f32.mrb[0].mxu0
      %v2664 = vpop.f32.mrb[0].mxu0
      %v2665 = vadd.f32 %v2516, %v2664
      %v2666 = vpop.f32.mrb[0].mxu0
      %2667 = vmatprep.mubr.bf16.mxu0 0
      %2668 = vmatmul.mubr.bf16.gmra.mrb[0].mxu0 %v2553
      %v2669 = vpop.f32.mrb[0].mxu0
      %v2670 = vadd.f32 %v2516, %v2669
      %v2671 = vpop.f32.mrb[0].mxu0
      %v2672 = vpop.f32.mrb[0].mxu0
      %v2673 = vadd.f32 %v2516, %v2672
      %v2674 = vpop.f32.mrb[0].mxu0
      %2675 = vmatprep.mubr.bf16.mxu0 0
      %2676 = vmatmul.mubr.bf16.gmra.mrb[0].mxu0 %v2556
      %v2677 = vpop.f32.mrb[0].mxu0
      %v2678 = vadd.f32 %v2516, %v2677
      %v2679 = vpop.f32.mrb[0].mxu0
      %v2680 = vpop.f32.mrb[0].mxu0
      %v2681 = vadd.f32 %v2516, %v2680
      %v2682 = vpop.f32.mrb[0].mxu0
      %2683 = vmatprep.mubr.bf16.mxu0 0
      %2684 = vmatmul.mubr.bf16.gmra.mrb[0].mxu0 %v2559
      %v2685 = vpop.f32.mrb[0].mxu0
      %v2686 = vadd.f32 %v2516, %v2685
      %v2687 = vpop.f32.mrb[0].mxu0
      %v2688 = vpop.f32.mrb[0].mxu0
      %v2689 = vadd.f32 %v2516, %v2688
      %v2690 = vpop.f32.mrb[0].mxu0
      %2691 = vmatprep.mubr.bf16.mxu0 0
      %2692 = vmatmul.mubr.bf16.gmra.mrb[0].mxu0 %v2562
      %v2693 = vpop.f32.mrb[0].mxu0
      %v2694 = vadd.f32 %v2516, %v2693
      %v2695 = vpop.f32.mrb[0].mxu0
      %v2696 = vpop.f32.mrb[0].mxu0
      %v2697 = vadd.f32 %v2516, %v2696
      %v2698 = vpop.f32.mrb[0].mxu0
      %2699 = vmatprep.mubr.bf16.mxu0 0
      %2700 = vmatmul.mubr.bf16.gmra.mrb[0].mxu0 %v2565
      %v2701 = vpop.f32.mrb[0].mxu0
      %v2702 = vadd.f32 %v2516, %v2701
      %v2703 = vpop.f32.mrb[0].mxu0
      %v2704 = vpop.f32.mrb[0].mxu0
      %v2705 = vadd.f32 %v2516, %v2704
      %v2706 = vpop.f32.mrb[0].mxu0
      %2707 = vmatprep.mubr.bf16.mxu0 0
      %2708 = vmatmul.mubr.bf16.gmra.mrb[0].mxu0 %v2568
      %v2709 = vpop.f32.mrb[0].mxu0
      %v2710 = vadd.f32 %v2516, %v2709
      %v2711 = vpop.f32.mrb[0].mxu0
      %v2712 = vpop.f32.mrb[0].mxu0
      %v2713 = vadd.f32 %v2516, %v2712
      %v2714 = vpop.f32.mrb[0].mxu0
      %2715 = vmatprep.mubr.bf16.mxu0 0
      %2716 = vmatmul.mubr.bf16.gmra.mrb[0].mxu0 %v2571
      %v2717 = vpop.f32.mrb[0].mxu0
      %v2718 = vadd.f32 %v2516, %v2717
      %v2719 = vpop.f32.mrb[0].mxu0
      %v2720 = vpop.f32.mrb[0].mxu0
      %v2721 = vadd.f32 %v2516, %v2720
      %v2722 = vpop.f32.mrb[0].mxu0
      %2723 = vmatprep.mubr.bf16.mxu0 0
      %2724 = vmatmul.mubr.bf16.gmra.mrb[0].mxu0 %v2574
      %v2725 = vpop.f32.mrb[0].mxu0
      %v2726 = vadd.f32 %v2516, %v2725
      %v2727 = vpop.f32.mrb[0].mxu0
      %v2728 = vpop.f32.mrb[0].mxu0
      %v2729 = vadd.f32 %v2516, %v2728
      %v2730 = vpop.f32.mrb[0].mxu0
      %2731 = vmatprep.mubr.bf16.mxu0 0
      %2732 = vmatmul.mubr.bf16.gmra.mrb[0].mxu0 %v2577
      %v2733 = vpop.f32.mrb[0].mxu0
      %v2734 = vadd.f32 %v2516, %v2733
      %v2735 = vpop.f32.mrb[0].mxu0
      %v2736 = vpop.f32.mrb[0].mxu0
      %v2737 = vadd.f32 %v2516, %v2736
      %v2738 = vpop.f32.mrb[0].mxu0
      %2739 = vdwg.mxu0
      %2740 = vst.msk [vmem:[%s298] sm:$0xff] %vm447, %v2614
      %2741 = vst.msk [vmem:[%s298 + $0x8] sm:$0xff] %vm447, %v2617
      %2742 = vst.msk [vmem:[%s298 + $0x10] sm:$0xff] %vm447, %v2622
      %2743 = vst.msk [vmem:[%s298 + $0x18] sm:$0xff] %vm447, %v2625
      %2744 = vst.msk [vmem:[%s298 + $0x20] sm:$0xff] %vm447, %v2630
      %2745 = vst.msk [vmem:[%s298 + $0x28] sm:$0xff] %vm447, %v2633
      %2746 = vst.msk [vmem:[%s298 + $0x30] sm:$0xff] %vm447, %v2638
      %2747 = vst.msk [vmem:[%s298 + $0x38] sm:$0xff] %vm447, %v2641
      %2748 = vst.msk [vmem:[%s298 + $0x40] sm:$0xff] %vm447, %v2646
      %2749 = vst.msk [vmem:[%s298 + $0x48] sm:$0xff] %vm447, %v2649
      %2750 = vst.msk [vmem:[%s298 + $0x50] sm:$0xff] %vm447, %v2654
      %2751 = vst.msk [vmem:[%s298 + $0x58] sm:$0xff] %vm447, %v2657
      %2752 = vst.msk [vmem:[%s298 + $0x60] sm:$0xff] %vm447, %v2662
      %2753 = vst.msk [vmem:[%s298 + $0x68] sm:$0xff] %vm447, %v2665
      %2754 = vst.msk [vmem:[%s298 + $0x70] sm:$0xff] %vm447, %v2670
      %2755 = vst.msk [vmem:[%s298 + $0x78] sm:$0xff] %vm447, %v2673
      %2756 = vst.msk [vmem:[%s298 + $0x80] sm:$0xff] %vm447, %v2678
      %2757 = vst.msk [vmem:[%s298 + $0x88] sm:$0xff] %vm447, %v2681
      %2758 = vst.msk [vmem:[%s298 + $0x90] sm:$0xff] %vm447, %v2686
      %2759 = vst.msk [vmem:[%s298 + $0x98] sm:$0xff] %vm447, %v2689
      %2760 = vst.msk [vmem:[%s298 + $0xa0] sm:$0xff] %vm447, %v2694
      %2761 = vst.msk [vmem:[%s298 + $0xa8] sm:$0xff] %vm447, %v2697
      %2762 = vst.msk [vmem:[%s298 + $0xb0] sm:$0xff] %vm447, %v2702
      %2763 = vst.msk [vmem:[%s298 + $0xb8] sm:$0xff] %vm447, %v2705
      %2764 = vst.msk [vmem:[%s298 + $0xc0] sm:$0xff] %vm447, %v2710
      %2765 = vst.msk [vmem:[%s298 + $0xc8] sm:$0xff] %vm447, %v2713
      %2766 = vst.msk [vmem:[%s298 + $0xd0] sm:$0xff] %vm447, %v2718
      %2767 = vst.msk [vmem:[%s298 + $0xd8] sm:$0xff] %vm447, %v2721
      %2768 = vst.msk [vmem:[%s298 + $0xe0] sm:$0xff] %vm447, %v2726
      %2769 = vst.msk [vmem:[%s298 + $0xe8] sm:$0xff] %vm447, %v2729
      %2770 = vst.msk [vmem:[%s298 + $0xf0] sm:$0xff] %vm447, %v2734
      %2771 = vst.msk [vmem:[%s298 + $0xf8] sm:$0xff] %vm447, %v2737
      %p2772 = scmp.lt.s32.totalorder %s18, 1
      %s2773 = scalar_select %p2772, %s18, 1
      %s2774 = smul.addr %s2773, 32
      %s2775 = smul.addr %s2774, 8
      %s2776 = scalar_lea.vmem %s7, %s2775
      // Predicated region
      $region49: #{attention_block_forward.3} parent=47 // pred_check
        %p2777 = pneg %p193
      $region50: #{attention_block_forward.3} parent=47 // pred_check_branch
        %2779 = sbr.rel (%p2777) target = $region52
      $region51: #{attention_block_forward.3} parent=47 // pred_region
        _
      $region52: #{attention_block_forward.3} parent=47 // pred_fallthru
        _
    $region48: #{attention_block_forward.3} parent=5 // pred_fallthru
      _
    %p2780 = scmp.le.s32.totalorder 2, %s13
    // Predicated region
    $region53: #{attention_block_forward.3} parent=5 // pred_check
      %p2781 = pneg %p2780
    $region54: #{attention_block_forward.3} parent=5 // pred_check_branch
      %2783 = sbr.rel (%p2781) target = $region56
    $region55: #{attention_block_forward.3} parent=5 // pred_region
      %s2784 = ssub.s32 %s13, 2
      // Predicated region
      $region57: #{attention_block_forward.3} parent=55 // pred_check
        %p2785 = pneg %p199
      $region58: #{attention_block_forward.3} parent=55 // pred_check_branch
        %2787 = sbr.rel (%p2785) target = $region60
      $region59: #{attention_block_forward.3} parent=55 // pred_region
        %p2788 = scmp.lt.s32.totalorder %s19, 1
        %s2789 = scalar_select %p2788, %s19, 1
        %s2790 = smul.addr %s2789, 32
        %s2791 = smul.addr %s2790, 8
        %s2792 = scalar_lea.vmem %s7, %s2791
      $region60: #{attention_block_forward.3} parent=55 // pred_fallthru
        _
    $region56: #{attention_block_forward.3} parent=5 // pred_fallthru
      _
  $region6: #{attention_block_forward.3} parent=0 // loop_footer
    %s17 = sadd.s32 1, %s13
  $region7: #{attention_block_forward.3} parent=0 // loop_footer_branch
    %12 = sbr.rel target = $region3
  $region8: #{attention_block_forward.3} parent=0 // loop_exit
    _

</llo_original>
